<compile_context>
chip_gen: v7x
topology: tpu7x:2x2x1
jax: 0.10.0
libtpu: 0.0.40
codegen_flags: <defaults>
</compile_context>

<pallas_src>
import functools
import math

import jax
import jax.numpy as jnp
from jax.experimental import pallas as pl
from jax.experimental.pallas import tpu as pltpu

_EPS = 1e-5  # PyTorch LayerNorm default eps


def _round_up(n, m):
    return ((n + m - 1) // m) * m


def _gelu(a):
    # TODO(synk): PyTorch nn.GELU defaults to the exact erf form; tanh
    # approximation used for portable Mosaic lowering (diff ~1e-3).
    c = 0.7978845608028654  # sqrt(2/pi)
    return 0.5 * a * (1.0 + jnp.tanh(c * (a + 0.044715 * a * a * a)))


def _layernorm_lanes(a, gamma, beta):
    # Single-pass (mean / mean-of-squares) LayerNorm over the lane axis.
    mu = jnp.mean(a, axis=-1, keepdims=True)
    ms = jnp.mean(a * a, axis=-1, keepdims=True)
    var = ms - mu * mu
    return (a - mu) * jax.lax.rsqrt(var + _EPS) * gamma + beta


def _layernorm_sublanes(a, gamma, beta):
    mu = jnp.mean(a, axis=0, keepdims=True)
    ms = jnp.mean(a * a, axis=0, keepdims=True)
    var = ms - mu * mu
    return (a - mu) * jax.lax.rsqrt(var + _EPS) * gamma + beta


# --------------------------------- kernel ------------------------------------

def _fusion_kernel(x_ref, y_ref, lw_ref, gw_ref, lv_ref, gv_ref, o_ref,
                   *, bB, T, D, r):
    Di, Ti = D // r, T // r
    lw_blk = _round_up(D + Di, 16)   # bf16 sublane packing
    gw_blk = _round_up(Ti + T, 8)    # f32 sublane packing
    vec_blk = 8

    x = x_ref[...]          # (bB*T, D) f32
    y = y_ref[...]
    lw = lw_ref[...]        # (2*lw_blk, D)   bf16  local weights
    gw = gw_ref[...]        # (2*gw_blk, T)   f32   global weights
    lv = lv_ref[...]        # (2*vec_blk, D)  f32   local bias / LN rows
    gv = gv_ref[...]        # (T, 2*vec_blk)  f32   global bias / LN columns

    def local_gate(h, blk):
        # Linear(D->Di) -> LN -> GELU -> Linear(Di->D) -> LN -> Sigmoid
        wb = blk * lw_blk
        vb = blk * vec_blk
        w1 = lw[wb:wb + D, :Di]               # (D, Di)  bf16
        w2 = lw[wb + D:wb + D + Di, :]        # (Di, D)  bf16
        b1 = lv[vb + 0:vb + 1, :Di]
        ga1 = lv[vb + 1:vb + 2, :Di]
        be1 = lv[vb + 2:vb + 3, :Di]
        b2 = lv[vb + 3:vb + 4, :]
        ga2 = lv[vb + 4:vb + 5, :]
        be2 = lv[vb + 5:vb + 6, :]
        a = jnp.dot(h.astype(w1.dtype), w1,
                    preferred_element_type=jnp.float32) + b1
        a = _layernorm_lanes(a, ga1, be1)
        a = _gelu(a)
        a = jnp.dot(a.astype(w2.dtype), w2,
                    preferred_element_type=jnp.float32) + b2
        a = _layernorm_lanes(a, ga2, be2)
        return jax.nn.sigmoid(a)              # (bB*T, D)

    def global_gate(h, blk):
        # AdaptiveAvgPool1d(1) over D, then Linear(T->Ti) -> LN -> GELU ->
        # Linear(Ti->T) -> LN -> Sigmoid, done per batch element in column
        # form (weights kept in PyTorch (out, in) layout).
        wb = blk * gw_blk
        vb = blk * vec_blk
        w1 = gw[wb:wb + Ti, :]                # (Ti, T)
        w2 = gw[wb + Ti:wb + Ti + T, :Ti]     # (T, Ti)
        b1 = gv[:Ti, vb + 0:vb + 1]
        ga1 = gv[:Ti, vb + 1:vb + 2]
        be1 = gv[:Ti, vb + 2:vb + 3]
        b2 = gv[:, vb + 3:vb + 4]
        ga2 = gv[:, vb + 4:vb + 5]
        be2 = gv[:, vb + 5:vb + 6]
        pooled = jnp.mean(h, axis=-1, keepdims=True)   # (bB*T, 1)
        cols = []
        for b in range(bB):                            # static tiny loop
            p = pooled[b * T:(b + 1) * T, :]           # (T, 1)
            a = jnp.dot(w1, p, preferred_element_type=jnp.float32) + b1
            a = _layernorm_sublanes(a, ga1, be1)
            a = _gelu(a)
            a = jnp.dot(w2, a, preferred_element_type=jnp.float32) + b2
            a = _layernorm_sublanes(a, ga2, be2)
            cols.append(jax.nn.sigmoid(a))             # (T, 1)
        return jnp.concatenate(cols, axis=0)           # (bB*T, 1)

    xa = x + y
    l1 = local_gate(xa, 0)
    g1 = global_gate(xa, 0)
    xx = x * l1
    yy = y - y * l1                    # == y * (1 - l1)
    z = yy + g1 * (xx - yy)            # == g1*xx + (1-g1)*yy
    l2 = local_gate(z, 1)
    g2 = global_gate(z, 1)
    xx2 = xx * l2
    yy2 = yy - yy * l2
    z2 = yy2 + g2 * (xx2 - yy2)
    o_ref[...] = z2.astype(o_ref.dtype)


# -------------------------------- wrapper ------------------------------------

def fusion_forward(x, y, packed_params, *, r=4, batch_block=2):
    B, T, D = x.shape
    assert B % batch_block == 0, "batch must be divisible by batch_block"
    lw, gw, lvec, gvec = packed_params
    M = batch_block * T

    # Present lane-dense 2-D slabs to the kernel; reshape is free in XLA.
    xf = x.reshape(B * T, D)
    yf = y.reshape(B * T, D)

    io_spec = pl.BlockSpec((M, D), lambda i: (i, 0))

    def const_spec(a):
        # Full-array block, constant index -> fetched once, kept resident.
        return pl.BlockSpec(a.shape, lambda i: (0, 0))

    kernel = functools.partial(_fusion_kernel, bB=batch_block, T=T, D=D, r=r)
    out = pl.pallas_call(
        kernel,
        out_shape=jax.ShapeDtypeStruct((B * T, D), x.dtype),
        grid_spec=pl.GridSpec(
            grid=(B // batch_block,),
            in_specs=[io_spec, io_spec,
                      const_spec(lw), const_spec(gw),
                      const_spec(lvec), const_spec(gvec)],
            out_specs=io_spec,
        ),
        compiler_params=pltpu.CompilerParams(
            dimension_semantics=("parallel",),
            vmem_limit_bytes=32 * 1024 * 1024),
    )(xf, yf, lw, gw, lvec, gvec)
    return out.reshape(B, T, D)


# ----------------------- parameter init (deterministic) -----------------------

def init_params(key, token_len, feature_dim, r=4):
    Di, Ti = feature_dim // r, token_len // r
    ks = jax.random.split(key, 4)

    def linear(k, fan_in, fan_out):
        bound = 1.0 / math.sqrt(fan_in)
        kw, kb = jax.random.split(k)
        w = jax.random.uniform(kw, (fan_out, fan_in), jnp.float32, -bound, bound)
        b = jax.random.uniform(kb, (fan_out,), jnp.float32, -bound, bound)
        return w, b

    def ln_init(k, n):
        # PyTorch default is ones/zeros; mildly randomized so the check
        # exercises the affine plumbing.
        kg, kb = jax.random.split(k)
        return (jax.random.uniform(kg, (n,), jnp.float32, 0.5, 1.5),
                jax.random.uniform(kb, (n,), jnp.float32, -0.1, 0.1))

    def local_block(k):
        k1, k2, k3, k4 = jax.random.split(k, 4)
        w1, b1 = linear(k1, feature_dim, Di)    # torch layout (Di, D)
        w2, b2 = linear(k2, Di, feature_dim)    # torch layout (D, Di)
        g1, be1 = ln_init(k3, Di)
        g2, be2 = ln_init(k4, feature_dim)
        return dict(w1=w1.T, b1=b1, g1=g1, be1=be1,   # stored (D, Di)
                    w2=w2.T, b2=b2, g2=g2, be2=be2)   # stored (Di, D)

    def global_block(k):
        k1, k2, k3, k4 = jax.random.split(k, 4)
        w1, b1 = linear(k1, token_len, Ti)      # (Ti, T), torch layout kept
        w2, b2 = linear(k2, Ti, token_len)      # (T, Ti)
        g1, be1 = ln_init(k3, Ti)
        g2, be2 = ln_init(k4, token_len)
        return dict(w1=w1, b1=b1, g1=g1, be1=be1,
                    w2=w2, b2=b2, g2=g2, be2=be2)

    return dict(local1=local_block(ks[0]), global1=global_block(ks[1]),
                local2=local_block(ks[2]), global2=global_block(ks[3]))


def pack_params(params, token_len, feature_dim, r=4):
    """Pack the 32 tiny parameters into 4 slabs (review item: param packing)."""
    D, T = feature_dim, token_len
    Di, Ti = D // r, T // r
    lw_blk = _round_up(D + Di, 16)
    gw_blk = _round_up(Ti + T, 8)
    vec_blk = 8

    def pack_local_w(p):
        blk = jnp.zeros((lw_blk, D), jnp.float32)
        blk = blk.at[:D, :Di].set(p['w1'])
        blk = blk.at[D:D + Di, :].set(p['w2'])
        return blk

    def pack_global_w(p):
        blk = jnp.zeros((gw_blk, T), jnp.float32)
        blk = blk.at[:Ti, :].set(p['w1'])
        blk = blk.at[Ti:Ti + T, :Ti].set(p['w2'])
        return blk

    def pad_to(v, n):
        return jnp.zeros((n,), jnp.float32).at[:v.shape[0]].set(v)

    def pack_local_vec(p):
        rows = [pad_to(p['b1'], D), pad_to(p['g1'], D), pad_to(p['be1'], D),
                p['b2'], p['g2'], p['be2']]
        rows += [jnp.zeros((D,), jnp.float32)] * (vec_blk - len(rows))
        return jnp.stack(rows, axis=0)                       # (vec_blk, D)

    def pack_global_vec(p):
        cols = [pad_to(p['b1'], T), pad_to(p['g1'], T), pad_to(p['be1'], T),
                p['b2'], p['g2'], p['be2']]
        cols += [jnp.zeros((T,), jnp.float32)] * (vec_blk - len(cols))
        return jnp.stack(cols, axis=1)                       # (T, vec_blk)

    lw = jnp.concatenate([pack_local_w(params['local1']),
                          pack_local_w(params['local2'])], axis=0)
    gw = jnp.concatenate([pack_global_w(params['global1']),
                          pack_global_w(params['global2'])], axis=0)
    lvec = jnp.concatenate([pack_local_vec(params['local1']),
                            pack_local_vec(params['local2'])], axis=0)
    gvec = jnp.concatenate([pack_global_vec(params['global1']),
                            pack_global_vec(params['global2'])], axis=1)
    # Local weights feed the MXU in bf16 (f32 accumulation); the tiny global
    # weights stay f32 (their matmuls are negligible -> keep exact).
    return lw.astype(jnp.bfloat16), gw, lvec, gvec


# --------------------------- plain-JAX reference ------------------------------

def fusion_reference(x, y, params, matmul_dtype=jnp.bfloat16):
    """Pure-JAX reference with the same numerics policy as the kernel
    (bf16 MXU inputs + f32 accumulation on the local path, f32 global path,
    tanh-GELU).  Exact-f32 / erf-GELU PyTorch differs by O(1e-2)."""

    def ln(a, g, b):
        mu = jnp.mean(a, axis=-1, keepdims=True)
        var = jnp.mean(jnp.square(a - mu), axis=-1, keepdims=True)
        return (a - mu) * jax.lax.rsqrt(var + _EPS) * g + b

    def local(h, p):
        a = jnp.dot(h.astype(matmul_dtype), p['w1'].astype(matmul_dtype),
                    preferred_element_type=jnp.float32) + p['b1']
        a = ln(a, p['g1'], p['be1'])
        a = _gelu(a)
        a = jnp.dot(a.astype(matmul_dtype), p['w2'].astype(matmul_dtype),
                    preferred_element_type=jnp.float32) + p['b2']
        a = ln(a, p['g2'], p['be2'])
        return jax.nn.sigmoid(a)

    def glob(h, p):
        pooled = jnp.mean(h, axis=-1)                                # (B, T)
        a = jnp.dot(pooled, p['w1'].T,
                    preferred_element_type=jnp.float32) + p['b1']
        a = ln(a, p['g1'], p['be1'])
        a = _gelu(a)
        a = jnp.dot(a, p['w2'].T,
                    preferred_element_type=jnp.float32) + p['b2']
        a = ln(a, p['g2'], p['be2'])
        return jax.nn.sigmoid(a)[:, :, None]                         # (B, T, 1)

    xa = x + y
    l = local(xa, params['local1'])
    g = glob(xa, params['global1'])
    xx = x * l
    yy = y * (1.0 - l)
    z = g * xx + (1.0 - g) * yy
    l2 = local(z, params['local2'])
    g2 = glob(z, params['global2'])
    xx2 = xx * l2
    yy2 = yy * (1.0 - l2)
    return g2 * xx2 + (1.0 - g2) * yy2


if __name__ == "__main__":
    # batch=8, token_len=16, feature_dim=128 (lane-dense), r=4
    B, T, D, r = 8, 16, 128, 4
    key = jax.random.PRNGKey(0)
    kx, ky, kp = jax.random.split(key, 3)
    x = jax.random.normal(kx, (B, T, D), jnp.float32)
    y = jax.random.normal(ky, (B, T, D), jnp.float32)

    params = init_params(kp, T, D, r)
    packed = pack_params(params, T, D, r)

    # 4 batch elements per grid step -> grid=(2,), parallel across cores.
    out = fusion_forward(x, y, packed, r=r, batch_block=4)
    out = jax.block_until_ready(out)

    ref = fusion_reference(x, y, params)
    assert out.shape == (B, T, D)
    max_err = float(jnp.max(jnp.abs(out - ref)))
    # bf16 MXU inputs vs same-policy reference: residual diffs ~1e-3.
    assert max_err < 2e-2, f"kernel/reference mismatch, max abs err {max_err}"
    print("KERNEL_OK")
</pallas_src>

<mosaic_0001>
module attributes {stable_mosaic.version = 11 : i64} {
  func.func @_fusion_kernel(%arg0: i32, %arg1: memref<64x128xf32, #tpu.memory_space<vmem>>, %arg2: memref<64x128xf32, #tpu.memory_space<vmem>>, %arg3: memref<320x128xbf16, #tpu.memory_space<vmem>>, %arg4: memref<48x16xf32, #tpu.memory_space<vmem>>, %arg5: memref<16x128xf32, #tpu.memory_space<vmem>>, %arg6: memref<16x16xf32, #tpu.memory_space<vmem>>, %arg7: memref<64x128xf32, #tpu.memory_space<vmem>>) attributes {dimension_semantics = [#tpu.dimension_semantics<parallel>], iteration_bounds = array<i64: 2>, scalar_prefetch = 0 : i64, scratch_operands = 0 : i64, tpu.core_type = #tpu.core_type<tc>, window_params = [{transform_indices = @transform_0, window_bounds = array<i64: 64, 128>}, {transform_indices = @transform_1, window_bounds = array<i64: 64, 128>}, {pipeline_mode = #tpu.pipeline_mode<synchronous>, transform_indices = @transform_2, window_bounds = array<i64: 320, 128>}, {pipeline_mode = #tpu.pipeline_mode<synchronous>, transform_indices = @transform_3, window_bounds = array<i64: 48, 16>}, {pipeline_mode = #tpu.pipeline_mode<synchronous>, transform_indices = @transform_4, window_bounds = array<i64: 16, 128>}, {pipeline_mode = #tpu.pipeline_mode<synchronous>, transform_indices = @transform_5, window_bounds = array<i64: 16, 16>}, {transform_indices = @transform_6, window_bounds = array<i64: 64, 128>}]} {
    %c0 = arith.constant 0 : index
    %c0_0 = arith.constant 0 : index
    %0 = vector.load %arg1[%c0, %c0_0] : memref<64x128xf32, #tpu.memory_space<vmem>>, vector<64x128xf32>
    %c0_1 = arith.constant 0 : index
    %c0_2 = arith.constant 0 : index
    %1 = vector.load %arg2[%c0_1, %c0_2] : memref<64x128xf32, #tpu.memory_space<vmem>>, vector<64x128xf32>
    %c0_3 = arith.constant 0 : index
    %c0_4 = arith.constant 0 : index
    %2 = vector.load %arg3[%c0_3, %c0_4] : memref<320x128xbf16, #tpu.memory_space<vmem>>, vector<320x128xbf16>
    %c0_5 = arith.constant 0 : index
    %c0_6 = arith.constant 0 : index
    %3 = vector.load %arg4[%c0_5, %c0_6] : memref<48x16xf32, #tpu.memory_space<vmem>>, vector<48x16xf32>
    %c0_7 = arith.constant 0 : index
    %c0_8 = arith.constant 0 : index
    %4 = vector.load %arg5[%c0_7, %c0_8] : memref<16x128xf32, #tpu.memory_space<vmem>>, vector<16x128xf32>
    %c0_9 = arith.constant 0 : index
    %c0_10 = arith.constant 0 : index
    %5 = vector.load %arg6[%c0_9, %c0_10] : memref<16x16xf32, #tpu.memory_space<vmem>>, vector<16x16xf32>
    %6 = arith.addf %0, %1 : vector<64x128xf32>
    %7 = vector.extract_strided_slice %2 {offsets = [0, 0], sizes = [128, 32], strides = [1, 1]} : vector<320x128xbf16> to vector<128x32xbf16>
    %8 = vector.extract_strided_slice %2 {offsets = [128, 0], sizes = [32, 128], strides = [1, 1]} : vector<320x128xbf16> to vector<32x128xbf16>
    %9 = vector.extract_strided_slice %4 {offsets = [0, 0], sizes = [1, 32], strides = [1, 1]} : vector<16x128xf32> to vector<1x32xf32>
    %10 = vector.extract_strided_slice %4 {offsets = [1, 0], sizes = [1, 32], strides = [1, 1]} : vector<16x128xf32> to vector<1x32xf32>
    %11 = vector.extract_strided_slice %4 {offsets = [2, 0], sizes = [1, 32], strides = [1, 1]} : vector<16x128xf32> to vector<1x32xf32>
    %12 = vector.extract_strided_slice %4 {offsets = [3, 0], sizes = [1, 128], strides = [1, 1]} : vector<16x128xf32> to vector<1x128xf32>
    %13 = vector.extract_strided_slice %4 {offsets = [4, 0], sizes = [1, 128], strides = [1, 1]} : vector<16x128xf32> to vector<1x128xf32>
    %14 = vector.extract_strided_slice %4 {offsets = [5, 0], sizes = [1, 128], strides = [1, 1]} : vector<16x128xf32> to vector<1x128xf32>
    %15 = arith.truncf %6 : vector<64x128xf32> to vector<64x128xbf16>
    %cst = arith.constant dense<0.000000e+00> : vector<64x32xf32>
    %16 = tpu.matmul %15, %7, %cst {dimension_numbers = #tpu.dot_dimension_numbers<[1], [0], [0], [1], [0, 0, 1, 1], [], []>} : vector<64x128xbf16>, vector<128x32xbf16>, vector<64x32xf32> -> vector<64x32xf32>
    %17 = vector.broadcast %9 : vector<1x32xf32> to vector<64x32xf32>
    %18 = arith.addf %16, %17 : vector<64x32xf32>
    %cst_11 = arith.constant dense<0.000000e+00> : vector<64xf32>
    %19 = vector.multi_reduction <add>, %18, %cst_11 [1] : vector<64x32xf32> to vector<64xf32>
    %20 = vector.shape_cast %19 : vector<64xf32> to vector<64x1xf32>
    %cst_12 = arith.constant 3.200000e+01 : f32
    %21 = vector.broadcast %cst_12 : f32 to vector<64x1xf32>
    %22 = arith.divf %20, %21 : vector<64x1xf32>
    %23 = arith.mulf %18, %18 : vector<64x32xf32>
    %cst_13 = arith.constant dense<0.000000e+00> : vector<64xf32>
    %24 = vector.multi_reduction <add>, %23, %cst_13 [1] : vector<64x32xf32> to vector<64xf32>
    %25 = vector.shape_cast %24 : vector<64xf32> to vector<64x1xf32>
    %cst_14 = arith.constant 3.200000e+01 : f32
    %26 = vector.broadcast %cst_14 : f32 to vector<64x1xf32>
    %27 = arith.divf %25, %26 : vector<64x1xf32>
    %28 = arith.mulf %22, %22 : vector<64x1xf32>
    %29 = arith.subf %27, %28 : vector<64x1xf32>
    %30 = vector.broadcast %22 : vector<64x1xf32> to vector<64x32xf32>
    %31 = arith.subf %18, %30 : vector<64x32xf32>
    %cst_15 = arith.constant 9.99999974E-6 : f32
    %32 = vector.broadcast %cst_15 : f32 to vector<64x1xf32>
    %33 = arith.addf %29, %32 : vector<64x1xf32>
    %34 = math.rsqrt %33 : vector<64x1xf32>
    %35 = vector.broadcast %34 : vector<64x1xf32> to vector<64x32xf32>
    %36 = arith.mulf %31, %35 : vector<64x32xf32>
    %37 = vector.broadcast %10 : vector<1x32xf32> to vector<64x32xf32>
    %38 = arith.mulf %36, %37 : vector<64x32xf32>
    %39 = vector.broadcast %11 : vector<1x32xf32> to vector<64x32xf32>
    %40 = arith.addf %38, %39 : vector<64x32xf32>
    %cst_16 = arith.constant 5.000000e-01 : f32
    %41 = vector.broadcast %cst_16 : f32 to vector<64x32xf32>
    %42 = arith.mulf %41, %40 : vector<64x32xf32>
    %cst_17 = arith.constant 4.471500e-02 : f32
    %43 = vector.broadcast %cst_17 : f32 to vector<64x32xf32>
    %44 = arith.mulf %43, %40 : vector<64x32xf32>
    %45 = arith.mulf %44, %40 : vector<64x32xf32>
    %46 = arith.mulf %45, %40 : vector<64x32xf32>
    %47 = arith.addf %40, %46 : vector<64x32xf32>
    %cst_18 = arith.constant 0.797884583 : f32
    %48 = vector.broadcast %cst_18 : f32 to vector<64x32xf32>
    %49 = arith.mulf %48, %47 : vector<64x32xf32>
    %50 = math.tanh %49 : vector<64x32xf32>
    %cst_19 = arith.constant 1.000000e+00 : f32
    %51 = vector.broadcast %cst_19 : f32 to vector<64x32xf32>
    %52 = arith.addf %51, %50 : vector<64x32xf32>
    %53 = arith.mulf %42, %52 : vector<64x32xf32>
    %54 = arith.truncf %53 : vector<64x32xf32> to vector<64x32xbf16>
    %cst_20 = arith.constant dense<0.000000e+00> : vector<64x128xf32>
    %55 = tpu.matmul %54, %8, %cst_20 {dimension_numbers = #tpu.dot_dimension_numbers<[1], [0], [0], [1], [0, 0, 1, 1], [], []>} : vector<64x32xbf16>, vector<32x128xbf16>, vector<64x128xf32> -> vector<64x128xf32>
    %56 = vector.broadcast %12 : vector<1x128xf32> to vector<64x128xf32>
    %57 = arith.addf %55, %56 : vector<64x128xf32>
    %cst_21 = arith.constant dense<0.000000e+00> : vector<64xf32>
    %58 = vector.multi_reduction <add>, %57, %cst_21 [1] : vector<64x128xf32> to vector<64xf32>
    %59 = vector.shape_cast %58 : vector<64xf32> to vector<64x1xf32>
    %cst_22 = arith.constant 1.280000e+02 : f32
    %60 = vector.broadcast %cst_22 : f32 to vector<64x1xf32>
    %61 = arith.divf %59, %60 : vector<64x1xf32>
    %62 = arith.mulf %57, %57 : vector<64x128xf32>
    %cst_23 = arith.constant dense<0.000000e+00> : vector<64xf32>
    %63 = vector.multi_reduction <add>, %62, %cst_23 [1] : vector<64x128xf32> to vector<64xf32>
    %64 = vector.shape_cast %63 : vector<64xf32> to vector<64x1xf32>
    %cst_24 = arith.constant 1.280000e+02 : f32
    %65 = vector.broadcast %cst_24 : f32 to vector<64x1xf32>
    %66 = arith.divf %64, %65 : vector<64x1xf32>
    %67 = arith.mulf %61, %61 : vector<64x1xf32>
    %68 = arith.subf %66, %67 : vector<64x1xf32>
    %69 = vector.broadcast %61 : vector<64x1xf32> to vector<64x128xf32>
    %70 = arith.subf %57, %69 : vector<64x128xf32>
    %cst_25 = arith.constant 9.99999974E-6 : f32
    %71 = vector.broadcast %cst_25 : f32 to vector<64x1xf32>
    %72 = arith.addf %68, %71 : vector<64x1xf32>
    %73 = math.rsqrt %72 : vector<64x1xf32>
    %74 = vector.broadcast %73 : vector<64x1xf32> to vector<64x128xf32>
    %75 = arith.mulf %70, %74 : vector<64x128xf32>
    %76 = vector.broadcast %13 : vector<1x128xf32> to vector<64x128xf32>
    %77 = arith.mulf %75, %76 : vector<64x128xf32>
    %78 = vector.broadcast %14 : vector<1x128xf32> to vector<64x128xf32>
    %79 = arith.addf %77, %78 : vector<64x128xf32>
    %80 = arith.negf %79 : vector<64x128xf32>
    %81 = math.exp %80 : vector<64x128xf32>
    %cst_26 = arith.constant 1.000000e+00 : f32
    %82 = vector.broadcast %cst_26 : f32 to vector<64x128xf32>
    %83 = arith.addf %82, %81 : vector<64x128xf32>
    %84 = arith.divf %82, %83 : vector<64x128xf32>
    %85 = vector.extract_strided_slice %3 {offsets = [0, 0], sizes = [4, 16], strides = [1, 1]} : vector<48x16xf32> to vector<4x16xf32>
    %86 = vector.extract_strided_slice %3 {offsets = [4, 0], sizes = [16, 4], strides = [1, 1]} : vector<48x16xf32> to vector<16x4xf32>
    %87 = vector.extract_strided_slice %5 {offsets = [0, 0], sizes = [4, 1], strides = [1, 1]} : vector<16x16xf32> to vector<4x1xf32>
    %88 = vector.extract_strided_slice %5 {offsets = [0, 1], sizes = [4, 1], strides = [1, 1]} : vector<16x16xf32> to vector<4x1xf32>
    %89 = vector.extract_strided_slice %5 {offsets = [0, 2], sizes = [4, 1], strides = [1, 1]} : vector<16x16xf32> to vector<4x1xf32>
    %90 = vector.extract_strided_slice %5 {offsets = [0, 3], sizes = [16, 1], strides = [1, 1]} : vector<16x16xf32> to vector<16x1xf32>
    %91 = vector.extract_strided_slice %5 {offsets = [0, 4], sizes = [16, 1], strides = [1, 1]} : vector<16x16xf32> to vector<16x1xf32>
    %92 = vector.extract_strided_slice %5 {offsets = [0, 5], sizes = [16, 1], strides = [1, 1]} : vector<16x16xf32> to vector<16x1xf32>
    %cst_27 = arith.constant dense<0.000000e+00> : vector<64xf32>
    %93 = vector.multi_reduction <add>, %6, %cst_27 [1] : vector<64x128xf32> to vector<64xf32>
    %94 = vector.shape_cast %93 : vector<64xf32> to vector<64x1xf32>
    %cst_28 = arith.constant 1.280000e+02 : f32
    %95 = vector.broadcast %cst_28 : f32 to vector<64x1xf32>
    %96 = arith.divf %94, %95 : vector<64x1xf32>
    %97 = vector.extract_strided_slice %96 {offsets = [0, 0], sizes = [16, 1], strides = [1, 1]} : vector<64x1xf32> to vector<16x1xf32>
    %cst_29 = arith.constant dense<0.000000e+00> : vector<4x1xf32>
    %98 = tpu.matmul %85, %97, %cst_29 {dimension_numbers = #tpu.dot_dimension_numbers<[1], [0], [0], [1], [0, 0, 1, 1], [], []>} : vector<4x16xf32>, vector<16x1xf32>, vector<4x1xf32> -> vector<4x1xf32>
    %99 = arith.addf %98, %87 : vector<4x1xf32>
    %cst_30 = arith.constant dense<0.000000e+00> : vector<1xf32>
    %100 = vector.multi_reduction <add>, %99, %cst_30 [0] : vector<4x1xf32> to vector<1xf32>
    %101 = vector.shape_cast %100 : vector<1xf32> to vector<1x1xf32>
    %cst_31 = arith.constant 4.000000e+00 : f32
    %102 = vector.broadcast %cst_31 : f32 to vector<1x1xf32>
    %103 = arith.divf %101, %102 : vector<1x1xf32>
    %104 = arith.mulf %99, %99 : vector<4x1xf32>
    %cst_32 = arith.constant dense<0.000000e+00> : vector<1xf32>
    %105 = vector.multi_reduction <add>, %104, %cst_32 [0] : vector<4x1xf32> to vector<1xf32>
    %106 = vector.shape_cast %105 : vector<1xf32> to vector<1x1xf32>
    %cst_33 = arith.constant 4.000000e+00 : f32
    %107 = vector.broadcast %cst_33 : f32 to vector<1x1xf32>
    %108 = arith.divf %106, %107 : vector<1x1xf32>
    %109 = arith.mulf %103, %103 : vector<1x1xf32>
    %110 = arith.subf %108, %109 : vector<1x1xf32>
    %111 = vector.broadcast %103 : vector<1x1xf32> to vector<4x1xf32>
    %112 = arith.subf %99, %111 : vector<4x1xf32>
    %cst_34 = arith.constant 9.99999974E-6 : f32
    %113 = vector.broadcast %cst_34 : f32 to vector<1x1xf32>
    %114 = arith.addf %110, %113 : vector<1x1xf32>
    %115 = math.rsqrt %114 : vector<1x1xf32>
    %116 = vector.broadcast %115 : vector<1x1xf32> to vector<4x1xf32>
    %117 = arith.mulf %112, %116 : vector<4x1xf32>
    %118 = arith.mulf %117, %88 : vector<4x1xf32>
    %119 = arith.addf %118, %89 : vector<4x1xf32>
    %cst_35 = arith.constant 5.000000e-01 : f32
    %120 = vector.broadcast %cst_35 : f32 to vector<4x1xf32>
    %121 = arith.mulf %120, %119 : vector<4x1xf32>
    %cst_36 = arith.constant 4.471500e-02 : f32
    %122 = vector.broadcast %cst_36 : f32 to vector<4x1xf32>
    %123 = arith.mulf %122, %119 : vector<4x1xf32>
    %124 = arith.mulf %123, %119 : vector<4x1xf32>
    %125 = arith.mulf %124, %119 : vector<4x1xf32>
    %126 = arith.addf %119, %125 : vector<4x1xf32>
    %cst_37 = arith.constant 0.797884583 : f32
    %127 = vector.broadcast %cst_37 : f32 to vector<4x1xf32>
    %128 = arith.mulf %127, %126 : vector<4x1xf32>
    %129 = math.tanh %128 : vector<4x1xf32>
    %cst_38 = arith.constant 1.000000e+00 : f32
    %130 = vector.broadcast %cst_38 : f32 to vector<4x1xf32>
    %131 = arith.addf %130, %129 : vector<4x1xf32>
    %132 = arith.mulf %121, %131 : vector<4x1xf32>
    %cst_39 = arith.constant dense<0.000000e+00> : vector<16x1xf32>
    %133 = tpu.matmul %86, %132, %cst_39 {dimension_numbers = #tpu.dot_dimension_numbers<[1], [0], [0], [1], [0, 0, 1, 1], [], []>} : vector<16x4xf32>, vector<4x1xf32>, vector<16x1xf32> -> vector<16x1xf32>
    %134 = arith.addf %133, %90 : vector<16x1xf32>
    %cst_40 = arith.constant dense<0.000000e+00> : vector<1xf32>
    %135 = vector.multi_reduction <add>, %134, %cst_40 [0] : vector<16x1xf32> to vector<1xf32>
    %136 = vector.shape_cast %135 : vector<1xf32> to vector<1x1xf32>
    %cst_41 = arith.constant 1.600000e+01 : f32
    %137 = vector.broadcast %cst_41 : f32 to vector<1x1xf32>
    %138 = arith.divf %136, %137 : vector<1x1xf32>
    %139 = arith.mulf %134, %134 : vector<16x1xf32>
    %cst_42 = arith.constant dense<0.000000e+00> : vector<1xf32>
    %140 = vector.multi_reduction <add>, %139, %cst_42 [0] : vector<16x1xf32> to vector<1xf32>
    %141 = vector.shape_cast %140 : vector<1xf32> to vector<1x1xf32>
    %cst_43 = arith.constant 1.600000e+01 : f32
    %142 = vector.broadcast %cst_43 : f32 to vector<1x1xf32>
    %143 = arith.divf %141, %142 : vector<1x1xf32>
    %144 = arith.mulf %138, %138 : vector<1x1xf32>
    %145 = arith.subf %143, %144 : vector<1x1xf32>
    %146 = vector.broadcast %138 : vector<1x1xf32> to vector<16x1xf32>
    %147 = arith.subf %134, %146 : vector<16x1xf32>
    %cst_44 = arith.constant 9.99999974E-6 : f32
    %148 = vector.broadcast %cst_44 : f32 to vector<1x1xf32>
    %149 = arith.addf %145, %148 : vector<1x1xf32>
    %150 = math.rsqrt %149 : vector<1x1xf32>
    %151 = vector.broadcast %150 : vector<1x1xf32> to vector<16x1xf32>
    %152 = arith.mulf %147, %151 : vector<16x1xf32>
    %153 = arith.mulf %152, %91 : vector<16x1xf32>
    %154 = arith.addf %153, %92 : vector<16x1xf32>
    %155 = arith.negf %154 : vector<16x1xf32>
    %156 = math.exp %155 : vector<16x1xf32>
    %cst_45 = arith.constant 1.000000e+00 : f32
    %157 = vector.broadcast %cst_45 : f32 to vector<16x1xf32>
    %158 = arith.addf %157, %156 : vector<16x1xf32>
    %159 = arith.divf %157, %158 : vector<16x1xf32>
    %160 = vector.extract_strided_slice %96 {offsets = [16, 0], sizes = [16, 1], strides = [1, 1]} : vector<64x1xf32> to vector<16x1xf32>
    %cst_46 = arith.constant dense<0.000000e+00> : vector<4x1xf32>
    %161 = tpu.matmul %85, %160, %cst_46 {dimension_numbers = #tpu.dot_dimension_numbers<[1], [0], [0], [1], [0, 0, 1, 1], [], []>} : vector<4x16xf32>, vector<16x1xf32>, vector<4x1xf32> -> vector<4x1xf32>
    %162 = arith.addf %161, %87 : vector<4x1xf32>
    %cst_47 = arith.constant dense<0.000000e+00> : vector<1xf32>
    %163 = vector.multi_reduction <add>, %162, %cst_47 [0] : vector<4x1xf32> to vector<1xf32>
    %164 = vector.shape_cast %163 : vector<1xf32> to vector<1x1xf32>
    %cst_48 = arith.constant 4.000000e+00 : f32
    %165 = vector.broadcast %cst_48 : f32 to vector<1x1xf32>
    %166 = arith.divf %164, %165 : vector<1x1xf32>
    %167 = arith.mulf %162, %162 : vector<4x1xf32>
    %cst_49 = arith.constant dense<0.000000e+00> : vector<1xf32>
    %168 = vector.multi_reduction <add>, %167, %cst_49 [0] : vector<4x1xf32> to vector<1xf32>
    %169 = vector.shape_cast %168 : vector<1xf32> to vector<1x1xf32>
    %cst_50 = arith.constant 4.000000e+00 : f32
    %170 = vector.broadcast %cst_50 : f32 to vector<1x1xf32>
    %171 = arith.divf %169, %170 : vector<1x1xf32>
    %172 = arith.mulf %166, %166 : vector<1x1xf32>
    %173 = arith.subf %171, %172 : vector<1x1xf32>
    %174 = vector.broadcast %166 : vector<1x1xf32> to vector<4x1xf32>
    %175 = arith.subf %162, %174 : vector<4x1xf32>
    %cst_51 = arith.constant 9.99999974E-6 : f32
    %176 = vector.broadcast %cst_51 : f32 to vector<1x1xf32>
    %177 = arith.addf %173, %176 : vector<1x1xf32>
    %178 = math.rsqrt %177 : vector<1x1xf32>
    %179 = vector.broadcast %178 : vector<1x1xf32> to vector<4x1xf32>
    %180 = arith.mulf %175, %179 : vector<4x1xf32>
    %181 = arith.mulf %180, %88 : vector<4x1xf32>
    %182 = arith.addf %181, %89 : vector<4x1xf32>
    %cst_52 = arith.constant 5.000000e-01 : f32
    %183 = vector.broadcast %cst_52 : f32 to vector<4x1xf32>
    %184 = arith.mulf %183, %182 : vector<4x1xf32>
    %cst_53 = arith.constant 4.471500e-02 : f32
    %185 = vector.broadcast %cst_53 : f32 to vector<4x1xf32>
    %186 = arith.mulf %185, %182 : vector<4x1xf32>
    %187 = arith.mulf %186, %182 : vector<4x1xf32>
    %188 = arith.mulf %187, %182 : vector<4x1xf32>
    %189 = arith.addf %182, %188 : vector<4x1xf32>
    %cst_54 = arith.constant 0.797884583 : f32
    %190 = vector.broadcast %cst_54 : f32 to vector<4x1xf32>
    %191 = arith.mulf %190, %189 : vector<4x1xf32>
    %192 = math.tanh %191 : vector<4x1xf32>
    %cst_55 = arith.constant 1.000000e+00 : f32
    %193 = vector.broadcast %cst_55 : f32 to vector<4x1xf32>
    %194 = arith.addf %193, %192 : vector<4x1xf32>
    %195 = arith.mulf %184, %194 : vector<4x1xf32>
    %cst_56 = arith.constant dense<0.000000e+00> : vector<16x1xf32>
    %196 = tpu.matmul %86, %195, %cst_56 {dimension_numbers = #tpu.dot_dimension_numbers<[1], [0], [0], [1], [0, 0, 1, 1], [], []>} : vector<16x4xf32>, vector<4x1xf32>, vector<16x1xf32> -> vector<16x1xf32>
    %197 = arith.addf %196, %90 : vector<16x1xf32>
    %cst_57 = arith.constant dense<0.000000e+00> : vector<1xf32>
    %198 = vector.multi_reduction <add>, %197, %cst_57 [0] : vector<16x1xf32> to vector<1xf32>
    %199 = vector.shape_cast %198 : vector<1xf32> to vector<1x1xf32>
    %cst_58 = arith.constant 1.600000e+01 : f32
    %200 = vector.broadcast %cst_58 : f32 to vector<1x1xf32>
    %201 = arith.divf %199, %200 : vector<1x1xf32>
    %202 = arith.mulf %197, %197 : vector<16x1xf32>
    %cst_59 = arith.constant dense<0.000000e+00> : vector<1xf32>
    %203 = vector.multi_reduction <add>, %202, %cst_59 [0] : vector<16x1xf32> to vector<1xf32>
    %204 = vector.shape_cast %203 : vector<1xf32> to vector<1x1xf32>
    %cst_60 = arith.constant 1.600000e+01 : f32
    %205 = vector.broadcast %cst_60 : f32 to vector<1x1xf32>
    %206 = arith.divf %204, %205 : vector<1x1xf32>
    %207 = arith.mulf %201, %201 : vector<1x1xf32>
    %208 = arith.subf %206, %207 : vector<1x1xf32>
    %209 = vector.broadcast %201 : vector<1x1xf32> to vector<16x1xf32>
    %210 = arith.subf %197, %209 : vector<16x1xf32>
    %cst_61 = arith.constant 9.99999974E-6 : f32
    %211 = vector.broadcast %cst_61 : f32 to vector<1x1xf32>
    %212 = arith.addf %208, %211 : vector<1x1xf32>
    %213 = math.rsqrt %212 : vector<1x1xf32>
    %214 = vector.broadcast %213 : vector<1x1xf32> to vector<16x1xf32>
    %215 = arith.mulf %210, %214 : vector<16x1xf32>
    %216 = arith.mulf %215, %91 : vector<16x1xf32>
    %217 = arith.addf %216, %92 : vector<16x1xf32>
    %218 = arith.negf %217 : vector<16x1xf32>
    %219 = math.exp %218 : vector<16x1xf32>
    %cst_62 = arith.constant 1.000000e+00 : f32
    %220 = vector.broadcast %cst_62 : f32 to vector<16x1xf32>
    %221 = arith.addf %220, %219 : vector<16x1xf32>
    %222 = arith.divf %220, %221 : vector<16x1xf32>
    %223 = vector.extract_strided_slice %96 {offsets = [32, 0], sizes = [16, 1], strides = [1, 1]} : vector<64x1xf32> to vector<16x1xf32>
    %cst_63 = arith.constant dense<0.000000e+00> : vector<4x1xf32>
    %224 = tpu.matmul %85, %223, %cst_63 {dimension_numbers = #tpu.dot_dimension_numbers<[1], [0], [0], [1], [0, 0, 1, 1], [], []>} : vector<4x16xf32>, vector<16x1xf32>, vector<4x1xf32> -> vector<4x1xf32>
    %225 = arith.addf %224, %87 : vector<4x1xf32>
    %cst_64 = arith.constant dense<0.000000e+00> : vector<1xf32>
    %226 = vector.multi_reduction <add>, %225, %cst_64 [0] : vector<4x1xf32> to vector<1xf32>
    %227 = vector.shape_cast %226 : vector<1xf32> to vector<1x1xf32>
    %cst_65 = arith.constant 4.000000e+00 : f32
    %228 = vector.broadcast %cst_65 : f32 to vector<1x1xf32>
    %229 = arith.divf %227, %228 : vector<1x1xf32>
    %230 = arith.mulf %225, %225 : vector<4x1xf32>
    %cst_66 = arith.constant dense<0.000000e+00> : vector<1xf32>
    %231 = vector.multi_reduction <add>, %230, %cst_66 [0] : vector<4x1xf32> to vector<1xf32>
    %232 = vector.shape_cast %231 : vector<1xf32> to vector<1x1xf32>
    %cst_67 = arith.constant 4.000000e+00 : f32
    %233 = vector.broadcast %cst_67 : f32 to vector<1x1xf32>
    %234 = arith.divf %232, %233 : vector<1x1xf32>
    %235 = arith.mulf %229, %229 : vector<1x1xf32>
    %236 = arith.subf %234, %235 : vector<1x1xf32>
    %237 = vector.broadcast %229 : vector<1x1xf32> to vector<4x1xf32>
    %238 = arith.subf %225, %237 : vector<4x1xf32>
    %cst_68 = arith.constant 9.99999974E-6 : f32
    %239 = vector.broadcast %cst_68 : f32 to vector<1x1xf32>
    %240 = arith.addf %236, %239 : vector<1x1xf32>
    %241 = math.rsqrt %240 : vector<1x1xf32>
    %242 = vector.broadcast %241 : vector<1x1xf32> to vector<4x1xf32>
    %243 = arith.mulf %238, %242 : vector<4x1xf32>
    %244 = arith.mulf %243, %88 : vector<4x1xf32>
    %245 = arith.addf %244, %89 : vector<4x1xf32>
    %cst_69 = arith.constant 5.000000e-01 : f32
    %246 = vector.broadcast %cst_69 : f32 to vector<4x1xf32>
    %247 = arith.mulf %246, %245 : vector<4x1xf32>
    %cst_70 = arith.constant 4.471500e-02 : f32
    %248 = vector.broadcast %cst_70 : f32 to vector<4x1xf32>
    %249 = arith.mulf %248, %245 : vector<4x1xf32>
    %250 = arith.mulf %249, %245 : vector<4x1xf32>
    %251 = arith.mulf %250, %245 : vector<4x1xf32>
    %252 = arith.addf %245, %251 : vector<4x1xf32>
    %cst_71 = arith.constant 0.797884583 : f32
    %253 = vector.broadcast %cst_71 : f32 to vector<4x1xf32>
    %254 = arith.mulf %253, %252 : vector<4x1xf32>
    %255 = math.tanh %254 : vector<4x1xf32>
    %cst_72 = arith.constant 1.000000e+00 : f32
    %256 = vector.broadcast %cst_72 : f32 to vector<4x1xf32>
    %257 = arith.addf %256, %255 : vector<4x1xf32>
    %258 = arith.mulf %247, %257 : vector<4x1xf32>
    %cst_73 = arith.constant dense<0.000000e+00> : vector<16x1xf32>
    %259 = tpu.matmul %86, %258, %cst_73 {dimension_numbers = #tpu.dot_dimension_numbers<[1], [0], [0], [1], [0, 0, 1, 1], [], []>} : vector<16x4xf32>, vector<4x1xf32>, vector<16x1xf32> -> vector<16x1xf32>
    %260 = arith.addf %259, %90 : vector<16x1xf32>
    %cst_74 = arith.constant dense<0.000000e+00> : vector<1xf32>
    %261 = vector.multi_reduction <add>, %260, %cst_74 [0] : vector<16x1xf32> to vector<1xf32>
    %262 = vector.shape_cast %261 : vector<1xf32> to vector<1x1xf32>
    %cst_75 = arith.constant 1.600000e+01 : f32
    %263 = vector.broadcast %cst_75 : f32 to vector<1x1xf32>
    %264 = arith.divf %262, %263 : vector<1x1xf32>
    %265 = arith.mulf %260, %260 : vector<16x1xf32>
    %cst_76 = arith.constant dense<0.000000e+00> : vector<1xf32>
    %266 = vector.multi_reduction <add>, %265, %cst_76 [0] : vector<16x1xf32> to vector<1xf32>
    %267 = vector.shape_cast %266 : vector<1xf32> to vector<1x1xf32>
    %cst_77 = arith.constant 1.600000e+01 : f32
    %268 = vector.broadcast %cst_77 : f32 to vector<1x1xf32>
    %269 = arith.divf %267, %268 : vector<1x1xf32>
    %270 = arith.mulf %264, %264 : vector<1x1xf32>
    %271 = arith.subf %269, %270 : vector<1x1xf32>
    %272 = vector.broadcast %264 : vector<1x1xf32> to vector<16x1xf32>
    %273 = arith.subf %260, %272 : vector<16x1xf32>
    %cst_78 = arith.constant 9.99999974E-6 : f32
    %274 = vector.broadcast %cst_78 : f32 to vector<1x1xf32>
    %275 = arith.addf %271, %274 : vector<1x1xf32>
    %276 = math.rsqrt %275 : vector<1x1xf32>
    %277 = vector.broadcast %276 : vector<1x1xf32> to vector<16x1xf32>
    %278 = arith.mulf %273, %277 : vector<16x1xf32>
    %279 = arith.mulf %278, %91 : vector<16x1xf32>
    %280 = arith.addf %279, %92 : vector<16x1xf32>
    %281 = arith.negf %280 : vector<16x1xf32>
    %282 = math.exp %281 : vector<16x1xf32>
    %cst_79 = arith.constant 1.000000e+00 : f32
    %283 = vector.broadcast %cst_79 : f32 to vector<16x1xf32>
    %284 = arith.addf %283, %282 : vector<16x1xf32>
    %285 = arith.divf %283, %284 : vector<16x1xf32>
    %286 = vector.extract_strided_slice %96 {offsets = [48, 0], sizes = [16, 1], strides = [1, 1]} : vector<64x1xf32> to vector<16x1xf32>
    %cst_80 = arith.constant dense<0.000000e+00> : vector<4x1xf32>
    %287 = tpu.matmul %85, %286, %cst_80 {dimension_numbers = #tpu.dot_dimension_numbers<[1], [0], [0], [1], [0, 0, 1, 1], [], []>} : vector<4x16xf32>, vector<16x1xf32>, vector<4x1xf32> -> vector<4x1xf32>
    %288 = arith.addf %287, %87 : vector<4x1xf32>
    %cst_81 = arith.constant dense<0.000000e+00> : vector<1xf32>
    %289 = vector.multi_reduction <add>, %288, %cst_81 [0] : vector<4x1xf32> to vector<1xf32>
    %290 = vector.shape_cast %289 : vector<1xf32> to vector<1x1xf32>
    %cst_82 = arith.constant 4.000000e+00 : f32
    %291 = vector.broadcast %cst_82 : f32 to vector<1x1xf32>
    %292 = arith.divf %290, %291 : vector<1x1xf32>
    %293 = arith.mulf %288, %288 : vector<4x1xf32>
    %cst_83 = arith.constant dense<0.000000e+00> : vector<1xf32>
    %294 = vector.multi_reduction <add>, %293, %cst_83 [0] : vector<4x1xf32> to vector<1xf32>
    %295 = vector.shape_cast %294 : vector<1xf32> to vector<1x1xf32>
    %cst_84 = arith.constant 4.000000e+00 : f32
    %296 = vector.broadcast %cst_84 : f32 to vector<1x1xf32>
    %297 = arith.divf %295, %296 : vector<1x1xf32>
    %298 = arith.mulf %292, %292 : vector<1x1xf32>
    %299 = arith.subf %297, %298 : vector<1x1xf32>
    %300 = vector.broadcast %292 : vector<1x1xf32> to vector<4x1xf32>
    %301 = arith.subf %288, %300 : vector<4x1xf32>
    %cst_85 = arith.constant 9.99999974E-6 : f32
    %302 = vector.broadcast %cst_85 : f32 to vector<1x1xf32>
    %303 = arith.addf %299, %302 : vector<1x1xf32>
    %304 = math.rsqrt %303 : vector<1x1xf32>
    %305 = vector.broadcast %304 : vector<1x1xf32> to vector<4x1xf32>
    %306 = arith.mulf %301, %305 : vector<4x1xf32>
    %307 = arith.mulf %306, %88 : vector<4x1xf32>
    %308 = arith.addf %307, %89 : vector<4x1xf32>
    %cst_86 = arith.constant 5.000000e-01 : f32
    %309 = vector.broadcast %cst_86 : f32 to vector<4x1xf32>
    %310 = arith.mulf %309, %308 : vector<4x1xf32>
    %cst_87 = arith.constant 4.471500e-02 : f32
    %311 = vector.broadcast %cst_87 : f32 to vector<4x1xf32>
    %312 = arith.mulf %311, %308 : vector<4x1xf32>
    %313 = arith.mulf %312, %308 : vector<4x1xf32>
    %314 = arith.mulf %313, %308 : vector<4x1xf32>
    %315 = arith.addf %308, %314 : vector<4x1xf32>
    %cst_88 = arith.constant 0.797884583 : f32
    %316 = vector.broadcast %cst_88 : f32 to vector<4x1xf32>
    %317 = arith.mulf %316, %315 : vector<4x1xf32>
    %318 = math.tanh %317 : vector<4x1xf32>
    %cst_89 = arith.constant 1.000000e+00 : f32
    %319 = vector.broadcast %cst_89 : f32 to vector<4x1xf32>
    %320 = arith.addf %319, %318 : vector<4x1xf32>
    %321 = arith.mulf %310, %320 : vector<4x1xf32>
    %cst_90 = arith.constant dense<0.000000e+00> : vector<16x1xf32>
    %322 = tpu.matmul %86, %321, %cst_90 {dimension_numbers = #tpu.dot_dimension_numbers<[1], [0], [0], [1], [0, 0, 1, 1], [], []>} : vector<16x4xf32>, vector<4x1xf32>, vector<16x1xf32> -> vector<16x1xf32>
    %323 = arith.addf %322, %90 : vector<16x1xf32>
    %cst_91 = arith.constant dense<0.000000e+00> : vector<1xf32>
    %324 = vector.multi_reduction <add>, %323, %cst_91 [0] : vector<16x1xf32> to vector<1xf32>
    %325 = vector.shape_cast %324 : vector<1xf32> to vector<1x1xf32>
    %cst_92 = arith.constant 1.600000e+01 : f32
    %326 = vector.broadcast %cst_92 : f32 to vector<1x1xf32>
    %327 = arith.divf %325, %326 : vector<1x1xf32>
    %328 = arith.mulf %323, %323 : vector<16x1xf32>
    %cst_93 = arith.constant dense<0.000000e+00> : vector<1xf32>
    %329 = vector.multi_reduction <add>, %328, %cst_93 [0] : vector<16x1xf32> to vector<1xf32>
    %330 = vector.shape_cast %329 : vector<1xf32> to vector<1x1xf32>
    %cst_94 = arith.constant 1.600000e+01 : f32
    %331 = vector.broadcast %cst_94 : f32 to vector<1x1xf32>
    %332 = arith.divf %330, %331 : vector<1x1xf32>
    %333 = arith.mulf %327, %327 : vector<1x1xf32>
    %334 = arith.subf %332, %333 : vector<1x1xf32>
    %335 = vector.broadcast %327 : vector<1x1xf32> to vector<16x1xf32>
    %336 = arith.subf %323, %335 : vector<16x1xf32>
    %cst_95 = arith.constant 9.99999974E-6 : f32
    %337 = vector.broadcast %cst_95 : f32 to vector<1x1xf32>
    %338 = arith.addf %334, %337 : vector<1x1xf32>
    %339 = math.rsqrt %338 : vector<1x1xf32>
    %340 = vector.broadcast %339 : vector<1x1xf32> to vector<16x1xf32>
    %341 = arith.mulf %336, %340 : vector<16x1xf32>
    %342 = arith.mulf %341, %91 : vector<16x1xf32>
    %343 = arith.addf %342, %92 : vector<16x1xf32>
    %344 = arith.negf %343 : vector<16x1xf32>
    %345 = math.exp %344 : vector<16x1xf32>
    %cst_96 = arith.constant 1.000000e+00 : f32
    %346 = vector.broadcast %cst_96 : f32 to vector<16x1xf32>
    %347 = arith.addf %346, %345 : vector<16x1xf32>
    %348 = arith.divf %346, %347 : vector<16x1xf32>
    %349 = tpu.concatenate %159, %222, %285, %348 in 0 : vector<16x1xf32>, vector<16x1xf32>, vector<16x1xf32>, vector<16x1xf32> -> vector<64x1xf32>
    %350 = arith.mulf %0, %84 : vector<64x128xf32>
    %351 = arith.mulf %1, %84 : vector<64x128xf32>
    %352 = arith.subf %1, %351 : vector<64x128xf32>
    %353 = arith.subf %350, %352 : vector<64x128xf32>
    %354 = vector.broadcast %349 : vector<64x1xf32> to vector<64x128xf32>
    %355 = arith.mulf %354, %353 : vector<64x128xf32>
    %356 = arith.addf %352, %355 : vector<64x128xf32>
    %357 = vector.extract_strided_slice %2 {offsets = [160, 0], sizes = [128, 32], strides = [1, 1]} : vector<320x128xbf16> to vector<128x32xbf16>
    %358 = vector.extract_strided_slice %2 {offsets = [288, 0], sizes = [32, 128], strides = [1, 1]} : vector<320x128xbf16> to vector<32x128xbf16>
    %359 = vector.extract_strided_slice %4 {offsets = [8, 0], sizes = [1, 32], strides = [1, 1]} : vector<16x128xf32> to vector<1x32xf32>
    %360 = vector.extract_strided_slice %4 {offsets = [9, 0], sizes = [1, 32], strides = [1, 1]} : vector<16x128xf32> to vector<1x32xf32>
    %361 = vector.extract_strided_slice %4 {offsets = [10, 0], sizes = [1, 32], strides = [1, 1]} : vector<16x128xf32> to vector<1x32xf32>
    %362 = vector.extract_strided_slice %4 {offsets = [11, 0], sizes = [1, 128], strides = [1, 1]} : vector<16x128xf32> to vector<1x128xf32>
    %363 = vector.extract_strided_slice %4 {offsets = [12, 0], sizes = [1, 128], strides = [1, 1]} : vector<16x128xf32> to vector<1x128xf32>
    %364 = vector.extract_strided_slice %4 {offsets = [13, 0], sizes = [1, 128], strides = [1, 1]} : vector<16x128xf32> to vector<1x128xf32>
    %365 = arith.truncf %356 : vector<64x128xf32> to vector<64x128xbf16>
    %cst_97 = arith.constant dense<0.000000e+00> : vector<64x32xf32>
    %366 = tpu.matmul %365, %357, %cst_97 {dimension_numbers = #tpu.dot_dimension_numbers<[1], [0], [0], [1], [0, 0, 1, 1], [], []>} : vector<64x128xbf16>, vector<128x32xbf16>, vector<64x32xf32> -> vector<64x32xf32>
    %367 = vector.broadcast %359 : vector<1x32xf32> to vector<64x32xf32>
    %368 = arith.addf %366, %367 : vector<64x32xf32>
    %cst_98 = arith.constant dense<0.000000e+00> : vector<64xf32>
    %369 = vector.multi_reduction <add>, %368, %cst_98 [1] : vector<64x32xf32> to vector<64xf32>
    %370 = vector.shape_cast %369 : vector<64xf32> to vector<64x1xf32>
    %cst_99 = arith.constant 3.200000e+01 : f32
    %371 = vector.broadcast %cst_99 : f32 to vector<64x1xf32>
    %372 = arith.divf %370, %371 : vector<64x1xf32>
    %373 = arith.mulf %368, %368 : vector<64x32xf32>
    %cst_100 = arith.constant dense<0.000000e+00> : vector<64xf32>
    %374 = vector.multi_reduction <add>, %373, %cst_100 [1] : vector<64x32xf32> to vector<64xf32>
    %375 = vector.shape_cast %374 : vector<64xf32> to vector<64x1xf32>
    %cst_101 = arith.constant 3.200000e+01 : f32
    %376 = vector.broadcast %cst_101 : f32 to vector<64x1xf32>
    %377 = arith.divf %375, %376 : vector<64x1xf32>
    %378 = arith.mulf %372, %372 : vector<64x1xf32>
    %379 = arith.subf %377, %378 : vector<64x1xf32>
    %380 = vector.broadcast %372 : vector<64x1xf32> to vector<64x32xf32>
    %381 = arith.subf %368, %380 : vector<64x32xf32>
    %cst_102 = arith.constant 9.99999974E-6 : f32
    %382 = vector.broadcast %cst_102 : f32 to vector<64x1xf32>
    %383 = arith.addf %379, %382 : vector<64x1xf32>
    %384 = math.rsqrt %383 : vector<64x1xf32>
    %385 = vector.broadcast %384 : vector<64x1xf32> to vector<64x32xf32>
    %386 = arith.mulf %381, %385 : vector<64x32xf32>
    %387 = vector.broadcast %360 : vector<1x32xf32> to vector<64x32xf32>
    %388 = arith.mulf %386, %387 : vector<64x32xf32>
    %389 = vector.broadcast %361 : vector<1x32xf32> to vector<64x32xf32>
    %390 = arith.addf %388, %389 : vector<64x32xf32>
    %cst_103 = arith.constant 5.000000e-01 : f32
    %391 = vector.broadcast %cst_103 : f32 to vector<64x32xf32>
    %392 = arith.mulf %391, %390 : vector<64x32xf32>
    %cst_104 = arith.constant 4.471500e-02 : f32
    %393 = vector.broadcast %cst_104 : f32 to vector<64x32xf32>
    %394 = arith.mulf %393, %390 : vector<64x32xf32>
    %395 = arith.mulf %394, %390 : vector<64x32xf32>
    %396 = arith.mulf %395, %390 : vector<64x32xf32>
    %397 = arith.addf %390, %396 : vector<64x32xf32>
    %cst_105 = arith.constant 0.797884583 : f32
    %398 = vector.broadcast %cst_105 : f32 to vector<64x32xf32>
    %399 = arith.mulf %398, %397 : vector<64x32xf32>
    %400 = math.tanh %399 : vector<64x32xf32>
    %cst_106 = arith.constant 1.000000e+00 : f32
    %401 = vector.broadcast %cst_106 : f32 to vector<64x32xf32>
    %402 = arith.addf %401, %400 : vector<64x32xf32>
    %403 = arith.mulf %392, %402 : vector<64x32xf32>
    %404 = arith.truncf %403 : vector<64x32xf32> to vector<64x32xbf16>
    %cst_107 = arith.constant dense<0.000000e+00> : vector<64x128xf32>
    %405 = tpu.matmul %404, %358, %cst_107 {dimension_numbers = #tpu.dot_dimension_numbers<[1], [0], [0], [1], [0, 0, 1, 1], [], []>} : vector<64x32xbf16>, vector<32x128xbf16>, vector<64x128xf32> -> vector<64x128xf32>
    %406 = vector.broadcast %362 : vector<1x128xf32> to vector<64x128xf32>
    %407 = arith.addf %405, %406 : vector<64x128xf32>
    %cst_108 = arith.constant dense<0.000000e+00> : vector<64xf32>
    %408 = vector.multi_reduction <add>, %407, %cst_108 [1] : vector<64x128xf32> to vector<64xf32>
    %409 = vector.shape_cast %408 : vector<64xf32> to vector<64x1xf32>
    %cst_109 = arith.constant 1.280000e+02 : f32
    %410 = vector.broadcast %cst_109 : f32 to vector<64x1xf32>
    %411 = arith.divf %409, %410 : vector<64x1xf32>
    %412 = arith.mulf %407, %407 : vector<64x128xf32>
    %cst_110 = arith.constant dense<0.000000e+00> : vector<64xf32>
    %413 = vector.multi_reduction <add>, %412, %cst_110 [1] : vector<64x128xf32> to vector<64xf32>
    %414 = vector.shape_cast %413 : vector<64xf32> to vector<64x1xf32>
    %cst_111 = arith.constant 1.280000e+02 : f32
    %415 = vector.broadcast %cst_111 : f32 to vector<64x1xf32>
    %416 = arith.divf %414, %415 : vector<64x1xf32>
    %417 = arith.mulf %411, %411 : vector<64x1xf32>
    %418 = arith.subf %416, %417 : vector<64x1xf32>
    %419 = vector.broadcast %411 : vector<64x1xf32> to vector<64x128xf32>
    %420 = arith.subf %407, %419 : vector<64x128xf32>
    %cst_112 = arith.constant 9.99999974E-6 : f32
    %421 = vector.broadcast %cst_112 : f32 to vector<64x1xf32>
    %422 = arith.addf %418, %421 : vector<64x1xf32>
    %423 = math.rsqrt %422 : vector<64x1xf32>
    %424 = vector.broadcast %423 : vector<64x1xf32> to vector<64x128xf32>
    %425 = arith.mulf %420, %424 : vector<64x128xf32>
    %426 = vector.broadcast %363 : vector<1x128xf32> to vector<64x128xf32>
    %427 = arith.mulf %425, %426 : vector<64x128xf32>
    %428 = vector.broadcast %364 : vector<1x128xf32> to vector<64x128xf32>
    %429 = arith.addf %427, %428 : vector<64x128xf32>
    %430 = arith.negf %429 : vector<64x128xf32>
    %431 = math.exp %430 : vector<64x128xf32>
    %cst_113 = arith.constant 1.000000e+00 : f32
    %432 = vector.broadcast %cst_113 : f32 to vector<64x128xf32>
    %433 = arith.addf %432, %431 : vector<64x128xf32>
    %434 = arith.divf %432, %433 : vector<64x128xf32>
    %435 = vector.extract_strided_slice %3 {offsets = [24, 0], sizes = [4, 16], strides = [1, 1]} : vector<48x16xf32> to vector<4x16xf32>
    %436 = vector.extract_strided_slice %3 {offsets = [28, 0], sizes = [16, 4], strides = [1, 1]} : vector<48x16xf32> to vector<16x4xf32>
    %437 = vector.extract_strided_slice %5 {offsets = [0, 8], sizes = [4, 1], strides = [1, 1]} : vector<16x16xf32> to vector<4x1xf32>
    %438 = vector.extract_strided_slice %5 {offsets = [0, 9], sizes = [4, 1], strides = [1, 1]} : vector<16x16xf32> to vector<4x1xf32>
    %439 = vector.extract_strided_slice %5 {offsets = [0, 10], sizes = [4, 1], strides = [1, 1]} : vector<16x16xf32> to vector<4x1xf32>
    %440 = vector.extract_strided_slice %5 {offsets = [0, 11], sizes = [16, 1], strides = [1, 1]} : vector<16x16xf32> to vector<16x1xf32>
    %441 = vector.extract_strided_slice %5 {offsets = [0, 12], sizes = [16, 1], strides = [1, 1]} : vector<16x16xf32> to vector<16x1xf32>
    %442 = vector.extract_strided_slice %5 {offsets = [0, 13], sizes = [16, 1], strides = [1, 1]} : vector<16x16xf32> to vector<16x1xf32>
    %cst_114 = arith.constant dense<0.000000e+00> : vector<64xf32>
    %443 = vector.multi_reduction <add>, %356, %cst_114 [1] : vector<64x128xf32> to vector<64xf32>
    %444 = vector.shape_cast %443 : vector<64xf32> to vector<64x1xf32>
    %cst_115 = arith.constant 1.280000e+02 : f32
    %445 = vector.broadcast %cst_115 : f32 to vector<64x1xf32>
    %446 = arith.divf %444, %445 : vector<64x1xf32>
    %447 = vector.extract_strided_slice %446 {offsets = [0, 0], sizes = [16, 1], strides = [1, 1]} : vector<64x1xf32> to vector<16x1xf32>
    %cst_116 = arith.constant dense<0.000000e+00> : vector<4x1xf32>
    %448 = tpu.matmul %435, %447, %cst_116 {dimension_numbers = #tpu.dot_dimension_numbers<[1], [0], [0], [1], [0, 0, 1, 1], [], []>} : vector<4x16xf32>, vector<16x1xf32>, vector<4x1xf32> -> vector<4x1xf32>
    %449 = arith.addf %448, %437 : vector<4x1xf32>
    %cst_117 = arith.constant dense<0.000000e+00> : vector<1xf32>
    %450 = vector.multi_reduction <add>, %449, %cst_117 [0] : vector<4x1xf32> to vector<1xf32>
    %451 = vector.shape_cast %450 : vector<1xf32> to vector<1x1xf32>
    %cst_118 = arith.constant 4.000000e+00 : f32
    %452 = vector.broadcast %cst_118 : f32 to vector<1x1xf32>
    %453 = arith.divf %451, %452 : vector<1x1xf32>
    %454 = arith.mulf %449, %449 : vector<4x1xf32>
    %cst_119 = arith.constant dense<0.000000e+00> : vector<1xf32>
    %455 = vector.multi_reduction <add>, %454, %cst_119 [0] : vector<4x1xf32> to vector<1xf32>
    %456 = vector.shape_cast %455 : vector<1xf32> to vector<1x1xf32>
    %cst_120 = arith.constant 4.000000e+00 : f32
    %457 = vector.broadcast %cst_120 : f32 to vector<1x1xf32>
    %458 = arith.divf %456, %457 : vector<1x1xf32>
    %459 = arith.mulf %453, %453 : vector<1x1xf32>
    %460 = arith.subf %458, %459 : vector<1x1xf32>
    %461 = vector.broadcast %453 : vector<1x1xf32> to vector<4x1xf32>
    %462 = arith.subf %449, %461 : vector<4x1xf32>
    %cst_121 = arith.constant 9.99999974E-6 : f32
    %463 = vector.broadcast %cst_121 : f32 to vector<1x1xf32>
    %464 = arith.addf %460, %463 : vector<1x1xf32>
    %465 = math.rsqrt %464 : vector<1x1xf32>
    %466 = vector.broadcast %465 : vector<1x1xf32> to vector<4x1xf32>
    %467 = arith.mulf %462, %466 : vector<4x1xf32>
    %468 = arith.mulf %467, %438 : vector<4x1xf32>
    %469 = arith.addf %468, %439 : vector<4x1xf32>
    %cst_122 = arith.constant 5.000000e-01 : f32
    %470 = vector.broadcast %cst_122 : f32 to vector<4x1xf32>
    %471 = arith.mulf %470, %469 : vector<4x1xf32>
    %cst_123 = arith.constant 4.471500e-02 : f32
    %472 = vector.broadcast %cst_123 : f32 to vector<4x1xf32>
    %473 = arith.mulf %472, %469 : vector<4x1xf32>
    %474 = arith.mulf %473, %469 : vector<4x1xf32>
    %475 = arith.mulf %474, %469 : vector<4x1xf32>
    %476 = arith.addf %469, %475 : vector<4x1xf32>
    %cst_124 = arith.constant 0.797884583 : f32
    %477 = vector.broadcast %cst_124 : f32 to vector<4x1xf32>
    %478 = arith.mulf %477, %476 : vector<4x1xf32>
    %479 = math.tanh %478 : vector<4x1xf32>
    %cst_125 = arith.constant 1.000000e+00 : f32
    %480 = vector.broadcast %cst_125 : f32 to vector<4x1xf32>
    %481 = arith.addf %480, %479 : vector<4x1xf32>
    %482 = arith.mulf %471, %481 : vector<4x1xf32>
    %cst_126 = arith.constant dense<0.000000e+00> : vector<16x1xf32>
    %483 = tpu.matmul %436, %482, %cst_126 {dimension_numbers = #tpu.dot_dimension_numbers<[1], [0], [0], [1], [0, 0, 1, 1], [], []>} : vector<16x4xf32>, vector<4x1xf32>, vector<16x1xf32> -> vector<16x1xf32>
    %484 = arith.addf %483, %440 : vector<16x1xf32>
    %cst_127 = arith.constant dense<0.000000e+00> : vector<1xf32>
    %485 = vector.multi_reduction <add>, %484, %cst_127 [0] : vector<16x1xf32> to vector<1xf32>
    %486 = vector.shape_cast %485 : vector<1xf32> to vector<1x1xf32>
    %cst_128 = arith.constant 1.600000e+01 : f32
    %487 = vector.broadcast %cst_128 : f32 to vector<1x1xf32>
    %488 = arith.divf %486, %487 : vector<1x1xf32>
    %489 = arith.mulf %484, %484 : vector<16x1xf32>
    %cst_129 = arith.constant dense<0.000000e+00> : vector<1xf32>
    %490 = vector.multi_reduction <add>, %489, %cst_129 [0] : vector<16x1xf32> to vector<1xf32>
    %491 = vector.shape_cast %490 : vector<1xf32> to vector<1x1xf32>
    %cst_130 = arith.constant 1.600000e+01 : f32
    %492 = vector.broadcast %cst_130 : f32 to vector<1x1xf32>
    %493 = arith.divf %491, %492 : vector<1x1xf32>
    %494 = arith.mulf %488, %488 : vector<1x1xf32>
    %495 = arith.subf %493, %494 : vector<1x1xf32>
    %496 = vector.broadcast %488 : vector<1x1xf32> to vector<16x1xf32>
    %497 = arith.subf %484, %496 : vector<16x1xf32>
    %cst_131 = arith.constant 9.99999974E-6 : f32
    %498 = vector.broadcast %cst_131 : f32 to vector<1x1xf32>
    %499 = arith.addf %495, %498 : vector<1x1xf32>
    %500 = math.rsqrt %499 : vector<1x1xf32>
    %501 = vector.broadcast %500 : vector<1x1xf32> to vector<16x1xf32>
    %502 = arith.mulf %497, %501 : vector<16x1xf32>
    %503 = arith.mulf %502, %441 : vector<16x1xf32>
    %504 = arith.addf %503, %442 : vector<16x1xf32>
    %505 = arith.negf %504 : vector<16x1xf32>
    %506 = math.exp %505 : vector<16x1xf32>
    %cst_132 = arith.constant 1.000000e+00 : f32
    %507 = vector.broadcast %cst_132 : f32 to vector<16x1xf32>
    %508 = arith.addf %507, %506 : vector<16x1xf32>
    %509 = arith.divf %507, %508 : vector<16x1xf32>
    %510 = vector.extract_strided_slice %446 {offsets = [16, 0], sizes = [16, 1], strides = [1, 1]} : vector<64x1xf32> to vector<16x1xf32>
    %cst_133 = arith.constant dense<0.000000e+00> : vector<4x1xf32>
    %511 = tpu.matmul %435, %510, %cst_133 {dimension_numbers = #tpu.dot_dimension_numbers<[1], [0], [0], [1], [0, 0, 1, 1], [], []>} : vector<4x16xf32>, vector<16x1xf32>, vector<4x1xf32> -> vector<4x1xf32>
    %512 = arith.addf %511, %437 : vector<4x1xf32>
    %cst_134 = arith.constant dense<0.000000e+00> : vector<1xf32>
    %513 = vector.multi_reduction <add>, %512, %cst_134 [0] : vector<4x1xf32> to vector<1xf32>
    %514 = vector.shape_cast %513 : vector<1xf32> to vector<1x1xf32>
    %cst_135 = arith.constant 4.000000e+00 : f32
    %515 = vector.broadcast %cst_135 : f32 to vector<1x1xf32>
    %516 = arith.divf %514, %515 : vector<1x1xf32>
    %517 = arith.mulf %512, %512 : vector<4x1xf32>
    %cst_136 = arith.constant dense<0.000000e+00> : vector<1xf32>
    %518 = vector.multi_reduction <add>, %517, %cst_136 [0] : vector<4x1xf32> to vector<1xf32>
    %519 = vector.shape_cast %518 : vector<1xf32> to vector<1x1xf32>
    %cst_137 = arith.constant 4.000000e+00 : f32
    %520 = vector.broadcast %cst_137 : f32 to vector<1x1xf32>
    %521 = arith.divf %519, %520 : vector<1x1xf32>
    %522 = arith.mulf %516, %516 : vector<1x1xf32>
    %523 = arith.subf %521, %522 : vector<1x1xf32>
    %524 = vector.broadcast %516 : vector<1x1xf32> to vector<4x1xf32>
    %525 = arith.subf %512, %524 : vector<4x1xf32>
    %cst_138 = arith.constant 9.99999974E-6 : f32
    %526 = vector.broadcast %cst_138 : f32 to vector<1x1xf32>
    %527 = arith.addf %523, %526 : vector<1x1xf32>
    %528 = math.rsqrt %527 : vector<1x1xf32>
    %529 = vector.broadcast %528 : vector<1x1xf32> to vector<4x1xf32>
    %530 = arith.mulf %525, %529 : vector<4x1xf32>
    %531 = arith.mulf %530, %438 : vector<4x1xf32>
    %532 = arith.addf %531, %439 : vector<4x1xf32>
    %cst_139 = arith.constant 5.000000e-01 : f32
    %533 = vector.broadcast %cst_139 : f32 to vector<4x1xf32>
    %534 = arith.mulf %533, %532 : vector<4x1xf32>
    %cst_140 = arith.constant 4.471500e-02 : f32
    %535 = vector.broadcast %cst_140 : f32 to vector<4x1xf32>
    %536 = arith.mulf %535, %532 : vector<4x1xf32>
    %537 = arith.mulf %536, %532 : vector<4x1xf32>
    %538 = arith.mulf %537, %532 : vector<4x1xf32>
    %539 = arith.addf %532, %538 : vector<4x1xf32>
    %cst_141 = arith.constant 0.797884583 : f32
    %540 = vector.broadcast %cst_141 : f32 to vector<4x1xf32>
    %541 = arith.mulf %540, %539 : vector<4x1xf32>
    %542 = math.tanh %541 : vector<4x1xf32>
    %cst_142 = arith.constant 1.000000e+00 : f32
    %543 = vector.broadcast %cst_142 : f32 to vector<4x1xf32>
    %544 = arith.addf %543, %542 : vector<4x1xf32>
    %545 = arith.mulf %534, %544 : vector<4x1xf32>
    %cst_143 = arith.constant dense<0.000000e+00> : vector<16x1xf32>
    %546 = tpu.matmul %436, %545, %cst_143 {dimension_numbers = #tpu.dot_dimension_numbers<[1], [0], [0], [1], [0, 0, 1, 1], [], []>} : vector<16x4xf32>, vector<4x1xf32>, vector<16x1xf32> -> vector<16x1xf32>
    %547 = arith.addf %546, %440 : vector<16x1xf32>
    %cst_144 = arith.constant dense<0.000000e+00> : vector<1xf32>
    %548 = vector.multi_reduction <add>, %547, %cst_144 [0] : vector<16x1xf32> to vector<1xf32>
    %549 = vector.shape_cast %548 : vector<1xf32> to vector<1x1xf32>
    %cst_145 = arith.constant 1.600000e+01 : f32
    %550 = vector.broadcast %cst_145 : f32 to vector<1x1xf32>
    %551 = arith.divf %549, %550 : vector<1x1xf32>
    %552 = arith.mulf %547, %547 : vector<16x1xf32>
    %cst_146 = arith.constant dense<0.000000e+00> : vector<1xf32>
    %553 = vector.multi_reduction <add>, %552, %cst_146 [0] : vector<16x1xf32> to vector<1xf32>
    %554 = vector.shape_cast %553 : vector<1xf32> to vector<1x1xf32>
    %cst_147 = arith.constant 1.600000e+01 : f32
    %555 = vector.broadcast %cst_147 : f32 to vector<1x1xf32>
    %556 = arith.divf %554, %555 : vector<1x1xf32>
    %557 = arith.mulf %551, %551 : vector<1x1xf32>
    %558 = arith.subf %556, %557 : vector<1x1xf32>
    %559 = vector.broadcast %551 : vector<1x1xf32> to vector<16x1xf32>
    %560 = arith.subf %547, %559 : vector<16x1xf32>
    %cst_148 = arith.constant 9.99999974E-6 : f32
    %561 = vector.broadcast %cst_148 : f32 to vector<1x1xf32>
    %562 = arith.addf %558, %561 : vector<1x1xf32>
    %563 = math.rsqrt %562 : vector<1x1xf32>
    %564 = vector.broadcast %563 : vector<1x1xf32> to vector<16x1xf32>
    %565 = arith.mulf %560, %564 : vector<16x1xf32>
    %566 = arith.mulf %565, %441 : vector<16x1xf32>
    %567 = arith.addf %566, %442 : vector<16x1xf32>
    %568 = arith.negf %567 : vector<16x1xf32>
    %569 = math.exp %568 : vector<16x1xf32>
    %cst_149 = arith.constant 1.000000e+00 : f32
    %570 = vector.broadcast %cst_149 : f32 to vector<16x1xf32>
    %571 = arith.addf %570, %569 : vector<16x1xf32>
    %572 = arith.divf %570, %571 : vector<16x1xf32>
    %573 = vector.extract_strided_slice %446 {offsets = [32, 0], sizes = [16, 1], strides = [1, 1]} : vector<64x1xf32> to vector<16x1xf32>
    %cst_150 = arith.constant dense<0.000000e+00> : vector<4x1xf32>
    %574 = tpu.matmul %435, %573, %cst_150 {dimension_numbers = #tpu.dot_dimension_numbers<[1], [0], [0], [1], [0, 0, 1, 1], [], []>} : vector<4x16xf32>, vector<16x1xf32>, vector<4x1xf32> -> vector<4x1xf32>
    %575 = arith.addf %574, %437 : vector<4x1xf32>
    %cst_151 = arith.constant dense<0.000000e+00> : vector<1xf32>
    %576 = vector.multi_reduction <add>, %575, %cst_151 [0] : vector<4x1xf32> to vector<1xf32>
    %577 = vector.shape_cast %576 : vector<1xf32> to vector<1x1xf32>
    %cst_152 = arith.constant 4.000000e+00 : f32
    %578 = vector.broadcast %cst_152 : f32 to vector<1x1xf32>
    %579 = arith.divf %577, %578 : vector<1x1xf32>
    %580 = arith.mulf %575, %575 : vector<4x1xf32>
    %cst_153 = arith.constant dense<0.000000e+00> : vector<1xf32>
    %581 = vector.multi_reduction <add>, %580, %cst_153 [0] : vector<4x1xf32> to vector<1xf32>
    %582 = vector.shape_cast %581 : vector<1xf32> to vector<1x1xf32>
    %cst_154 = arith.constant 4.000000e+00 : f32
    %583 = vector.broadcast %cst_154 : f32 to vector<1x1xf32>
    %584 = arith.divf %582, %583 : vector<1x1xf32>
    %585 = arith.mulf %579, %579 : vector<1x1xf32>
    %586 = arith.subf %584, %585 : vector<1x1xf32>
    %587 = vector.broadcast %579 : vector<1x1xf32> to vector<4x1xf32>
    %588 = arith.subf %575, %587 : vector<4x1xf32>
    %cst_155 = arith.constant 9.99999974E-6 : f32
    %589 = vector.broadcast %cst_155 : f32 to vector<1x1xf32>
    %590 = arith.addf %586, %589 : vector<1x1xf32>
    %591 = math.rsqrt %590 : vector<1x1xf32>
    %592 = vector.broadcast %591 : vector<1x1xf32> to vector<4x1xf32>
    %593 = arith.mulf %588, %592 : vector<4x1xf32>
    %594 = arith.mulf %593, %438 : vector<4x1xf32>
    %595 = arith.addf %594, %439 : vector<4x1xf32>
    %cst_156 = arith.constant 5.000000e-01 : f32
    %596 = vector.broadcast %cst_156 : f32 to vector<4x1xf32>
    %597 = arith.mulf %596, %595 : vector<4x1xf32>
    %cst_157 = arith.constant 4.471500e-02 : f32
    %598 = vector.broadcast %cst_157 : f32 to vector<4x1xf32>
    %599 = arith.mulf %598, %595 : vector<4x1xf32>
    %600 = arith.mulf %599, %595 : vector<4x1xf32>
    %601 = arith.mulf %600, %595 : vector<4x1xf32>
    %602 = arith.addf %595, %601 : vector<4x1xf32>
    %cst_158 = arith.constant 0.797884583 : f32
    %603 = vector.broadcast %cst_158 : f32 to vector<4x1xf32>
    %604 = arith.mulf %603, %602 : vector<4x1xf32>
    %605 = math.tanh %604 : vector<4x1xf32>
    %cst_159 = arith.constant 1.000000e+00 : f32
    %606 = vector.broadcast %cst_159 : f32 to vector<4x1xf32>
    %607 = arith.addf %606, %605 : vector<4x1xf32>
    %608 = arith.mulf %597, %607 : vector<4x1xf32>
    %cst_160 = arith.constant dense<0.000000e+00> : vector<16x1xf32>
    %609 = tpu.matmul %436, %608, %cst_160 {dimension_numbers = #tpu.dot_dimension_numbers<[1], [0], [0], [1], [0, 0, 1, 1], [], []>} : vector<16x4xf32>, vector<4x1xf32>, vector<16x1xf32> -> vector<16x1xf32>
    %610 = arith.addf %609, %440 : vector<16x1xf32>
    %cst_161 = arith.constant dense<0.000000e+00> : vector<1xf32>
    %611 = vector.multi_reduction <add>, %610, %cst_161 [0] : vector<16x1xf32> to vector<1xf32>
    %612 = vector.shape_cast %611 : vector<1xf32> to vector<1x1xf32>
    %cst_162 = arith.constant 1.600000e+01 : f32
    %613 = vector.broadcast %cst_162 : f32 to vector<1x1xf32>
    %614 = arith.divf %612, %613 : vector<1x1xf32>
    %615 = arith.mulf %610, %610 : vector<16x1xf32>
    %cst_163 = arith.constant dense<0.000000e+00> : vector<1xf32>
    %616 = vector.multi_reduction <add>, %615, %cst_163 [0] : vector<16x1xf32> to vector<1xf32>
    %617 = vector.shape_cast %616 : vector<1xf32> to vector<1x1xf32>
    %cst_164 = arith.constant 1.600000e+01 : f32
    %618 = vector.broadcast %cst_164 : f32 to vector<1x1xf32>
    %619 = arith.divf %617, %618 : vector<1x1xf32>
    %620 = arith.mulf %614, %614 : vector<1x1xf32>
    %621 = arith.subf %619, %620 : vector<1x1xf32>
    %622 = vector.broadcast %614 : vector<1x1xf32> to vector<16x1xf32>
    %623 = arith.subf %610, %622 : vector<16x1xf32>
    %cst_165 = arith.constant 9.99999974E-6 : f32
    %624 = vector.broadcast %cst_165 : f32 to vector<1x1xf32>
    %625 = arith.addf %621, %624 : vector<1x1xf32>
    %626 = math.rsqrt %625 : vector<1x1xf32>
    %627 = vector.broadcast %626 : vector<1x1xf32> to vector<16x1xf32>
    %628 = arith.mulf %623, %627 : vector<16x1xf32>
    %629 = arith.mulf %628, %441 : vector<16x1xf32>
    %630 = arith.addf %629, %442 : vector<16x1xf32>
    %631 = arith.negf %630 : vector<16x1xf32>
    %632 = math.exp %631 : vector<16x1xf32>
    %cst_166 = arith.constant 1.000000e+00 : f32
    %633 = vector.broadcast %cst_166 : f32 to vector<16x1xf32>
    %634 = arith.addf %633, %632 : vector<16x1xf32>
    %635 = arith.divf %633, %634 : vector<16x1xf32>
    %636 = vector.extract_strided_slice %446 {offsets = [48, 0], sizes = [16, 1], strides = [1, 1]} : vector<64x1xf32> to vector<16x1xf32>
    %cst_167 = arith.constant dense<0.000000e+00> : vector<4x1xf32>
    %637 = tpu.matmul %435, %636, %cst_167 {dimension_numbers = #tpu.dot_dimension_numbers<[1], [0], [0], [1], [0, 0, 1, 1], [], []>} : vector<4x16xf32>, vector<16x1xf32>, vector<4x1xf32> -> vector<4x1xf32>
    %638 = arith.addf %637, %437 : vector<4x1xf32>
    %cst_168 = arith.constant dense<0.000000e+00> : vector<1xf32>
    %639 = vector.multi_reduction <add>, %638, %cst_168 [0] : vector<4x1xf32> to vector<1xf32>
    %640 = vector.shape_cast %639 : vector<1xf32> to vector<1x1xf32>
    %cst_169 = arith.constant 4.000000e+00 : f32
    %641 = vector.broadcast %cst_169 : f32 to vector<1x1xf32>
    %642 = arith.divf %640, %641 : vector<1x1xf32>
    %643 = arith.mulf %638, %638 : vector<4x1xf32>
    %cst_170 = arith.constant dense<0.000000e+00> : vector<1xf32>
    %644 = vector.multi_reduction <add>, %643, %cst_170 [0] : vector<4x1xf32> to vector<1xf32>
    %645 = vector.shape_cast %644 : vector<1xf32> to vector<1x1xf32>
    %cst_171 = arith.constant 4.000000e+00 : f32
    %646 = vector.broadcast %cst_171 : f32 to vector<1x1xf32>
    %647 = arith.divf %645, %646 : vector<1x1xf32>
    %648 = arith.mulf %642, %642 : vector<1x1xf32>
    %649 = arith.subf %647, %648 : vector<1x1xf32>
    %650 = vector.broadcast %642 : vector<1x1xf32> to vector<4x1xf32>
    %651 = arith.subf %638, %650 : vector<4x1xf32>
    %cst_172 = arith.constant 9.99999974E-6 : f32
    %652 = vector.broadcast %cst_172 : f32 to vector<1x1xf32>
    %653 = arith.addf %649, %652 : vector<1x1xf32>
    %654 = math.rsqrt %653 : vector<1x1xf32>
    %655 = vector.broadcast %654 : vector<1x1xf32> to vector<4x1xf32>
    %656 = arith.mulf %651, %655 : vector<4x1xf32>
    %657 = arith.mulf %656, %438 : vector<4x1xf32>
    %658 = arith.addf %657, %439 : vector<4x1xf32>
    %cst_173 = arith.constant 5.000000e-01 : f32
    %659 = vector.broadcast %cst_173 : f32 to vector<4x1xf32>
    %660 = arith.mulf %659, %658 : vector<4x1xf32>
    %cst_174 = arith.constant 4.471500e-02 : f32
    %661 = vector.broadcast %cst_174 : f32 to vector<4x1xf32>
    %662 = arith.mulf %661, %658 : vector<4x1xf32>
    %663 = arith.mulf %662, %658 : vector<4x1xf32>
    %664 = arith.mulf %663, %658 : vector<4x1xf32>
    %665 = arith.addf %658, %664 : vector<4x1xf32>
    %cst_175 = arith.constant 0.797884583 : f32
    %666 = vector.broadcast %cst_175 : f32 to vector<4x1xf32>
    %667 = arith.mulf %666, %665 : vector<4x1xf32>
    %668 = math.tanh %667 : vector<4x1xf32>
    %cst_176 = arith.constant 1.000000e+00 : f32
    %669 = vector.broadcast %cst_176 : f32 to vector<4x1xf32>
    %670 = arith.addf %669, %668 : vector<4x1xf32>
    %671 = arith.mulf %660, %670 : vector<4x1xf32>
    %cst_177 = arith.constant dense<0.000000e+00> : vector<16x1xf32>
    %672 = tpu.matmul %436, %671, %cst_177 {dimension_numbers = #tpu.dot_dimension_numbers<[1], [0], [0], [1], [0, 0, 1, 1], [], []>} : vector<16x4xf32>, vector<4x1xf32>, vector<16x1xf32> -> vector<16x1xf32>
    %673 = arith.addf %672, %440 : vector<16x1xf32>
    %cst_178 = arith.constant dense<0.000000e+00> : vector<1xf32>
    %674 = vector.multi_reduction <add>, %673, %cst_178 [0] : vector<16x1xf32> to vector<1xf32>
    %675 = vector.shape_cast %674 : vector<1xf32> to vector<1x1xf32>
    %cst_179 = arith.constant 1.600000e+01 : f32
    %676 = vector.broadcast %cst_179 : f32 to vector<1x1xf32>
    %677 = arith.divf %675, %676 : vector<1x1xf32>
    %678 = arith.mulf %673, %673 : vector<16x1xf32>
    %cst_180 = arith.constant dense<0.000000e+00> : vector<1xf32>
    %679 = vector.multi_reduction <add>, %678, %cst_180 [0] : vector<16x1xf32> to vector<1xf32>
    %680 = vector.shape_cast %679 : vector<1xf32> to vector<1x1xf32>
    %cst_181 = arith.constant 1.600000e+01 : f32
    %681 = vector.broadcast %cst_181 : f32 to vector<1x1xf32>
    %682 = arith.divf %680, %681 : vector<1x1xf32>
    %683 = arith.mulf %677, %677 : vector<1x1xf32>
    %684 = arith.subf %682, %683 : vector<1x1xf32>
    %685 = vector.broadcast %677 : vector<1x1xf32> to vector<16x1xf32>
    %686 = arith.subf %673, %685 : vector<16x1xf32>
    %cst_182 = arith.constant 9.99999974E-6 : f32
    %687 = vector.broadcast %cst_182 : f32 to vector<1x1xf32>
    %688 = arith.addf %684, %687 : vector<1x1xf32>
    %689 = math.rsqrt %688 : vector<1x1xf32>
    %690 = vector.broadcast %689 : vector<1x1xf32> to vector<16x1xf32>
    %691 = arith.mulf %686, %690 : vector<16x1xf32>
    %692 = arith.mulf %691, %441 : vector<16x1xf32>
    %693 = arith.addf %692, %442 : vector<16x1xf32>
    %694 = arith.negf %693 : vector<16x1xf32>
    %695 = math.exp %694 : vector<16x1xf32>
    %cst_183 = arith.constant 1.000000e+00 : f32
    %696 = vector.broadcast %cst_183 : f32 to vector<16x1xf32>
    %697 = arith.addf %696, %695 : vector<16x1xf32>
    %698 = arith.divf %696, %697 : vector<16x1xf32>
    %699 = tpu.concatenate %509, %572, %635, %698 in 0 : vector<16x1xf32>, vector<16x1xf32>, vector<16x1xf32>, vector<16x1xf32> -> vector<64x1xf32>
    %700 = arith.mulf %350, %434 : vector<64x128xf32>
    %701 = arith.mulf %352, %434 : vector<64x128xf32>
    %702 = arith.subf %352, %701 : vector<64x128xf32>
    %703 = arith.subf %700, %702 : vector<64x128xf32>
    %704 = vector.broadcast %699 : vector<64x1xf32> to vector<64x128xf32>
    %705 = arith.mulf %704, %703 : vector<64x128xf32>
    %706 = arith.addf %702, %705 : vector<64x128xf32>
    %c0_184 = arith.constant 0 : index
    %c0_185 = arith.constant 0 : index
    %707 = vector.load %arg7[%c0_184, %c0_185] : memref<64x128xf32, #tpu.memory_space<vmem>>, vector<64x128xf32>
    tpu.vector_store %arg7[%c0_184, %c0_185], %706 {strides = array<i32>} : memref<64x128xf32, #tpu.memory_space<vmem>>, vector<64x128xf32>,
    return
  }
  func.func @transform_0(%arg0: i32) -> (i32, i32) {
    %c0_i32 = arith.constant 0 : i32
    %c0_i32_0 = arith.constant 0 : i32
    return %arg0, %c0_i32 : i32, i32
  }
  func.func @transform_1(%arg0: i32) -> (i32, i32) {
    %c0_i32 = arith.constant 0 : i32
    %c0_i32_0 = arith.constant 0 : i32
    return %arg0, %c0_i32 : i32, i32
  }
  func.func @transform_2(%arg0: i32) -> (i32, i32) {
    %c0_i32 = arith.constant 0 : i32
    %c0_i32_0 = arith.constant 0 : i32
    %c0_i32_1 = arith.constant 0 : i32
    return %c0_i32, %c0_i32_0 : i32, i32
  }
  func.func @transform_3(%arg0: i32) -> (i32, i32) {
    %c0_i32 = arith.constant 0 : i32
    %c0_i32_0 = arith.constant 0 : i32
    %c0_i32_1 = arith.constant 0 : i32
    return %c0_i32, %c0_i32_0 : i32, i32
  }
  func.func @transform_4(%arg0: i32) -> (i32, i32) {
    %c0_i32 = arith.constant 0 : i32
    %c0_i32_0 = arith.constant 0 : i32
    %c0_i32_1 = arith.constant 0 : i32
    return %c0_i32, %c0_i32_0 : i32, i32
  }
  func.func @transform_5(%arg0: i32) -> (i32, i32) {
    %c0_i32 = arith.constant 0 : i32
    %c0_i32_0 = arith.constant 0 : i32
    %c0_i32_1 = arith.constant 0 : i32
    return %c0_i32, %c0_i32_0 : i32, i32
  }
  func.func @transform_6(%arg0: i32) -> (i32, i32) {
    %c0_i32 = arith.constant 0 : i32
    %c0_i32_0 = arith.constant 0 : i32
    return %arg0, %c0_i32 : i32, i32
  }
}

</mosaic_0001>

<llo_original>
// kernel: tpu_custom_call.1
$region0: #{tpu_custom_call.1}
  #allocation0 [shape = 'u32[]', space=smem, size = 0x4, offset = 0x4, fixed_abs, tag = 'smem constant byte address 0x4 - core index']
  #allocation1 [shape = 'u32[144,128]{1,0:T(1,128)}', space=vmem, size = 0x12000, scoped, tag = 'internal scratch']
  %s0 = inlined_call_operand.hbm [shape: f32[128,128], index: 0, kind: input, shape index: {}]
  %s1 = inlined_call_operand.hbm [shape: f32[128,128], index: 1, kind: input, shape index: {}]
  %s2 = inlined_call_operand.hbm [shape: bf16[320,128], index: 2, kind: input, shape index: {}]
  %s3 = inlined_call_operand.vmem [shape: f32[48,16], index: 3, kind: input, shape index: {}]
  %s4 = inlined_call_operand.vmem [shape: f32[16,128], index: 4, kind: input, shape index: {}]
  %s5 = inlined_call_operand.vmem [shape: f32[16,16], index: 5, kind: input, shape index: {}]
  %s6 = inlined_call_operand.hbm [shape: f32[128,128], index: 6, kind: output, shape index: {}]
  %s7 = sld [smem:[#allocation0]]
  $region69: #{tpu_custom_call.1} parent=0
    _
  %s9 = ssub.s32 1, %s7
  %s10 = scalar_select 0, %s9, %s7
  $region1: #{tpu_custom_call.1} parent=0
    #allocation2 [shape = 'u8[65536]{0}', space=vmem, size = 0x10000, scoped, tag = 'input window, operand 0']
    #allocation3 [shape = 's32[2]{0}', space=sflag, size = 0x8, scoped, tag = 'scoped memory for tpu_custom_call.1']
    #allocation4 [shape = 's32[2]{0}', space=sflag, size = 0x8, scoped, tag = 'scoped memory for tpu_custom_call.1']
    #allocation5 [shape = 'u8[65536]{0}', space=vmem, size = 0x10000, scoped, tag = 'input window, operand 1']
    #allocation6 [shape = 's32[2]{0}', space=sflag, size = 0x8, scoped, tag = 'scoped memory for tpu_custom_call.1']
    #allocation7 [shape = 'u8[81920]{0}', space=vmem, size = 0x14000, scoped, tag = 'input window, operand 2, single buffered']
    #allocation8 [shape = 'u8[65536]{0}', space=vmem, size = 0x10000, scoped, tag = 'output window, operand 0']
    %11 = vsyncpa [#allocation3], 0
    %s12 = scalar_lea.sflag [#allocation3], 1
    %13 = vsyncpa %s12, 0
    %14 = vsyncpa [#allocation6], 0
    %s15 = scalar_lea.sflag [#allocation6], 1
    %16 = vsyncpa %s15, 0
    %17 = vsyncpa [#allocation4], 0
    %s18 = scalar_lea.sflag [#allocation4], 1
    %19 = vsyncpa %s18, 0
    loop: start=0, step=1, limit=4
    $region2: #{tpu_custom_call.1} parent=1 // loop_pre_header
      _
    $region3: #{tpu_custom_call.1} parent=1 // loop_header
      %s21 = sphi 0, %s25
      %p22 = scmp.ge.s32.totalorder %s21, 4
      %s31 = sphi 0, %s33
      %s34 = sphi 0, %s31
      %s35 = sphi 0, %s34
      %s51 = sphi 0, %s35
      %s57 = sphi 0, %s59
      %s60 = sphi 0, %s57
      %s61 = sphi 0, %s60
      %s77 = sphi 0, %s61
      %s81 = sphi 0, %s81
      %s83 = sphi 0, %s81
      %s84 = sphi 0, %s83
      %s98 = sphi 0, %s84
      %s102 = sphi 0, %s102
      %s104 = sphi 0, %s102
      %s105 = sphi 0, %s104
      %s119 = sphi 0, %s105
      %s123 = sphi 0, %s123
      %s125 = sphi 0, %s123
      %s126 = sphi 0, %s125
      %s140 = sphi 0, %s126
      %s144 = sphi 0, %s144
      %s146 = sphi 0, %s144
      %s147 = sphi 0, %s146
      %s161 = sphi 0, %s147
      %s167 = sphi 0, %s169
      %s170 = sphi 0, %s167
      %s171 = sphi 0, %s170
      %s187 = sphi 0, %s171
    $region4: #{tpu_custom_call.1} parent=1 // loop_header_branch
      %24 = sbr.rel (%p22) target = $region8
    $region5: #{tpu_custom_call.1} parent=1 // loop_body
      %s26 = ssub.s32 %s21, 1
      %s27 = ssub.s32 %s21, 2
      %s28 = sadd.s32 %s21, 1
      %s29 = ssub.s32 %s21, %s28
      %p30 = scmp.eq.s32.totalorder %s29, 0
      %s32 = sadd.s32 %s31, 1
      %s33 = scalar_select %p30, %s31, %s32
      %p36 = pneg %p30
      %p37 = scmp.eq.s32.totalorder %s21, 1
      %p38 = por %p36, %p37
      %p39 = scmp.ne.s32.totalorder %s31, %s34
      %p40 = scmp.eq.s32.totalorder %s21, 0
      %p41 = por %p39, %p40
      %p42 = scmp.ne.s32.totalorder %s31, %s34
      %p43 = scmp.eq.s32.totalorder %s26, 1
      %p44 = por %p42, %p43
      %p45 = scmp.ne.s32.totalorder %s34, %s35
      %p46 = scmp.eq.s32.totalorder %s26, 0
      %p47 = por %p45, %p46
      %p48 = scmp.ne.s32.totalorder %s34, %s35
      %p49 = scmp.eq.s32.totalorder %s27, 1
      %p50 = por %p48, %p49
      %p52 = scmp.ne.s32.totalorder %s35, %s51
      %p53 = scmp.eq.s32.totalorder %s27, 0
      %p54 = por %p52, %p53
      %s55 = ssub.s32 %s21, %s28
      %p56 = scmp.eq.s32.totalorder %s55, 0
      %s58 = sadd.s32 %s57, 1
      %s59 = scalar_select %p56, %s57, %s58
      %p62 = pneg %p56
      %p63 = scmp.eq.s32.totalorder %s21, 1
      %p64 = por %p62, %p63
      %p65 = scmp.ne.s32.totalorder %s57, %s60
      %p66 = scmp.eq.s32.totalorder %s21, 0
      %p67 = por %p65, %p66
      %p68 = scmp.ne.s32.totalorder %s57, %s60
      %p69 = scmp.eq.s32.totalorder %s26, 1
      %p70 = por %p68, %p69
      %p71 = scmp.ne.s32.totalorder %s60, %s61
      %p72 = scmp.eq.s32.totalorder %s26, 0
      %p73 = por %p71, %p72
      %p74 = scmp.ne.s32.totalorder %s60, %s61
      %p75 = scmp.eq.s32.totalorder %s27, 1
      %p76 = por %p74, %p75
      %p78 = scmp.ne.s32.totalorder %s61, %s77
      %p79 = scmp.eq.s32.totalorder %s27, 0
      %p80 = por %p78, %p79
      %s82 = sadd.s32 %s81, 1
      %p85 = scmp.eq.s32.totalorder %s21, 1
      %p86 = scmp.ne.s32.totalorder %s81, %s83
      %p87 = scmp.eq.s32.totalorder %s21, 0
      %p88 = por %p86, %p87
      %p89 = scmp.ne.s32.totalorder %s81, %s83
      %p90 = scmp.eq.s32.totalorder %s26, 1
      %p91 = por %p89, %p90
      %p92 = scmp.ne.s32.totalorder %s83, %s84
      %p93 = scmp.eq.s32.totalorder %s26, 0
      %p94 = por %p92, %p93
      %p95 = scmp.ne.s32.totalorder %s83, %s84
      %p96 = scmp.eq.s32.totalorder %s27, 1
      %p97 = por %p95, %p96
      %p99 = scmp.ne.s32.totalorder %s84, %s98
      %p100 = scmp.eq.s32.totalorder %s27, 0
      %p101 = por %p99, %p100
      %s103 = sadd.s32 %s102, 1
      %p106 = scmp.eq.s32.totalorder %s21, 1
      %p107 = scmp.ne.s32.totalorder %s102, %s104
      %p108 = scmp.eq.s32.totalorder %s21, 0
      %p109 = por %p107, %p108
      %p110 = scmp.ne.s32.totalorder %s102, %s104
      %p111 = scmp.eq.s32.totalorder %s26, 1
      %p112 = por %p110, %p111
      %p113 = scmp.ne.s32.totalorder %s104, %s105
      %p114 = scmp.eq.s32.totalorder %s26, 0
      %p115 = por %p113, %p114
      %p116 = scmp.ne.s32.totalorder %s104, %s105
      %p117 = scmp.eq.s32.totalorder %s27, 1
      %p118 = por %p116, %p117
      %p120 = scmp.ne.s32.totalorder %s105, %s119
      %p121 = scmp.eq.s32.totalorder %s27, 0
      %p122 = por %p120, %p121
      %s124 = sadd.s32 %s123, 1
      %p127 = scmp.eq.s32.totalorder %s21, 1
      %p128 = scmp.ne.s32.totalorder %s123, %s125
      %p129 = scmp.eq.s32.totalorder %s21, 0
      %p130 = por %p128, %p129
      %p131 = scmp.ne.s32.totalorder %s123, %s125
      %p132 = scmp.eq.s32.totalorder %s26, 1
      %p133 = por %p131, %p132
      %p134 = scmp.ne.s32.totalorder %s125, %s126
      %p135 = scmp.eq.s32.totalorder %s26, 0
      %p136 = por %p134, %p135
      %p137 = scmp.ne.s32.totalorder %s125, %s126
      %p138 = scmp.eq.s32.totalorder %s27, 1
      %p139 = por %p137, %p138
      %p141 = scmp.ne.s32.totalorder %s126, %s140
      %p142 = scmp.eq.s32.totalorder %s27, 0
      %p143 = por %p141, %p142
      %s145 = sadd.s32 %s144, 1
      %p148 = scmp.eq.s32.totalorder %s21, 1
      %p149 = scmp.ne.s32.totalorder %s144, %s146
      %p150 = scmp.eq.s32.totalorder %s21, 0
      %p151 = por %p149, %p150
      %p152 = scmp.ne.s32.totalorder %s144, %s146
      %p153 = scmp.eq.s32.totalorder %s26, 1
      %p154 = por %p152, %p153
      %p155 = scmp.ne.s32.totalorder %s146, %s147
      %p156 = scmp.eq.s32.totalorder %s26, 0
      %p157 = por %p155, %p156
      %p158 = scmp.ne.s32.totalorder %s146, %s147
      %p159 = scmp.eq.s32.totalorder %s27, 1
      %p160 = por %p158, %p159
      %p162 = scmp.ne.s32.totalorder %s147, %s161
      %p163 = scmp.eq.s32.totalorder %s27, 0
      %p164 = por %p162, %p163
      %s165 = ssub.s32 %s21, %s28
      %p166 = scmp.eq.s32.totalorder %s165, 0
      %s168 = sadd.s32 %s167, 1
      %s169 = scalar_select %p166, %s167, %s168
      %p172 = pneg %p166
      %p173 = scmp.eq.s32.totalorder %s21, 1
      %p174 = por %p172, %p173
      %p175 = scmp.ne.s32.totalorder %s167, %s170
      %p176 = scmp.eq.s32.totalorder %s21, 0
      %p177 = por %p175, %p176
      %p178 = scmp.ne.s32.totalorder %s167, %s170
      %p179 = scmp.eq.s32.totalorder %s26, 1
      %p180 = por %p178, %p179
      %p181 = scmp.ne.s32.totalorder %s170, %s171
      %p182 = scmp.eq.s32.totalorder %s26, 0
      %p183 = por %p181, %p182
      %p184 = scmp.ne.s32.totalorder %s170, %s171
      %p185 = scmp.eq.s32.totalorder %s27, 1
      %p186 = por %p184, %p185
      %p188 = scmp.ne.s32.totalorder %s171, %s187
      %p189 = scmp.eq.s32.totalorder %s27, 0
      %p190 = por %p188, %p189
      %p191 = scmp.le.s32.totalorder 1, %s21
      %p192 = scmp.lt.s32.totalorder %s21, 3
      %p193 = pnand %p191, %p192
      %p194 = pneg %p193
      // Predicated region
      $region9: #{tpu_custom_call.1} parent=5 // pred_check
        _
      $region10: #{tpu_custom_call.1} parent=5 // pred_check_branch
        %196 = sbr.rel (%p193) target = $region12
      $region11: #{tpu_custom_call.1} parent=5 // pred_region
        %s197 = ssub.s32 %s21, 1
        // Predicated region
        $region13: #{tpu_custom_call.1} parent=11 // pred_check
          %p198 = pneg %p94
        $region14: #{tpu_custom_call.1} parent=11 // pred_check_branch
          %200 = sbr.rel (%p198) target = $region16
        $region15: #{tpu_custom_call.1} parent=11 // pred_region
          %s202 = ssub.s32 2560, 2560
          %203 = vsyncadd [#allocation6], %s202
          %s204 = sshll.u32 [#allocation7], 4
          %s205 = int_to_ptr.vmem [resolvable:$true] %s204
          %210 = dma.hbm_to_vmem [thread:$0]  %s2, 2560, %s205, [#allocation6], 64, 64, 4
        $region16: #{tpu_custom_call.1} parent=11 // pred_fallthru
          _
        // Predicated region
        $region17: #{tpu_custom_call.1} parent=11 // pred_check
          %p211 = pneg %p115
        $region18: #{tpu_custom_call.1} parent=11 // pred_check_branch
          %213 = sbr.rel (%p211) target = $region20
        $region19: #{tpu_custom_call.1} parent=11 // pred_region
          _
        $region20: #{tpu_custom_call.1} parent=11 // pred_fallthru
          _
        // Predicated region
        $region21: #{tpu_custom_call.1} parent=11 // pred_check
          %p214 = pneg %p136
        $region22: #{tpu_custom_call.1} parent=11 // pred_check_branch
          %216 = sbr.rel (%p214) target = $region24
        $region23: #{tpu_custom_call.1} parent=11 // pred_region
          _
        $region24: #{tpu_custom_call.1} parent=11 // pred_fallthru
          _
        // Predicated region
        $region25: #{tpu_custom_call.1} parent=11 // pred_check
          %p217 = pneg %p157
        $region26: #{tpu_custom_call.1} parent=11 // pred_check_branch
          %219 = sbr.rel (%p217) target = $region28
        $region27: #{tpu_custom_call.1} parent=11 // pred_region
          _
        $region28: #{tpu_custom_call.1} parent=11 // pred_fallthru
          _
      $region12: #{tpu_custom_call.1} parent=5 // pred_fallthru
        _
      %p220 = scmp.lt.s32.totalorder %s21, 2
      // Predicated region
      $region29: #{tpu_custom_call.1} parent=5 // pred_check
        %p221 = pneg %p220
      $region30: #{tpu_custom_call.1} parent=5 // pred_check_branch
        %223 = sbr.rel (%p221) target = $region32
      $region31: #{tpu_custom_call.1} parent=5 // pred_region
        // Predicated region
        $region33: #{tpu_custom_call.1} parent=31 // pred_check
          %p224 = pneg %p41
        $region34: #{tpu_custom_call.1} parent=31 // pred_check_branch
          %226 = sbr.rel (%p224) target = $region36
        $region35: #{tpu_custom_call.1} parent=31 // pred_region
          %s227 = sand.u32 %s31, 1
          %s228 = scalar_lea.sflag [#allocation3], %s227
          %s229 = sand.u32 %s31, 1
          %s230 = smul.addr %s229, 64
          %s231 = scalar_lea.vmem [#allocation2], %s230
          %s232 = smul.u32 8, %s21
          %s234 = ssub.s32 1024, 1024
          %235 = vsyncadd %s228, %s234
          %s236 = smul.addr %s232, 128
          %s237 = scalar_lea.hbm %s0, %s236
          %s238 = sshll.u32 %s231, 4
          %s239 = int_to_ptr.vmem [resolvable:$true] %s238
          %244 = dma.hbm_to_vmem [thread:$0]  %s237, 1024, %s239, %s228, 128, 128, 8
        $region36: #{tpu_custom_call.1} parent=31 // pred_fallthru
          _
        // Predicated region
        $region37: #{tpu_custom_call.1} parent=31 // pred_check
          %p245 = pneg %p67
        $region38: #{tpu_custom_call.1} parent=31 // pred_check_branch
          %247 = sbr.rel (%p245) target = $region40
        $region39: #{tpu_custom_call.1} parent=31 // pred_region
          %s248 = sand.u32 %s21, 1
          %s249 = scalar_lea.sflag [#allocation6], %s248
          %s250 = sand.u32 %s57, 1
          %s251 = smul.addr %s250, 64
          %s252 = scalar_lea.vmem [#allocation5], %s251
          %s253 = smul.u32 8, %s21
          %s255 = ssub.s32 1024, 1024
          %256 = vsyncadd %s249, %s255
          %s257 = smul.addr %s253, 128
          %s258 = scalar_lea.hbm %s1, %s257
          %s259 = sshll.u32 %s252, 4
          %s260 = int_to_ptr.vmem [resolvable:$true] %s259
          %265 = dma.hbm_to_vmem [thread:$0]  %s258, 1024, %s260, %s249, 128, 128, 8
        $region40: #{tpu_custom_call.1} parent=31 // pred_fallthru
          _
      $region32: #{tpu_custom_call.1} parent=5 // pred_fallthru
        _
      %p266 = scmp.le.s32.totalorder 1, %s21
      %p267 = scmp.lt.s32.totalorder %s21, 3
      %p268 = pnand %p266, %p267
      %p269 = pneg %p268
      // Predicated region
      $region41: #{tpu_custom_call.1} parent=5 // pred_check
        _
      $region42: #{tpu_custom_call.1} parent=5 // pred_check_branch
        %271 = sbr.rel (%p268) target = $region44
      $region43: #{tpu_custom_call.1} parent=5 // pred_region
        %s272 = ssub.s32 %s21, 1
        %s273 = sand.u32 %s34, 1
        %s274 = scalar_lea.sflag [#allocation3], %s273
        %s275 = sand.u32 %s34, 1
        %s276 = smul.addr %s275, 64
        %s277 = scalar_lea.vmem [#allocation2], %s276
        // Predicated region
        $region45: #{tpu_custom_call.1} parent=43 // pred_check
          %p278 = pneg %p47
        $region46: #{tpu_custom_call.1} parent=43 // pred_check_branch
          %280 = sbr.rel (%p278) target = $region48
        $region47: #{tpu_custom_call.1} parent=43 // pred_region
          %281 = dma.done %s274, 1024
        $region48: #{tpu_custom_call.1} parent=43 // pred_fallthru
          _
        %s282 = sand.u32 %s26, 1
        %s283 = scalar_lea.sflag [#allocation6], %s282
        %s284 = sand.u32 %s60, 1
        %s285 = smul.addr %s284, 64
        %s286 = scalar_lea.vmem [#allocation5], %s285
        // Predicated region
        $region49: #{tpu_custom_call.1} parent=43 // pred_check
          %p287 = pneg %p73
        $region50: #{tpu_custom_call.1} parent=43 // pred_check_branch
          %289 = sbr.rel (%p287) target = $region52
        $region51: #{tpu_custom_call.1} parent=43 // pred_region
          %290 = dma.done %s283, 1024
        $region52: #{tpu_custom_call.1} parent=43 // pred_fallthru
          _
        // Predicated region
        $region53: #{tpu_custom_call.1} parent=43 // pred_check
          %p291 = pneg %p94
        $region54: #{tpu_custom_call.1} parent=43 // pred_check_branch
          %293 = sbr.rel (%p291) target = $region56
        $region55: #{tpu_custom_call.1} parent=43 // pred_region
          %294 = dma.done [#allocation6], 2560
        $region56: #{tpu_custom_call.1} parent=43 // pred_fallthru
          _
        %s295 = sand.u32 %s34, 1
        %s296 = scalar_lea.sflag [#allocation3], %s295
        %s297 = sand.u32 %s34, 1
        %s298 = smul.addr %s297, 64
        %s299 = scalar_lea.vmem [#allocation2], %s298
        %p300 = pneg %p47
        %p301 = pneg %p44
        %s302 = sand.u32 %s26, 1
        %s303 = scalar_lea.sflag [#allocation6], %s302
        %s304 = sand.u32 %s60, 1
        %s305 = smul.addr %s304, 64
        %s306 = scalar_lea.vmem [#allocation5], %s305
        %p307 = pneg %p73
        %p308 = pneg %p70
        %p309 = pneg %p94
        %p310 = pneg %p91
        %p311 = pneg %p115
        %p312 = pneg %p112
        %p313 = pneg %p136
        %p314 = pneg %p133
        %p315 = pneg %p157
        %p316 = pneg %p154
        %p317 = pneg %p183
        %p318 = pneg %p180
        %s319 = sand.u32 %s170, 1
        %s320 = scalar_lea.sflag [#allocation4], %s319
        %s321 = sand.u32 %s170, 1
        %s322 = smul.addr %s321, 64
        %s323 = scalar_lea.vmem [#allocation8], %s322
        %s324 = smul.u32 8, %s26
        %s325 = smul.u32 8, %s26
        %s326 = smul.u32 8, %s26
        %v328 = vld [vmem:[%s277] sm:$0xff]
        %v329 = vld [vmem:[%s277 + $0x8] sm:$0xff]
        %v330 = vld [vmem:[%s277 + $0x10] sm:$0xff]
        %v331 = vld [vmem:[%s277 + $0x18] sm:$0xff]
        %v332 = vld [vmem:[%s277 + $0x20] sm:$0xff]
        %v333 = vld [vmem:[%s277 + $0x28] sm:$0xff]
        %v334 = vld [vmem:[%s277 + $0x30] sm:$0xff]
        %v335 = vld [vmem:[%s277 + $0x38] sm:$0xff]
        %v336 = vld [vmem:[%s286] sm:$0xff]
        %v337 = vld [vmem:[%s286 + $0x8] sm:$0xff]
        %v338 = vld [vmem:[%s286 + $0x10] sm:$0xff]
        %v339 = vld [vmem:[%s286 + $0x18] sm:$0xff]
        %v340 = vld [vmem:[%s286 + $0x20] sm:$0xff]
        %v341 = vld [vmem:[%s286 + $0x28] sm:$0xff]
        %v342 = vld [vmem:[%s286 + $0x30] sm:$0xff]
        %v343 = vld [vmem:[%s286 + $0x38] sm:$0xff]
        %v344 = vld [vmem:[#allocation7] sm:$0xf]
        %v345 = vld [vmem:[#allocation7 + $0x4] sm:$0xf]
        %v346 = vld [vmem:[#allocation7 + $0x8] sm:$0xf]
        %v347 = vld [vmem:[#allocation7 + $0xc] sm:$0xf]
        %v348 = vld [vmem:[#allocation7 + $0x10] sm:$0xf]
        %v349 = vld [vmem:[#allocation7 + $0x14] sm:$0xf]
        %v350 = vld [vmem:[#allocation7 + $0x18] sm:$0xf]
        %v351 = vld [vmem:[#allocation7 + $0x1c] sm:$0xf]
        %v352 = vld [vmem:[#allocation7 + $0x20] sm:$0xf]
        %v353 = vld [vmem:[#allocation7 + $0x24] sm:$0xf]
        %v354 = vld [vmem:[#allocation7 + $0x28] sm:$0xf]
        %v355 = vld [vmem:[#allocation7 + $0x2c] sm:$0xf]
        %v356 = vld [vmem:[#allocation7 + $0x30] sm:$0xf]
        %v357 = vld [vmem:[#allocation7 + $0x34] sm:$0xf]
        %v358 = vld [vmem:[#allocation7 + $0x38] sm:$0xf]
        %v359 = vld [vmem:[#allocation7 + $0x3c] sm:$0xf]
        %v360 = vld [vmem:[#allocation7 + $0x40] sm:$0xf]
        %v361 = vld [vmem:[#allocation7 + $0x44] sm:$0xf]
        %v362 = vld [vmem:[#allocation7 + $0x48] sm:$0xf]
        %v363 = vld [vmem:[#allocation7 + $0x4c] sm:$0xf]
        %v364 = vld [vmem:[#allocation7 + $0x50] sm:$0xf]
        %v365 = vld [vmem:[#allocation7 + $0x54] sm:$0xf]
        %v366 = vld [vmem:[#allocation7 + $0x58] sm:$0xf]
        %v367 = vld [vmem:[#allocation7 + $0x5c] sm:$0xf]
        %v368 = vld [vmem:[#allocation7 + $0x60] sm:$0xf]
        %v369 = vld [vmem:[#allocation7 + $0x64] sm:$0xf]
        %v370 = vld [vmem:[#allocation7 + $0x68] sm:$0xf]
        %v371 = vld [vmem:[#allocation7 + $0x6c] sm:$0xf]
        %v372 = vld [vmem:[#allocation7 + $0x70] sm:$0xf]
        %v373 = vld [vmem:[#allocation7 + $0x74] sm:$0xf]
        %v374 = vld [vmem:[#allocation7 + $0x78] sm:$0xf]
        %v375 = vld [vmem:[#allocation7 + $0x7c] sm:$0xf]
        %v376 = vld [vmem:[#allocation7 + $0x80] sm:$0xf]
        %v377 = vld [vmem:[#allocation7 + $0x84] sm:$0xf]
        %v378 = vld [vmem:[#allocation7 + $0x88] sm:$0xf]
        %v379 = vld [vmem:[#allocation7 + $0x8c] sm:$0xf]
        %v380 = vld [vmem:[#allocation7 + $0x90] sm:$0xf]
        %v381 = vld [vmem:[#allocation7 + $0x94] sm:$0xf]
        %v382 = vld [vmem:[#allocation7 + $0x98] sm:$0xf]
        %v383 = vld [vmem:[#allocation7 + $0x9c] sm:$0xf]
        %v384 = vld [vmem:[%s3] sm:$0xff]
        %v385 = vld [vmem:[%s3 + $0x8] sm:$0xff]
        %v386 = vld [vmem:[%s3 + $0x10] sm:$0xff]
        %v387 = vld [vmem:[%s3 + $0x18] sm:$0xff]
        %v388 = vld [vmem:[%s3 + $0x20] sm:$0xff]
        %v389 = vld [vmem:[%s3 + $0x28] sm:$0xff]
        %v390 = vld [vmem:[%s4] sm:$0xff]
        %v391 = vld [vmem:[%s4 + $0x8] sm:$0xff]
        %v392 = vld [vmem:[%s5] sm:$0xff]
        %v393 = vld [vmem:[%s5 + $0x8] sm:$0xff]
        %v394 = vadd.f32 %v328, %v336
        %v395 = vadd.f32 %v329, %v337
        %v396 = vadd.f32 %v330, %v338
        %v397 = vadd.f32 %v331, %v339
        %v398 = vadd.f32 %v332, %v340
        %v399 = vadd.f32 %v333, %v341
        %v400 = vadd.f32 %v334, %v342
        %v401 = vadd.f32 %v335, %v343
        %v402 = vpack.c.bf16 %v395, %v394
        %v403 = vpack.c.bf16 %v397, %v396
        %v404 = vpack.c.bf16 %v399, %v398
        %v405 = vpack.c.bf16 %v401, %v400
        %v406 = vlaneseq
        %v407 = vshrl.u32 %v406, 7
        %v408 = vsub.s32 0, %v407
        %v409 = vrot.slane %v390, %v408
        %v426 = vunpack.c.l.b16 %v344
        %v427 = vunpack.c.l.b16 %v345
        %v428 = vunpack.c.l.b16 %v346
        %v429 = vunpack.c.l.b16 %v347
        %v430 = vunpack.c.l.b16 %v348
        %v431 = vunpack.c.l.b16 %v349
        %v432 = vunpack.c.l.b16 %v350
        %v433 = vunpack.c.l.b16 %v351
        %v434 = vunpack.c.l.b16 %v352
        %v435 = vunpack.c.l.b16 %v353
        %v436 = vunpack.c.l.b16 %v354
        %v437 = vunpack.c.l.b16 %v355
        %v438 = vunpack.c.l.b16 %v356
        %v439 = vunpack.c.l.b16 %v357
        %v440 = vunpack.c.l.b16 %v358
        %v441 = vunpack.c.l.b16 %v359
        %v442 = vpack.c.b16 %v427, %v426
        %v443 = vpack.c.b16 %v429, %v428
        %v444 = vpack.c.b16 %v431, %v430
        %v445 = vpack.c.b16 %v433, %v432
        %v446 = vpack.c.b16 %v435, %v434
        %v447 = vpack.c.b16 %v437, %v436
        %v448 = vpack.c.b16 %v439, %v438
        %v449 = vpack.c.b16 %v441, %v440
        %458 = vmatprep.subr.bf16.mxu0 0
        %459 = vmatpush1.bf16.msra.mxu0 %v442
        %460 = vmatprep.subr.bf16.mxu0 0
        %461 = vmatpush1.bf16.msra.mxu0 %v443
        %462 = vmatprep.subr.bf16.mxu0 0
        %463 = vmatpush1.bf16.msra.mxu0 %v444
        %464 = vmatprep.subr.bf16.mxu0 0
        %465 = vmatpush1.bf16.msra.mxu0 %v445
        %466 = vmatprep.subr.bf16.mxu0 0
        %467 = vmatpush1.bf16.msra.mxu0 %v446
        %468 = vmatprep.subr.bf16.mxu0 0
        %469 = vmatpush1.bf16.msra.mxu0 %v447
        %470 = vmatprep.subr.bf16.mxu0 0
        %471 = vmatpush1.bf16.msra.mxu0 %v448
        %472 = vmatprep.subr.bf16.mxu0 0
        %473 = vmatpush1.bf16.msra.mxu0 %v449
        %474 = vmatprep.subr.bf16.mxu0 0
        %475 = vmatpush1.bf16.msra.mxu0 0
        %476 = vmatprep.subr.bf16.mxu0 0
        %477 = vmatpush1.bf16.msra.mxu0 0
        %478 = vmatprep.subr.bf16.mxu0 0
        %479 = vmatpush1.bf16.msra.mxu0 0
        %480 = vmatprep.subr.bf16.mxu0 0
        %481 = vmatpush1.bf16.msra.mxu0 0
        %482 = vmatprep.subr.bf16.mxu0 0
        %483 = vmatpush1.bf16.msra.mxu0 0
        %484 = vmatprep.subr.bf16.mxu0 0
        %485 = vmatpush1.bf16.msra.mxu0 0
        %486 = vmatprep.subr.bf16.mxu0 0
        %487 = vmatpush1.bf16.msra.mxu0 0
        %488 = vmatprep.subr.bf16.mxu0 0
        %489 = vmatpush1.bf16.msra.mxu0 0
        %490 = vmatprep.mubr.bf16.mxu0 0
        %491 = vmatmul.mubr.bf16.gmra.mrb[0].mxu0 %v402
        %v492 = vpop.f32.mrb[0].mxu0
        %v493 = vadd.f32 %v409, %v492
        %v494 = vpop.f32.mrb[0].mxu0
        %v495 = vpop.f32.mrb[0].mxu0
        %v496 = vadd.f32 %v409, %v495
        %v497 = vpop.f32.mrb[0].mxu0
        %498 = vmatprep.mubr.bf16.mxu0 0
        %499 = vmatmul.mubr.bf16.gmra.mrb[0].mxu0 %v403
        %v500 = vpop.f32.mrb[0].mxu0
        %v501 = vadd.f32 %v409, %v500
        %v502 = vpop.f32.mrb[0].mxu0
        %v503 = vpop.f32.mrb[0].mxu0
        %v504 = vadd.f32 %v409, %v503
        %v505 = vpop.f32.mrb[0].mxu0
        %506 = vmatprep.mubr.bf16.mxu0 0
        %507 = vmatmul.mubr.bf16.gmra.mrb[0].mxu0 %v404
        %v508 = vpop.f32.mrb[0].mxu0
        %v509 = vadd.f32 %v409, %v508
        %v510 = vpop.f32.mrb[0].mxu0
        %v511 = vpop.f32.mrb[0].mxu0
        %v512 = vadd.f32 %v409, %v511
        %v513 = vpop.f32.mrb[0].mxu0
        %514 = vmatprep.mubr.bf16.mxu0 0
        %515 = vmatmul.mubr.bf16.gmra.mrb[0].mxu0 %v405
        %v516 = vpop.f32.mrb[0].mxu0
        %v517 = vadd.f32 %v409, %v516
        %v518 = vpop.f32.mrb[0].mxu0
        %v519 = vpop.f32.mrb[0].mxu0
        %v520 = vadd.f32 %v409, %v519
        %v521 = vpop.f32.mrb[0].mxu0
        %522 = vdwg.mxu0
        %vm523 = vcmask 261120
        %v524 = vsel %vm523, %v493, 0.0
        %525 = vadd.xlane.f32.xlu0 %v524
        %v526 = vpop.xlane.xlu0 %525
        %v527 = vsel %vm523, %v496, 0.0
        %528 = vadd.xlane.f32.xlu0 %v527
        %v529 = vpop.xlane.xlu0 %528
        %v530 = vsel %vm523, %v501, 0.0
        %531 = vadd.xlane.f32.xlu0 %v530
        %v532 = vpop.xlane.xlu0 %531
        %v533 = vsel %vm523, %v504, 0.0
        %534 = vadd.xlane.f32.xlu0 %v533
        %v535 = vpop.xlane.xlu0 %534
        %v536 = vsel %vm523, %v509, 0.0
        %537 = vadd.xlane.f32.xlu0 %v536
        %v538 = vpop.xlane.xlu0 %537
        %v539 = vsel %vm523, %v512, 0.0
        %540 = vadd.xlane.f32.xlu0 %v539
        %v541 = vpop.xlane.xlu0 %540
        %v542 = vsel %vm523, %v517, 0.0
        %543 = vadd.xlane.f32.xlu0 %v542
        %v544 = vpop.xlane.xlu0 %543
        %v545 = vsel %vm523, %v520, 0.0
        %546 = vadd.xlane.f32.xlu0 %v545
        %v547 = vpop.xlane.xlu0 %546
        %v548 = vrcp.pop 32.0
        %v549 = vmul.f32 %v526, %v548
        %v550 = vmul.f32 %v529, %v548
        %v551 = vmul.f32 %v532, %v548
        %v552 = vmul.f32 %v535, %v548
        %v553 = vmul.f32 %v538, %v548
        %v554 = vmul.f32 %v541, %v548
        %v555 = vmul.f32 %v544, %v548
        %v556 = vmul.f32 %v547, %v548
        %v557 = vmul.f32 %v493, %v493
        %v558 = vmul.f32 %v496, %v496
        %v559 = vmul.f32 %v501, %v501
        %v560 = vmul.f32 %v504, %v504
        %v561 = vmul.f32 %v509, %v509
        %v562 = vmul.f32 %v512, %v512
        %v563 = vmul.f32 %v517, %v517
        %v564 = vmul.f32 %v520, %v520
        %v565 = vsel %vm523, %v557, 0.0
        %566 = vadd.xlane.f32.xlu0 %v565
        %v567 = vpop.xlane.xlu0 %566
        %v568 = vsel %vm523, %v558, 0.0
        %569 = vadd.xlane.f32.xlu0 %v568
        %v570 = vpop.xlane.xlu0 %569
        %v571 = vsel %vm523, %v559, 0.0
        %572 = vadd.xlane.f32.xlu0 %v571
        %v573 = vpop.xlane.xlu0 %572
        %v574 = vsel %vm523, %v560, 0.0
        %575 = vadd.xlane.f32.xlu0 %v574
        %v576 = vpop.xlane.xlu0 %575
        %v577 = vsel %vm523, %v561, 0.0
        %578 = vadd.xlane.f32.xlu0 %v577
        %v579 = vpop.xlane.xlu0 %578
        %v580 = vsel %vm523, %v562, 0.0
        %581 = vadd.xlane.f32.xlu0 %v580
        %v582 = vpop.xlane.xlu0 %581
        %v583 = vsel %vm523, %v563, 0.0
        %584 = vadd.xlane.f32.xlu0 %v583
        %v585 = vpop.xlane.xlu0 %584
        %v586 = vsel %vm523, %v564, 0.0
        %587 = vadd.xlane.f32.xlu0 %v586
        %v588 = vpop.xlane.xlu0 %587
        %v589 = vmul.f32 %v567, %v548
        %v590 = vmul.f32 %v570, %v548
        %v591 = vmul.f32 %v573, %v548
        %v592 = vmul.f32 %v576, %v548
        %v593 = vmul.f32 %v579, %v548
        %v594 = vmul.f32 %v582, %v548
        %v595 = vmul.f32 %v585, %v548
        %v596 = vmul.f32 %v588, %v548
        %v597 = vmul.f32 %v549, %v549
        %v598 = vmul.f32 %v550, %v550
        %v599 = vmul.f32 %v551, %v551
        %v600 = vmul.f32 %v552, %v552
        %v601 = vmul.f32 %v553, %v553
        %v602 = vmul.f32 %v554, %v554
        %v603 = vmul.f32 %v555, %v555
        %v604 = vmul.f32 %v556, %v556
        %v605 = vsub.f32 %v589, %v597
        %v606 = vsub.f32 %v590, %v598
        %v607 = vsub.f32 %v591, %v599
        %v608 = vsub.f32 %v592, %v600
        %v609 = vsub.f32 %v593, %v601
        %v610 = vsub.f32 %v594, %v602
        %v611 = vsub.f32 %v595, %v603
        %v612 = vsub.f32 %v596, %v604
        %v613 = vsub.f32 %v493, %v549
        %v614 = vsub.f32 %v496, %v550
        %v615 = vsub.f32 %v501, %v551
        %v616 = vsub.f32 %v504, %v552
        %v617 = vsub.f32 %v509, %v553
        %v618 = vsub.f32 %v512, %v554
        %v619 = vsub.f32 %v517, %v555
        %v620 = vsub.f32 %v520, %v556
        %v621 = vadd.f32 %v605, 1e-05
        %v622 = vadd.f32 %v606, 1e-05
        %v623 = vadd.f32 %v607, 1e-05
        %v624 = vadd.f32 %v608, 1e-05
        %v625 = vadd.f32 %v609, 1e-05
        %v626 = vadd.f32 %v610, 1e-05
        %v627 = vadd.f32 %v611, 1e-05
        %v628 = vadd.f32 %v612, 1e-05
        %v629 = vrsqrt.pop %v621
        %v630 = vrsqrt.pop %v622
        %v631 = vrsqrt.pop %v623
        %v632 = vrsqrt.pop %v624
        %v633 = vrsqrt.pop %v625
        %v634 = vrsqrt.pop %v626
        %v635 = vrsqrt.pop %v627
        %v636 = vrsqrt.pop %v628
        %v637 = vmul.f32 %v613, %v629
        %v638 = vmul.f32 %v614, %v630
        %v639 = vmul.f32 %v615, %v631
        %v640 = vmul.f32 %v616, %v632
        %v641 = vmul.f32 %v617, %v633
        %v642 = vmul.f32 %v618, %v634
        %v643 = vmul.f32 %v619, %v635
        %v644 = vmul.f32 %v620, %v636
        %v645 = vlaneseq
        %v646 = vshrl.u32 %v645, 7
        %v647 = vsub.s32 1, %v646
        %v648 = vrot.slane %v390, %v647
        %v649 = vmul.f32 %v637, %v648
        %v650 = vmul.f32 %v638, %v648
        %v651 = vmul.f32 %v639, %v648
        %v652 = vmul.f32 %v640, %v648
        %v653 = vmul.f32 %v641, %v648
        %v654 = vmul.f32 %v642, %v648
        %v655 = vmul.f32 %v643, %v648
        %v656 = vmul.f32 %v644, %v648
        %v657 = vlaneseq
        %v658 = vshrl.u32 %v657, 7
        %v659 = vsub.s32 2, %v658
        %v660 = vrot.slane %v390, %v659
        %v661 = vadd.f32 %v649, %v660
        %v662 = vadd.f32 %v650, %v660
        %v663 = vadd.f32 %v651, %v660
        %v664 = vadd.f32 %v652, %v660
        %v665 = vadd.f32 %v653, %v660
        %v666 = vadd.f32 %v654, %v660
        %v667 = vadd.f32 %v655, %v660
        %v668 = vadd.f32 %v656, %v660
        %v669 = vmul.f32 %v661, 0.5
        %v670 = vmul.f32 %v662, 0.5
        %v671 = vmul.f32 %v663, 0.5
        %v672 = vmul.f32 %v664, 0.5
        %v673 = vmul.f32 %v665, 0.5
        %v674 = vmul.f32 %v666, 0.5
        %v675 = vmul.f32 %v667, 0.5
        %v676 = vmul.f32 %v668, 0.5
        %v677 = vmul.f32 %v661, 0.044715
        %v678 = vmul.f32 %v662, 0.044715
        %v679 = vmul.f32 %v663, 0.044715
        %v680 = vmul.f32 %v664, 0.044715
        %v681 = vmul.f32 %v665, 0.044715
        %v682 = vmul.f32 %v666, 0.044715
        %v683 = vmul.f32 %v667, 0.044715
        %v684 = vmul.f32 %v668, 0.044715
        %v685 = vmul.f32 %v677, %v661
        %v686 = vmul.f32 %v678, %v662
        %v687 = vmul.f32 %v679, %v663
        %v688 = vmul.f32 %v680, %v664
        %v689 = vmul.f32 %v681, %v665
        %v690 = vmul.f32 %v682, %v666
        %v691 = vmul.f32 %v683, %v667
        %v692 = vmul.f32 %v684, %v668
        %v693 = vmul.f32 %v685, %v661
        %v694 = vmul.f32 %v686, %v662
        %v695 = vmul.f32 %v687, %v663
        %v696 = vmul.f32 %v688, %v664
        %v697 = vmul.f32 %v689, %v665
        %v698 = vmul.f32 %v690, %v666
        %v699 = vmul.f32 %v691, %v667
        %v700 = vmul.f32 %v692, %v668
        %v701 = vadd.f32 %v661, %v693
        %v702 = vadd.f32 %v662, %v694
        %v703 = vadd.f32 %v663, %v695
        %v704 = vadd.f32 %v664, %v696
        %v705 = vadd.f32 %v665, %v697
        %v706 = vadd.f32 %v666, %v698
        %v707 = vadd.f32 %v667, %v699
        %v708 = vadd.f32 %v668, %v700
        %v709 = vmul.f32 %v701, 0.7978846
        %v710 = vmul.f32 %v702, 0.7978846
        %v711 = vmul.f32 %v703, 0.7978846
        %v712 = vmul.f32 %v704, 0.7978846
        %v713 = vmul.f32 %v705, 0.7978846
        %v714 = vmul.f32 %v706, 0.7978846
        %v715 = vmul.f32 %v707, 0.7978846
        %v716 = vmul.f32 %v708, 0.7978846
        %v717 = vtanh.pop %v709
        %v718 = vtanh.pop %v710
        %v719 = vtanh.pop %v711
        %v720 = vtanh.pop %v712
        %v721 = vtanh.pop %v713
        %v722 = vtanh.pop %v714
        %v723 = vtanh.pop %v715
        %v724 = vtanh.pop %v716
        %v725 = vadd.f32 %v717, 1.0
        %v726 = vadd.f32 %v718, 1.0
        %v727 = vadd.f32 %v719, 1.0
        %v728 = vadd.f32 %v720, 1.0
        %v729 = vadd.f32 %v721, 1.0
        %v730 = vadd.f32 %v722, 1.0
        %v731 = vadd.f32 %v723, 1.0
        %v732 = vadd.f32 %v724, 1.0
        %v733 = vmul.f32 %v669, %v725
        %v734 = vmul.f32 %v670, %v726
        %v735 = vmul.f32 %v671, %v727
        %v736 = vmul.f32 %v672, %v728
        %v737 = vmul.f32 %v673, %v729
        %v738 = vmul.f32 %v674, %v730
        %v739 = vmul.f32 %v675, %v731
        %v740 = vmul.f32 %v676, %v732
        %v741 = vpack.c.bf16 %v734, %v733
        %v742 = vpack.c.bf16 %v736, %v735
        %v743 = vpack.c.bf16 %v738, %v737
        %v744 = vpack.c.bf16 %v740, %v739
        %v745 = vlaneseq
        %v746 = vshrl.u32 %v745, 7
        %v747 = vsub.s32 3, %v746
        %v748 = vrot.slane %v390, %v747
        %v753 = vunpack.c.l.b16 %v360
        %v754 = vunpack.c.l.b16 %v361
        %v755 = vunpack.c.l.b16 %v362
        %v756 = vunpack.c.l.b16 %v363
        %v757 = vpack.c.b16 %v754, %v753
        %v758 = vpack.c.b16 %v756, %v755
        %v762 = vsel %vm523, %v741, 0
        %v765 = vsel %vm523, %v742, 0
        %v768 = vsel %vm523, %v743, 0
        %v771 = vsel %vm523, %v744, 0
        %773 = vmatprep.subr.bf16.mxu0 0
        %774 = vmatpush1.bf16.msra.mxu0 %v757
        %775 = vmatprep.subr.bf16.mxu0 0
        %776 = vmatpush1.bf16.msra.mxu0 %v758
        %777 = vmatprep.subr.bf16.mxu0 0
        %778 = vmatpush1.bf16.msra.mxu0 0
        %779 = vmatprep.subr.bf16.mxu0 0
        %780 = vmatpush1.bf16.msra.mxu0 0
        %781 = vmatprep.subr.bf16.mxu0 0
        %782 = vmatpush1.bf16.msra.mxu0 0
        %783 = vmatprep.subr.bf16.mxu0 0
        %784 = vmatpush1.bf16.msra.mxu0 0
        %785 = vmatprep.subr.bf16.mxu0 0
        %786 = vmatpush1.bf16.msra.mxu0 0
        %787 = vmatprep.subr.bf16.mxu0 0
        %788 = vmatpush1.bf16.msra.mxu0 0
        %789 = vmatprep.subr.bf16.mxu0 0
        %790 = vmatpush1.bf16.msra.mxu0 0
        %791 = vmatprep.subr.bf16.mxu0 0
        %792 = vmatpush1.bf16.msra.mxu0 0
        %793 = vmatprep.subr.bf16.mxu0 0
        %794 = vmatpush1.bf16.msra.mxu0 0
        %795 = vmatprep.subr.bf16.mxu0 0
        %796 = vmatpush1.bf16.msra.mxu0 0
        %797 = vmatprep.subr.bf16.mxu0 0
        %798 = vmatpush1.bf16.msra.mxu0 0
        %799 = vmatprep.subr.bf16.mxu0 0
        %800 = vmatpush1.bf16.msra.mxu0 0
        %801 = vmatprep.subr.bf16.mxu0 0
        %802 = vmatpush1.bf16.msra.mxu0 0
        %803 = vmatprep.subr.bf16.mxu0 0
        %804 = vmatpush1.bf16.msra.mxu0 0
        %805 = vmatprep.mubr.bf16.mxu0 0
        %806 = vmatmul.mubr.bf16.gmra.mrb[0].mxu0 %v762
        %v807 = vpop.f32.mrb[0].mxu0
        %v808 = vadd.f32 %v748, %v807
        %v809 = vpop.f32.mrb[0].mxu0
        %v810 = vpop.f32.mrb[0].mxu0
        %v811 = vadd.f32 %v748, %v810
        %v812 = vpop.f32.mrb[0].mxu0
        %813 = vmatprep.mubr.bf16.mxu0 0
        %814 = vmatmul.mubr.bf16.gmra.mrb[0].mxu0 %v765
        %v815 = vpop.f32.mrb[0].mxu0
        %v816 = vadd.f32 %v748, %v815
        %v817 = vpop.f32.mrb[0].mxu0
        %v818 = vpop.f32.mrb[0].mxu0
        %v819 = vadd.f32 %v748, %v818
        %v820 = vpop.f32.mrb[0].mxu0
        %821 = vmatprep.mubr.bf16.mxu0 0
        %822 = vmatmul.mubr.bf16.gmra.mrb[0].mxu0 %v768
        %v823 = vpop.f32.mrb[0].mxu0
        %v824 = vadd.f32 %v748, %v823
        %v825 = vpop.f32.mrb[0].mxu0
        %v826 = vpop.f32.mrb[0].mxu0
        %v827 = vadd.f32 %v748, %v826
        %v828 = vpop.f32.mrb[0].mxu0
        %829 = vmatprep.mubr.bf16.mxu0 0
        %830 = vmatmul.mubr.bf16.gmra.mrb[0].mxu0 %v771
        %v831 = vpop.f32.mrb[0].mxu0
        %v832 = vadd.f32 %v748, %v831
        %v833 = vpop.f32.mrb[0].mxu0
        %v834 = vpop.f32.mrb[0].mxu0
        %v835 = vadd.f32 %v748, %v834
        %v836 = vpop.f32.mrb[0].mxu0
        %837 = vdwg.mxu0
        %838 = vadd.xlane.f32.xlu0 %v808
        %v839 = vpop.xlane.xlu0 %838
        %840 = vadd.xlane.f32.xlu0 %v811
        %v841 = vpop.xlane.xlu0 %840
        %842 = vadd.xlane.f32.xlu0 %v816
        %v843 = vpop.xlane.xlu0 %842
        %844 = vadd.xlane.f32.xlu0 %v819
        %v845 = vpop.xlane.xlu0 %844
        %846 = vadd.xlane.f32.xlu0 %v824
        %v847 = vpop.xlane.xlu0 %846
        %848 = vadd.xlane.f32.xlu0 %v827
        %v849 = vpop.xlane.xlu0 %848
        %850 = vadd.xlane.f32.xlu0 %v832
        %v851 = vpop.xlane.xlu0 %850
        %852 = vadd.xlane.f32.xlu0 %v835
        %v853 = vpop.xlane.xlu0 %852
        %v854 = vrcp.pop 128.0
        %v855 = vmul.f32 %v839, %v854
        %v856 = vmul.f32 %v841, %v854
        %v857 = vmul.f32 %v843, %v854
        %v858 = vmul.f32 %v845, %v854
        %v859 = vmul.f32 %v847, %v854
        %v860 = vmul.f32 %v849, %v854
        %v861 = vmul.f32 %v851, %v854
        %v862 = vmul.f32 %v853, %v854
        %v863 = vmul.f32 %v808, %v808
        %v864 = vmul.f32 %v811, %v811
        %v865 = vmul.f32 %v816, %v816
        %v866 = vmul.f32 %v819, %v819
        %v867 = vmul.f32 %v824, %v824
        %v868 = vmul.f32 %v827, %v827
        %v869 = vmul.f32 %v832, %v832
        %v870 = vmul.f32 %v835, %v835
        %871 = vadd.xlane.f32.xlu0 %v863
        %v872 = vpop.xlane.xlu0 %871
        %873 = vadd.xlane.f32.xlu0 %v864
        %v874 = vpop.xlane.xlu0 %873
        %875 = vadd.xlane.f32.xlu0 %v865
        %v876 = vpop.xlane.xlu0 %875
        %877 = vadd.xlane.f32.xlu0 %v866
        %v878 = vpop.xlane.xlu0 %877
        %879 = vadd.xlane.f32.xlu0 %v867
        %v880 = vpop.xlane.xlu0 %879
        %881 = vadd.xlane.f32.xlu0 %v868
        %v882 = vpop.xlane.xlu0 %881
        %883 = vadd.xlane.f32.xlu0 %v869
        %v884 = vpop.xlane.xlu0 %883
        %885 = vadd.xlane.f32.xlu0 %v870
        %v886 = vpop.xlane.xlu0 %885
        %v887 = vmul.f32 %v872, %v854
        %v888 = vmul.f32 %v874, %v854
        %v889 = vmul.f32 %v876, %v854
        %v890 = vmul.f32 %v878, %v854
        %v891 = vmul.f32 %v880, %v854
        %v892 = vmul.f32 %v882, %v854
        %v893 = vmul.f32 %v884, %v854
        %v894 = vmul.f32 %v886, %v854
        %v895 = vmul.f32 %v855, %v855
        %v896 = vmul.f32 %v856, %v856
        %v897 = vmul.f32 %v857, %v857
        %v898 = vmul.f32 %v858, %v858
        %v899 = vmul.f32 %v859, %v859
        %v900 = vmul.f32 %v860, %v860
        %v901 = vmul.f32 %v861, %v861
        %v902 = vmul.f32 %v862, %v862
        %v903 = vsub.f32 %v887, %v895
        %v904 = vsub.f32 %v888, %v896
        %v905 = vsub.f32 %v889, %v897
        %v906 = vsub.f32 %v890, %v898
        %v907 = vsub.f32 %v891, %v899
        %v908 = vsub.f32 %v892, %v900
        %v909 = vsub.f32 %v893, %v901
        %v910 = vsub.f32 %v894, %v902
        %v911 = vsub.f32 %v808, %v855
        %v912 = vsub.f32 %v811, %v856
        %v913 = vsub.f32 %v816, %v857
        %v914 = vsub.f32 %v819, %v858
        %v915 = vsub.f32 %v824, %v859
        %v916 = vsub.f32 %v827, %v860
        %v917 = vsub.f32 %v832, %v861
        %v918 = vsub.f32 %v835, %v862
        %v919 = vadd.f32 %v903, 1e-05
        %v920 = vadd.f32 %v904, 1e-05
        %v921 = vadd.f32 %v905, 1e-05
        %v922 = vadd.f32 %v906, 1e-05
        %v923 = vadd.f32 %v907, 1e-05
        %v924 = vadd.f32 %v908, 1e-05
        %v925 = vadd.f32 %v909, 1e-05
        %v926 = vadd.f32 %v910, 1e-05
        %v927 = vrsqrt.pop %v919
        %v928 = vrsqrt.pop %v920
        %v929 = vrsqrt.pop %v921
        %v930 = vrsqrt.pop %v922
        %v931 = vrsqrt.pop %v923
        %v932 = vrsqrt.pop %v924
        %v933 = vrsqrt.pop %v925
        %v934 = vrsqrt.pop %v926
        %v935 = vmul.f32 %v911, %v927
        %v936 = vmul.f32 %v912, %v928
        %v937 = vmul.f32 %v913, %v929
        %v938 = vmul.f32 %v914, %v930
        %v939 = vmul.f32 %v915, %v931
        %v940 = vmul.f32 %v916, %v932
        %v941 = vmul.f32 %v917, %v933
        %v942 = vmul.f32 %v918, %v934
        %v943 = vlaneseq
        %v944 = vshrl.u32 %v943, 7
        %v945 = vsub.s32 4, %v944
        %v946 = vrot.slane %v390, %v945
        %v947 = vmul.f32 %v935, %v946
        %v948 = vmul.f32 %v936, %v946
        %v949 = vmul.f32 %v937, %v946
        %v950 = vmul.f32 %v938, %v946
        %v951 = vmul.f32 %v939, %v946
        %v952 = vmul.f32 %v940, %v946
        %v953 = vmul.f32 %v941, %v946
        %v954 = vmul.f32 %v942, %v946
        %v955 = vlaneseq
        %v956 = vshrl.u32 %v955, 7
        %v957 = vsub.s32 5, %v956
        %v958 = vrot.slane %v390, %v957
        %v959 = vadd.f32 %v947, %v958
        %v960 = vadd.f32 %v948, %v958
        %v961 = vadd.f32 %v949, %v958
        %v962 = vadd.f32 %v950, %v958
        %v963 = vadd.f32 %v951, %v958
        %v964 = vadd.f32 %v952, %v958
        %v965 = vadd.f32 %v953, %v958
        %v966 = vadd.f32 %v954, %v958
        %v967 = vxor.u32 %v959, 2147483648
        %v968 = vxor.u32 %v960, 2147483648
        %v969 = vxor.u32 %v961, 2147483648
        %v970 = vxor.u32 %v962, 2147483648
        %v971 = vxor.u32 %v963, 2147483648
        %v972 = vxor.u32 %v964, 2147483648
        %v973 = vxor.u32 %v965, 2147483648
        %v974 = vxor.u32 %v966, 2147483648
        %v975 = vmul.f32 %v967, 1.442695
        %v976 = vpow.pop %v975
        %v977 = vmul.f32 %v968, 1.442695
        %v978 = vpow.pop %v977
        %v979 = vmul.f32 %v969, 1.442695
        %v980 = vpow.pop %v979
        %v981 = vmul.f32 %v970, 1.442695
        %v982 = vpow.pop %v981
        %v983 = vmul.f32 %v971, 1.442695
        %v984 = vpow.pop %v983
        %v985 = vmul.f32 %v972, 1.442695
        %v986 = vpow.pop %v985
        %v987 = vmul.f32 %v973, 1.442695
        %v988 = vpow.pop %v987
        %v989 = vmul.f32 %v974, 1.442695
        %v990 = vpow.pop %v989
        %v991 = vadd.f32 %v976, 1.0
        %v992 = vadd.f32 %v978, 1.0
        %v993 = vadd.f32 %v980, 1.0
        %v994 = vadd.f32 %v982, 1.0
        %v995 = vadd.f32 %v984, 1.0
        %v996 = vadd.f32 %v986, 1.0
        %v997 = vadd.f32 %v988, 1.0
        %v998 = vadd.f32 %v990, 1.0
        %v999 = vrcp.pop %v991
        %v1000 = vmul.f32 1.0, %v999
        %v1001 = vrcp.pop %v992
        %v1002 = vmul.f32 1.0, %v1001
        %v1003 = vrcp.pop %v993
        %v1004 = vmul.f32 1.0, %v1003
        %v1005 = vrcp.pop %v994
        %v1006 = vmul.f32 1.0, %v1005
        %v1007 = vrcp.pop %v995
        %v1008 = vmul.f32 1.0, %v1007
        %v1009 = vrcp.pop %v996
        %v1010 = vmul.f32 1.0, %v1009
        %v1011 = vrcp.pop %v997
        %v1012 = vmul.f32 1.0, %v1011
        %v1013 = vrcp.pop %v998
        %v1014 = vmul.f32 1.0, %v1013
        %1015 = vadd.xlane.f32.xlu0 %v394
        %v1016 = vpop.xlane.xlu0 %1015
        %1017 = vadd.xlane.f32.xlu0 %v395
        %v1018 = vpop.xlane.xlu0 %1017
        %1019 = vadd.xlane.f32.xlu0 %v396
        %v1020 = vpop.xlane.xlu0 %1019
        %1021 = vadd.xlane.f32.xlu0 %v397
        %v1022 = vpop.xlane.xlu0 %1021
        %1023 = vadd.xlane.f32.xlu0 %v398
        %v1024 = vpop.xlane.xlu0 %1023
        %1025 = vadd.xlane.f32.xlu0 %v399
        %v1026 = vpop.xlane.xlu0 %1025
        %1027 = vadd.xlane.f32.xlu0 %v400
        %v1028 = vpop.xlane.xlu0 %1027
        %1029 = vadd.xlane.f32.xlu0 %v401
        %v1030 = vpop.xlane.xlu0 %1029
        %v1031 = vmul.f32 %v1016, %v854
        %v1032 = vmul.f32 %v1018, %v854
        %v1033 = vmul.f32 %v1020, %v854
        %v1034 = vmul.f32 %v1022, %v854
        %v1035 = vmul.f32 %v1024, %v854
        %v1036 = vmul.f32 %v1026, %v854
        %v1037 = vmul.f32 %v1028, %v854
        %v1038 = vmul.f32 %v1030, %v854
        %vm1039 = vcmask 130048
        %v1041 = vsel %vm1039, %v384, 0
        %1043 = vmatprep.subr.mxu0 0.0
        %1044 = vmatpush1.msra.mxu0 %v1031
        %1045 = vmatprep.subr.mxu0 0.0
        %1046 = vmatpush1.msra.mxu0 %v1032
        %1047 = vmatprep.subr.mxu0 0.0
        %1048 = vmatpush1.msra.mxu0 0.0
        %1049 = vmatprep.subr.mxu0 0.0
        %1050 = vmatpush1.msra.mxu0 0.0
        %1051 = vmatprep.subr.mxu0 0.0
        %1052 = vmatpush1.msra.mxu0 0.0
        %1053 = vmatprep.subr.mxu0 0.0
        %1054 = vmatpush1.msra.mxu0 0.0
        %1055 = vmatprep.subr.mxu0 0.0
        %1056 = vmatpush1.msra.mxu0 0.0
        %1057 = vmatprep.subr.mxu0 0.0
        %1058 = vmatpush1.msra.mxu0 0.0
        %1059 = vmatprep.subr.mxu0 0.0
        %1060 = vmatpush1.msra.mxu0 0.0
        %1061 = vmatprep.subr.mxu0 0.0
        %1062 = vmatpush1.msra.mxu0 0.0
        %1063 = vmatprep.subr.mxu0 0.0
        %1064 = vmatpush1.msra.mxu0 0.0
        %1065 = vmatprep.subr.mxu0 0.0
        %1066 = vmatpush1.msra.mxu0 0.0
        %1067 = vmatprep.subr.mxu0 0.0
        %1068 = vmatpush1.msra.mxu0 0.0
        %1069 = vmatprep.subr.mxu0 0.0
        %1070 = vmatpush1.msra.mxu0 0.0
        %1071 = vmatprep.subr.mxu0 0.0
        %1072 = vmatpush1.msra.mxu0 0.0
        %1073 = vmatprep.subr.mxu0 0.0
        %1074 = vmatpush1.msra.mxu0 0.0
        %1075 = vmatprep.subr.mxu0 0.0
        %1076 = vmatpush1.msra.mxu0 0.0
        %1077 = vmatprep.subr.mxu0 0.0
        %1078 = vmatpush1.msra.mxu0 0.0
        %1079 = vmatprep.subr.mxu0 0.0
        %1080 = vmatpush1.msra.mxu0 0.0
        %1081 = vmatprep.subr.mxu0 0.0
        %1082 = vmatpush1.msra.mxu0 0.0
        %1083 = vmatprep.subr.mxu0 0.0
        %1084 = vmatpush1.msra.mxu0 0.0
        %1085 = vmatprep.subr.mxu0 0.0
        %1086 = vmatpush1.msra.mxu0 0.0
        %1087 = vmatprep.subr.mxu0 0.0
        %1088 = vmatpush1.msra.mxu0 0.0
        %1089 = vmatprep.subr.mxu0 0.0
        %1090 = vmatpush1.msra.mxu0 0.0
        %1091 = vmatprep.subr.mxu0 0.0
        %1092 = vmatpush1.msra.mxu0 0.0
        %1093 = vmatprep.subr.mxu0 0.0
        %1094 = vmatpush1.msra.mxu0 0.0
        %1095 = vmatprep.subr.mxu0 0.0
        %1096 = vmatpush1.msra.mxu0 0.0
        %1097 = vmatprep.subr.mxu0 0.0
        %1098 = vmatpush1.msra.mxu0 0.0
        %1099 = vmatprep.subr.mxu0 0.0
        %1100 = vmatpush1.msra.mxu0 0.0
        %1101 = vmatprep.subr.mxu0 0.0
        %1102 = vmatpush1.msra.mxu0 0.0
        %1103 = vmatprep.subr.mxu0 0.0
        %1104 = vmatpush1.msra.mxu0 0.0
        %1105 = vmatprep.subr.mxu0 0.0
        %1106 = vmatpush1.msra.mxu0 0.0
        %1107 = vmatprep.mubr.f32.mxu0 0.0
        %1108 = vmatmul.mubr.f32.gmra.mrb[0].mxu0 %v1041
        %v1109 = vpop.f32.mrb[0].mxu0
        %v1110 = vadd.f32 %v392, %v1109
        %v1111 = vpop.f32.mrb[0].mxu0
        %1112 = vdwg.mxu0
        %vm1113 = vcmask 3072
        %v1114 = vsel %vm1113, %v1110, 0.0
        %v1115 = vrot.slane %v1114, 4
        %v1116 = vadd.f32 %v1114, %v1115
        %v1117 = vrot.slane %v1116, 2
        %v1118 = vadd.f32 %v1116, %v1117
        %v1119 = vrot.slane %v1118, 1
        %v1120 = vadd.f32 %v1118, %v1119
        %v1121 = vrcp.pop 4.0
        %v1122 = vmul.f32 %v1120, %v1121
        %v1123 = vmul.f32 %v1110, %v1110
        %v1124 = vsel %vm1113, %v1123, 0.0
        %v1125 = vrot.slane %v1124, 4
        %v1126 = vadd.f32 %v1124, %v1125
        %v1127 = vrot.slane %v1126, 2
        %v1128 = vadd.f32 %v1126, %v1127
        %v1129 = vrot.slane %v1128, 1
        %v1130 = vadd.f32 %v1128, %v1129
        %v1131 = vmul.f32 %v1130, %v1121
        %v1132 = vmul.f32 %v1122, %v1122
        %v1133 = vsub.f32 %v1131, %v1132
        %v1134 = vsub.f32 %v1110, %v1122
        %v1135 = vadd.f32 %v1133, 1e-05
        %v1136 = vrsqrt.pop %v1135
        %v1137 = vmul.f32 %v1134, %v1136
        %1139 = vrot.lane.b32.xlu0 %v392, 127
        %v1140 = vpop.permute.xlu0 %1139
        %v1142 = vmul.f32 %v1137, %v1140
        %1143 = vrot.lane.b32.xlu0 %v392, 126
        %v1144 = vpop.permute.xlu0 %1143
        %v1146 = vadd.f32 %v1142, %v1144
        %v1147 = vmul.f32 %v1146, 0.5
        %v1148 = vmul.f32 %v1146, 0.044715
        %v1149 = vmul.f32 %v1148, %v1146
        %v1150 = vmul.f32 %v1149, %v1146
        %v1151 = vadd.f32 %v1146, %v1150
        %v1152 = vmul.f32 %v1151, 0.7978846
        %v1153 = vtanh.pop %v1152
        %v1154 = vadd.f32 %v1153, 1.0
        %v1155 = vmul.f32 %v1147, %v1154
        %vm1158 = vcmask 1043456
        %v1159 = vrot.slane %v384, 4
        %v1160 = vrot.slane %v385, 4
        %v1161 = vsel %vm1158, %v1159, %v1160
        %v1162 = vrot.slane %v386, 4
        %v1163 = vsel %vm1158, %v1160, %v1162
        %1165 = vrot.lane.b32.xlu0 %v392, 125
        %v1166 = vpop.permute.xlu0 %1165
        %1167 = vrot.lane.b32.xlu0 %v393, 125
        %v1168 = vpop.permute.xlu0 %1167
        %vm1171 = vcmask 31744
        %v1172 = vsel %vm1171, %v1161, 0
        %v1174 = vsel %vm1171, %v1163, 0
        %v1177 = vsel %vm1158, %v1155, 0
        %1179 = vmatprep.subr.mxu0 0.0
        %1180 = vmatpush1.msra.mxu0 %v1177
        %1181 = vmatprep.subr.mxu0 0.0
        %1182 = vmatpush1.msra.mxu0 0.0
        %1183 = vmatprep.subr.mxu0 0.0
        %1184 = vmatpush1.msra.mxu0 0.0
        %1185 = vmatprep.subr.mxu0 0.0
        %1186 = vmatpush1.msra.mxu0 0.0
        %1187 = vmatprep.subr.mxu0 0.0
        %1188 = vmatpush1.msra.mxu0 0.0
        %1189 = vmatprep.subr.mxu0 0.0
        %1190 = vmatpush1.msra.mxu0 0.0
        %1191 = vmatprep.subr.mxu0 0.0
        %1192 = vmatpush1.msra.mxu0 0.0
        %1193 = vmatprep.subr.mxu0 0.0
        %1194 = vmatpush1.msra.mxu0 0.0
        %1195 = vmatprep.subr.mxu0 0.0
        %1196 = vmatpush1.msra.mxu0 0.0
        %1197 = vmatprep.subr.mxu0 0.0
        %1198 = vmatpush1.msra.mxu0 0.0
        %1199 = vmatprep.subr.mxu0 0.0
        %1200 = vmatpush1.msra.mxu0 0.0
        %1201 = vmatprep.subr.mxu0 0.0
        %1202 = vmatpush1.msra.mxu0 0.0
        %1203 = vmatprep.subr.mxu0 0.0
        %1204 = vmatpush1.msra.mxu0 0.0
        %1205 = vmatprep.subr.mxu0 0.0
        %1206 = vmatpush1.msra.mxu0 0.0
        %1207 = vmatprep.subr.mxu0 0.0
        %1208 = vmatpush1.msra.mxu0 0.0
        %1209 = vmatprep.subr.mxu0 0.0
        %1210 = vmatpush1.msra.mxu0 0.0
        %1211 = vmatprep.subr.mxu0 0.0
        %1212 = vmatpush1.msra.mxu0 0.0
        %1213 = vmatprep.subr.mxu0 0.0
        %1214 = vmatpush1.msra.mxu0 0.0
        %1215 = vmatprep.subr.mxu0 0.0
        %1216 = vmatpush1.msra.mxu0 0.0
        %1217 = vmatprep.subr.mxu0 0.0
        %1218 = vmatpush1.msra.mxu0 0.0
        %1219 = vmatprep.subr.mxu0 0.0
        %1220 = vmatpush1.msra.mxu0 0.0
        %1221 = vmatprep.subr.mxu0 0.0
        %1222 = vmatpush1.msra.mxu0 0.0
        %1223 = vmatprep.subr.mxu0 0.0
        %1224 = vmatpush1.msra.mxu0 0.0
        %1225 = vmatprep.subr.mxu0 0.0
        %1226 = vmatpush1.msra.mxu0 0.0
        %1227 = vmatprep.subr.mxu0 0.0
        %1228 = vmatpush1.msra.mxu0 0.0
        %1229 = vmatprep.subr.mxu0 0.0
        %1230 = vmatpush1.msra.mxu0 0.0
        %1231 = vmatprep.subr.mxu0 0.0
        %1232 = vmatpush1.msra.mxu0 0.0
        %1233 = vmatprep.subr.mxu0 0.0
        %1234 = vmatpush1.msra.mxu0 0.0
        %1235 = vmatprep.subr.mxu0 0.0
        %1236 = vmatpush1.msra.mxu0 0.0
        %1237 = vmatprep.subr.mxu0 0.0
        %1238 = vmatpush1.msra.mxu0 0.0
        %1239 = vmatprep.subr.mxu0 0.0
        %1240 = vmatpush1.msra.mxu0 0.0
        %1241 = vmatprep.subr.mxu0 0.0
        %1242 = vmatpush1.msra.mxu0 0.0
        %1243 = vmatprep.mubr.f32.mxu0 0.0
        %1244 = vmatmul.mubr.f32.gmra.mrb[0].mxu0 %v1172
        %v1245 = vpop.f32.mrb[0].mxu0
        %v1246 = vadd.f32 %v1166, %v1245
        %v1247 = vpop.f32.mrb[0].mxu0
        %1248 = vmatprep.mubr.f32.mxu0 0.0
        %1249 = vmatmul.mubr.f32.gmra.mrb[0].mxu0 %v1174
        %v1250 = vpop.f32.mrb[0].mxu0
        %v1251 = vadd.f32 %v1168, %v1250
        %v1252 = vpop.f32.mrb[0].mxu0
        %1253 = vdwg.mxu0
        %vm1254 = vcmask 7168
        %v1255 = vsel %vm1254, %v1246, 0.0
        %v1256 = vsel %vm1254, %v1251, 0.0
        %v1257 = vadd.f32 %v1255, %v1256
        %v1258 = vrot.slane %v1257, 4
        %v1259 = vadd.f32 %v1257, %v1258
        %v1260 = vrot.slane %v1259, 2
        %v1261 = vadd.f32 %v1259, %v1260
        %v1262 = vrot.slane %v1261, 1
        %v1263 = vadd.f32 %v1261, %v1262
        %v1264 = vrcp.pop 16.0
        %v1265 = vmul.f32 %v1263, %v1264
        %v1266 = vmul.f32 %v1246, %v1246
        %v1267 = vmul.f32 %v1251, %v1251
        %v1268 = vsel %vm1254, %v1266, 0.0
        %v1269 = vsel %vm1254, %v1267, 0.0
        %v1270 = vadd.f32 %v1268, %v1269
        %v1271 = vrot.slane %v1270, 4
        %v1272 = vadd.f32 %v1270, %v1271
        %v1273 = vrot.slane %v1272, 2
        %v1274 = vadd.f32 %v1272, %v1273
        %v1275 = vrot.slane %v1274, 1
        %v1276 = vadd.f32 %v1274, %v1275
        %v1277 = vmul.f32 %v1276, %v1264
        %v1278 = vmul.f32 %v1265, %v1265
        %v1279 = vsub.f32 %v1277, %v1278
        %v1280 = vsub.f32 %v1246, %v1265
        %v1281 = vsub.f32 %v1251, %v1265
        %v1282 = vadd.f32 %v1279, 1e-05
        %v1283 = vrsqrt.pop %v1282
        %v1284 = vmul.f32 %v1280, %v1283
        %v1285 = vmul.f32 %v1281, %v1283
        %1286 = vrot.lane.b32.xlu0 %v392, 124
        %v1287 = vpop.permute.xlu0 %1286
        %1288 = vrot.lane.b32.xlu0 %v393, 124
        %v1289 = vpop.permute.xlu0 %1288
        %v1292 = vmul.f32 %v1284, %v1287
        %v1293 = vmul.f32 %v1285, %v1289
        %1294 = vrot.lane.b32.xlu0 %v392, 123
        %v1295 = vpop.permute.xlu0 %1294
        %1296 = vrot.lane.b32.xlu0 %v393, 123
        %v1297 = vpop.permute.xlu0 %1296
        %v1300 = vadd.f32 %v1292, %v1295
        %v1301 = vadd.f32 %v1293, %v1297
        %v1302 = vxor.u32 %v1300, 2147483648
        %v1303 = vxor.u32 %v1301, 2147483648
        %v1304 = vmul.f32 %v1302, 1.442695
        %v1305 = vpow.pop %v1304
        %v1306 = vmul.f32 %v1303, 1.442695
        %v1307 = vpow.pop %v1306
        %v1308 = vadd.f32 %v1305, 1.0
        %v1309 = vadd.f32 %v1307, 1.0
        %v1310 = vrcp.pop %v1308
        %v1311 = vmul.f32 1.0, %v1310
        %v1312 = vrcp.pop %v1309
        %v1313 = vmul.f32 1.0, %v1312
        %1314 = vmatprep.subr.mxu0 0.0
        %1315 = vmatpush1.msra.mxu0 %v1033
        %1316 = vmatprep.subr.mxu0 0.0
        %1317 = vmatpush1.msra.mxu0 %v1034
        %1318 = vmatprep.subr.mxu0 0.0
        %1319 = vmatpush1.msra.mxu0 0.0
        %1320 = vmatprep.subr.mxu0 0.0
        %1321 = vmatpush1.msra.mxu0 0.0
        %1322 = vmatprep.subr.mxu0 0.0
        %1323 = vmatpush1.msra.mxu0 0.0
        %1324 = vmatprep.subr.mxu0 0.0
        %1325 = vmatpush1.msra.mxu0 0.0
        %1326 = vmatprep.subr.mxu0 0.0
        %1327 = vmatpush1.msra.mxu0 0.0
        %1328 = vmatprep.subr.mxu0 0.0
        %1329 = vmatpush1.msra.mxu0 0.0
        %1330 = vmatprep.subr.mxu0 0.0
        %1331 = vmatpush1.msra.mxu0 0.0
        %1332 = vmatprep.subr.mxu0 0.0
        %1333 = vmatpush1.msra.mxu0 0.0
        %1334 = vmatprep.subr.mxu0 0.0
        %1335 = vmatpush1.msra.mxu0 0.0
        %1336 = vmatprep.subr.mxu0 0.0
        %1337 = vmatpush1.msra.mxu0 0.0
        %1338 = vmatprep.subr.mxu0 0.0
        %1339 = vmatpush1.msra.mxu0 0.0
        %1340 = vmatprep.subr.mxu0 0.0
        %1341 = vmatpush1.msra.mxu0 0.0
        %1342 = vmatprep.subr.mxu0 0.0
        %1343 = vmatpush1.msra.mxu0 0.0
        %1344 = vmatprep.subr.mxu0 0.0
        %1345 = vmatpush1.msra.mxu0 0.0
        %1346 = vmatprep.subr.mxu0 0.0
        %1347 = vmatpush1.msra.mxu0 0.0
        %1348 = vmatprep.subr.mxu0 0.0
        %1349 = vmatpush1.msra.mxu0 0.0
        %1350 = vmatprep.subr.mxu0 0.0
        %1351 = vmatpush1.msra.mxu0 0.0
        %1352 = vmatprep.subr.mxu0 0.0
        %1353 = vmatpush1.msra.mxu0 0.0
        %1354 = vmatprep.subr.mxu0 0.0
        %1355 = vmatpush1.msra.mxu0 0.0
        %1356 = vmatprep.subr.mxu0 0.0
        %1357 = vmatpush1.msra.mxu0 0.0
        %1358 = vmatprep.subr.mxu0 0.0
        %1359 = vmatpush1.msra.mxu0 0.0
        %1360 = vmatprep.subr.mxu0 0.0
        %1361 = vmatpush1.msra.mxu0 0.0
        %1362 = vmatprep.subr.mxu0 0.0
        %1363 = vmatpush1.msra.mxu0 0.0
        %1364 = vmatprep.subr.mxu0 0.0
        %1365 = vmatpush1.msra.mxu0 0.0
        %1366 = vmatprep.subr.mxu0 0.0
        %1367 = vmatpush1.msra.mxu0 0.0
        %1368 = vmatprep.subr.mxu0 0.0
        %1369 = vmatpush1.msra.mxu0 0.0
        %1370 = vmatprep.subr.mxu0 0.0
        %1371 = vmatpush1.msra.mxu0 0.0
        %1372 = vmatprep.subr.mxu0 0.0
        %1373 = vmatpush1.msra.mxu0 0.0
        %1374 = vmatprep.subr.mxu0 0.0
        %1375 = vmatpush1.msra.mxu0 0.0
        %1376 = vmatprep.subr.mxu0 0.0
        %1377 = vmatpush1.msra.mxu0 0.0
        %1378 = vmatprep.mubr.f32.mxu0 0.0
        %1379 = vmatmul.mubr.f32.gmra.mrb[0].mxu0 %v1041
        %v1380 = vpop.f32.mrb[0].mxu0
        %v1381 = vadd.f32 %v392, %v1380
        %v1382 = vpop.f32.mrb[0].mxu0
        %1383 = vdwg.mxu0
        %v1384 = vsel %vm1113, %v1381, 0.0
        %v1385 = vrot.slane %v1384, 4
        %v1386 = vadd.f32 %v1384, %v1385
        %v1387 = vrot.slane %v1386, 2
        %v1388 = vadd.f32 %v1386, %v1387
        %v1389 = vrot.slane %v1388, 1
        %v1390 = vadd.f32 %v1388, %v1389
        %v1391 = vmul.f32 %v1390, %v1121
        %v1392 = vmul.f32 %v1381, %v1381
        %v1393 = vsel %vm1113, %v1392, 0.0
        %v1394 = vrot.slane %v1393, 4
        %v1395 = vadd.f32 %v1393, %v1394
        %v1396 = vrot.slane %v1395, 2
        %v1397 = vadd.f32 %v1395, %v1396
        %v1398 = vrot.slane %v1397, 1
        %v1399 = vadd.f32 %v1397, %v1398
        %v1400 = vmul.f32 %v1399, %v1121
        %v1401 = vmul.f32 %v1391, %v1391
        %v1402 = vsub.f32 %v1400, %v1401
        %v1403 = vsub.f32 %v1381, %v1391
        %v1404 = vadd.f32 %v1402, 1e-05
        %v1405 = vrsqrt.pop %v1404
        %v1406 = vmul.f32 %v1403, %v1405
        %v1407 = vmul.f32 %v1406, %v1140
        %v1408 = vadd.f32 %v1407, %v1144
        %v1409 = vmul.f32 %v1408, 0.5
        %v1410 = vmul.f32 %v1408, 0.044715
        %v1411 = vmul.f32 %v1410, %v1408
        %v1412 = vmul.f32 %v1411, %v1408
        %v1413 = vadd.f32 %v1408, %v1412
        %v1414 = vmul.f32 %v1413, 0.7978846
        %v1415 = vtanh.pop %v1414
        %v1416 = vadd.f32 %v1415, 1.0
        %v1417 = vmul.f32 %v1409, %v1416
        %v1419 = vsel %vm1158, %v1417, 0
        %1421 = vmatprep.subr.mxu0 0.0
        %1422 = vmatpush1.msra.mxu0 %v1419
        %1423 = vmatprep.subr.mxu0 0.0
        %1424 = vmatpush1.msra.mxu0 0.0
        %1425 = vmatprep.subr.mxu0 0.0
        %1426 = vmatpush1.msra.mxu0 0.0
        %1427 = vmatprep.subr.mxu0 0.0
        %1428 = vmatpush1.msra.mxu0 0.0
        %1429 = vmatprep.subr.mxu0 0.0
        %1430 = vmatpush1.msra.mxu0 0.0
        %1431 = vmatprep.subr.mxu0 0.0
        %1432 = vmatpush1.msra.mxu0 0.0
        %1433 = vmatprep.subr.mxu0 0.0
        %1434 = vmatpush1.msra.mxu0 0.0
        %1435 = vmatprep.subr.mxu0 0.0
        %1436 = vmatpush1.msra.mxu0 0.0
        %1437 = vmatprep.subr.mxu0 0.0
        %1438 = vmatpush1.msra.mxu0 0.0
        %1439 = vmatprep.subr.mxu0 0.0
        %1440 = vmatpush1.msra.mxu0 0.0
        %1441 = vmatprep.subr.mxu0 0.0
        %1442 = vmatpush1.msra.mxu0 0.0
        %1443 = vmatprep.subr.mxu0 0.0
        %1444 = vmatpush1.msra.mxu0 0.0
        %1445 = vmatprep.subr.mxu0 0.0
        %1446 = vmatpush1.msra.mxu0 0.0
        %1447 = vmatprep.subr.mxu0 0.0
        %1448 = vmatpush1.msra.mxu0 0.0
        %1449 = vmatprep.subr.mxu0 0.0
        %1450 = vmatpush1.msra.mxu0 0.0
        %1451 = vmatprep.subr.mxu0 0.0
        %1452 = vmatpush1.msra.mxu0 0.0
        %1453 = vmatprep.subr.mxu0 0.0
        %1454 = vmatpush1.msra.mxu0 0.0
        %1455 = vmatprep.subr.mxu0 0.0
        %1456 = vmatpush1.msra.mxu0 0.0
        %1457 = vmatprep.subr.mxu0 0.0
        %1458 = vmatpush1.msra.mxu0 0.0
        %1459 = vmatprep.subr.mxu0 0.0
        %1460 = vmatpush1.msra.mxu0 0.0
        %1461 = vmatprep.subr.mxu0 0.0
        %1462 = vmatpush1.msra.mxu0 0.0
        %1463 = vmatprep.subr.mxu0 0.0
        %1464 = vmatpush1.msra.mxu0 0.0
        %1465 = vmatprep.subr.mxu0 0.0
        %1466 = vmatpush1.msra.mxu0 0.0
        %1467 = vmatprep.subr.mxu0 0.0
        %1468 = vmatpush1.msra.mxu0 0.0
        %1469 = vmatprep.subr.mxu0 0.0
        %1470 = vmatpush1.msra.mxu0 0.0
        %1471 = vmatprep.subr.mxu0 0.0
        %1472 = vmatpush1.msra.mxu0 0.0
        %1473 = vmatprep.subr.mxu0 0.0
        %1474 = vmatpush1.msra.mxu0 0.0
        %1475 = vmatprep.subr.mxu0 0.0
        %1476 = vmatpush1.msra.mxu0 0.0
        %1477 = vmatprep.subr.mxu0 0.0
        %1478 = vmatpush1.msra.mxu0 0.0
        %1479 = vmatprep.subr.mxu0 0.0
        %1480 = vmatpush1.msra.mxu0 0.0
        %1481 = vmatprep.subr.mxu0 0.0
        %1482 = vmatpush1.msra.mxu0 0.0
        %1483 = vmatprep.subr.mxu0 0.0
        %1484 = vmatpush1.msra.mxu0 0.0
        %1485 = vmatprep.mubr.f32.mxu0 0.0
        %1486 = vmatmul.mubr.f32.gmra.mrb[0].mxu0 %v1172
        %v1487 = vpop.f32.mrb[0].mxu0
        %v1488 = vadd.f32 %v1166, %v1487
        %v1489 = vpop.f32.mrb[0].mxu0
        %1490 = vmatprep.mubr.f32.mxu0 0.0
        %1491 = vmatmul.mubr.f32.gmra.mrb[0].mxu0 %v1174
        %v1492 = vpop.f32.mrb[0].mxu0
        %v1493 = vadd.f32 %v1168, %v1492
        %v1494 = vpop.f32.mrb[0].mxu0
        %1495 = vdwg.mxu0
        %v1496 = vsel %vm1254, %v1488, 0.0
        %v1497 = vsel %vm1254, %v1493, 0.0
        %v1498 = vadd.f32 %v1496, %v1497
        %v1499 = vrot.slane %v1498, 4
        %v1500 = vadd.f32 %v1498, %v1499
        %v1501 = vrot.slane %v1500, 2
        %v1502 = vadd.f32 %v1500, %v1501
        %v1503 = vrot.slane %v1502, 1
        %v1504 = vadd.f32 %v1502, %v1503
        %v1505 = vmul.f32 %v1504, %v1264
        %v1506 = vmul.f32 %v1488, %v1488
        %v1507 = vmul.f32 %v1493, %v1493
        %v1508 = vsel %vm1254, %v1506, 0.0
        %v1509 = vsel %vm1254, %v1507, 0.0
        %v1510 = vadd.f32 %v1508, %v1509
        %v1511 = vrot.slane %v1510, 4
        %v1512 = vadd.f32 %v1510, %v1511
        %v1513 = vrot.slane %v1512, 2
        %v1514 = vadd.f32 %v1512, %v1513
        %v1515 = vrot.slane %v1514, 1
        %v1516 = vadd.f32 %v1514, %v1515
        %v1517 = vmul.f32 %v1516, %v1264
        %v1518 = vmul.f32 %v1505, %v1505
        %v1519 = vsub.f32 %v1517, %v1518
        %v1520 = vsub.f32 %v1488, %v1505
        %v1521 = vsub.f32 %v1493, %v1505
        %v1522 = vadd.f32 %v1519, 1e-05
        %v1523 = vrsqrt.pop %v1522
        %v1524 = vmul.f32 %v1520, %v1523
        %v1525 = vmul.f32 %v1521, %v1523
        %v1526 = vmul.f32 %v1524, %v1287
        %v1527 = vmul.f32 %v1525, %v1289
        %v1528 = vadd.f32 %v1526, %v1295
        %v1529 = vadd.f32 %v1527, %v1297
        %v1530 = vxor.u32 %v1528, 2147483648
        %v1531 = vxor.u32 %v1529, 2147483648
        %v1532 = vmul.f32 %v1530, 1.442695
        %v1533 = vpow.pop %v1532
        %v1534 = vmul.f32 %v1531, 1.442695
        %v1535 = vpow.pop %v1534
        %v1536 = vadd.f32 %v1533, 1.0
        %v1537 = vadd.f32 %v1535, 1.0
        %v1538 = vrcp.pop %v1536
        %v1539 = vmul.f32 1.0, %v1538
        %v1540 = vrcp.pop %v1537
        %v1541 = vmul.f32 1.0, %v1540
        %1542 = vmatprep.subr.mxu0 0.0
        %1543 = vmatpush1.msra.mxu0 %v1035
        %1544 = vmatprep.subr.mxu0 0.0
        %1545 = vmatpush1.msra.mxu0 %v1036
        %1546 = vmatprep.subr.mxu0 0.0
        %1547 = vmatpush1.msra.mxu0 0.0
        %1548 = vmatprep.subr.mxu0 0.0
        %1549 = vmatpush1.msra.mxu0 0.0
        %1550 = vmatprep.subr.mxu0 0.0
        %1551 = vmatpush1.msra.mxu0 0.0
        %1552 = vmatprep.subr.mxu0 0.0
        %1553 = vmatpush1.msra.mxu0 0.0
        %1554 = vmatprep.subr.mxu0 0.0
        %1555 = vmatpush1.msra.mxu0 0.0
        %1556 = vmatprep.subr.mxu0 0.0
        %1557 = vmatpush1.msra.mxu0 0.0
        %1558 = vmatprep.subr.mxu0 0.0
        %1559 = vmatpush1.msra.mxu0 0.0
        %1560 = vmatprep.subr.mxu0 0.0
        %1561 = vmatpush1.msra.mxu0 0.0
        %1562 = vmatprep.subr.mxu0 0.0
        %1563 = vmatpush1.msra.mxu0 0.0
        %1564 = vmatprep.subr.mxu0 0.0
        %1565 = vmatpush1.msra.mxu0 0.0
        %1566 = vmatprep.subr.mxu0 0.0
        %1567 = vmatpush1.msra.mxu0 0.0
        %1568 = vmatprep.subr.mxu0 0.0
        %1569 = vmatpush1.msra.mxu0 0.0
        %1570 = vmatprep.subr.mxu0 0.0
        %1571 = vmatpush1.msra.mxu0 0.0
        %1572 = vmatprep.subr.mxu0 0.0
        %1573 = vmatpush1.msra.mxu0 0.0
        %1574 = vmatprep.subr.mxu0 0.0
        %1575 = vmatpush1.msra.mxu0 0.0
        %1576 = vmatprep.subr.mxu0 0.0
        %1577 = vmatpush1.msra.mxu0 0.0
        %1578 = vmatprep.subr.mxu0 0.0
        %1579 = vmatpush1.msra.mxu0 0.0
        %1580 = vmatprep.subr.mxu0 0.0
        %1581 = vmatpush1.msra.mxu0 0.0
        %1582 = vmatprep.subr.mxu0 0.0
        %1583 = vmatpush1.msra.mxu0 0.0
        %1584 = vmatprep.subr.mxu0 0.0
        %1585 = vmatpush1.msra.mxu0 0.0
        %1586 = vmatprep.subr.mxu0 0.0
        %1587 = vmatpush1.msra.mxu0 0.0
        %1588 = vmatprep.subr.mxu0 0.0
        %1589 = vmatpush1.msra.mxu0 0.0
        %1590 = vmatprep.subr.mxu0 0.0
        %1591 = vmatpush1.msra.mxu0 0.0
        %1592 = vmatprep.subr.mxu0 0.0
        %1593 = vmatpush1.msra.mxu0 0.0
        %1594 = vmatprep.subr.mxu0 0.0
        %1595 = vmatpush1.msra.mxu0 0.0
        %1596 = vmatprep.subr.mxu0 0.0
        %1597 = vmatpush1.msra.mxu0 0.0
        %1598 = vmatprep.subr.mxu0 0.0
        %1599 = vmatpush1.msra.mxu0 0.0
        %1600 = vmatprep.subr.mxu0 0.0
        %1601 = vmatpush1.msra.mxu0 0.0
        %1602 = vmatprep.subr.mxu0 0.0
        %1603 = vmatpush1.msra.mxu0 0.0
        %1604 = vmatprep.subr.mxu0 0.0
        %1605 = vmatpush1.msra.mxu0 0.0
        %1606 = vmatprep.mubr.f32.mxu0 0.0
        %1607 = vmatmul.mubr.f32.gmra.mrb[0].mxu0 %v1041
        %v1608 = vpop.f32.mrb[0].mxu0
        %v1609 = vadd.f32 %v392, %v1608
        %v1610 = vpop.f32.mrb[0].mxu0
        %1611 = vdwg.mxu0
        %v1612 = vsel %vm1113, %v1609, 0.0
        %v1613 = vrot.slane %v1612, 4
        %v1614 = vadd.f32 %v1612, %v1613
        %v1615 = vrot.slane %v1614, 2
        %v1616 = vadd.f32 %v1614, %v1615
        %v1617 = vrot.slane %v1616, 1
        %v1618 = vadd.f32 %v1616, %v1617
        %v1619 = vmul.f32 %v1618, %v1121
        %v1620 = vmul.f32 %v1609, %v1609
        %v1621 = vsel %vm1113, %v1620, 0.0
        %v1622 = vrot.slane %v1621, 4
        %v1623 = vadd.f32 %v1621, %v1622
        %v1624 = vrot.slane %v1623, 2
        %v1625 = vadd.f32 %v1623, %v1624
        %v1626 = vrot.slane %v1625, 1
        %v1627 = vadd.f32 %v1625, %v1626
        %v1628 = vmul.f32 %v1627, %v1121
        %v1629 = vmul.f32 %v1619, %v1619
        %v1630 = vsub.f32 %v1628, %v1629
        %v1631 = vsub.f32 %v1609, %v1619
        %v1632 = vadd.f32 %v1630, 1e-05
        %v1633 = vrsqrt.pop %v1632
        %v1634 = vmul.f32 %v1631, %v1633
        %v1635 = vmul.f32 %v1634, %v1140
        %v1636 = vadd.f32 %v1635, %v1144
        %v1637 = vmul.f32 %v1636, 0.5
        %v1638 = vmul.f32 %v1636, 0.044715
        %v1639 = vmul.f32 %v1638, %v1636
        %v1640 = vmul.f32 %v1639, %v1636
        %v1641 = vadd.f32 %v1636, %v1640
        %v1642 = vmul.f32 %v1641, 0.7978846
        %v1643 = vtanh.pop %v1642
        %v1644 = vadd.f32 %v1643, 1.0
        %v1645 = vmul.f32 %v1637, %v1644
        %v1647 = vsel %vm1158, %v1645, 0
        %1649 = vmatprep.subr.mxu0 0.0
        %1650 = vmatpush1.msra.mxu0 %v1647
        %1651 = vmatprep.subr.mxu0 0.0
        %1652 = vmatpush1.msra.mxu0 0.0
        %1653 = vmatprep.subr.mxu0 0.0
        %1654 = vmatpush1.msra.mxu0 0.0
        %1655 = vmatprep.subr.mxu0 0.0
        %1656 = vmatpush1.msra.mxu0 0.0
        %1657 = vmatprep.subr.mxu0 0.0
        %1658 = vmatpush1.msra.mxu0 0.0
        %1659 = vmatprep.subr.mxu0 0.0
        %1660 = vmatpush1.msra.mxu0 0.0
        %1661 = vmatprep.subr.mxu0 0.0
        %1662 = vmatpush1.msra.mxu0 0.0
        %1663 = vmatprep.subr.mxu0 0.0
        %1664 = vmatpush1.msra.mxu0 0.0
        %1665 = vmatprep.subr.mxu0 0.0
        %1666 = vmatpush1.msra.mxu0 0.0
        %1667 = vmatprep.subr.mxu0 0.0
        %1668 = vmatpush1.msra.mxu0 0.0
        %1669 = vmatprep.subr.mxu0 0.0
        %1670 = vmatpush1.msra.mxu0 0.0
        %1671 = vmatprep.subr.mxu0 0.0
        %1672 = vmatpush1.msra.mxu0 0.0
        %1673 = vmatprep.subr.mxu0 0.0
        %1674 = vmatpush1.msra.mxu0 0.0
        %1675 = vmatprep.subr.mxu0 0.0
        %1676 = vmatpush1.msra.mxu0 0.0
        %1677 = vmatprep.subr.mxu0 0.0
        %1678 = vmatpush1.msra.mxu0 0.0
        %1679 = vmatprep.subr.mxu0 0.0
        %1680 = vmatpush1.msra.mxu0 0.0
        %1681 = vmatprep.subr.mxu0 0.0
        %1682 = vmatpush1.msra.mxu0 0.0
        %1683 = vmatprep.subr.mxu0 0.0
        %1684 = vmatpush1.msra.mxu0 0.0
        %1685 = vmatprep.subr.mxu0 0.0
        %1686 = vmatpush1.msra.mxu0 0.0
        %1687 = vmatprep.subr.mxu0 0.0
        %1688 = vmatpush1.msra.mxu0 0.0
        %1689 = vmatprep.subr.mxu0 0.0
        %1690 = vmatpush1.msra.mxu0 0.0
        %1691 = vmatprep.subr.mxu0 0.0
        %1692 = vmatpush1.msra.mxu0 0.0
        %1693 = vmatprep.subr.mxu0 0.0
        %1694 = vmatpush1.msra.mxu0 0.0
        %1695 = vmatprep.subr.mxu0 0.0
        %1696 = vmatpush1.msra.mxu0 0.0
        %1697 = vmatprep.subr.mxu0 0.0
        %1698 = vmatpush1.msra.mxu0 0.0
        %1699 = vmatprep.subr.mxu0 0.0
        %1700 = vmatpush1.msra.mxu0 0.0
        %1701 = vmatprep.subr.mxu0 0.0
        %1702 = vmatpush1.msra.mxu0 0.0
        %1703 = vmatprep.subr.mxu0 0.0
        %1704 = vmatpush1.msra.mxu0 0.0
        %1705 = vmatprep.subr.mxu0 0.0
        %1706 = vmatpush1.msra.mxu0 0.0
        %1707 = vmatprep.subr.mxu0 0.0
        %1708 = vmatpush1.msra.mxu0 0.0
        %1709 = vmatprep.subr.mxu0 0.0
        %1710 = vmatpush1.msra.mxu0 0.0
        %1711 = vmatprep.subr.mxu0 0.0
        %1712 = vmatpush1.msra.mxu0 0.0
        %1713 = vmatprep.mubr.f32.mxu0 0.0
        %1714 = vmatmul.mubr.f32.gmra.mrb[0].mxu0 %v1172
        %v1715 = vpop.f32.mrb[0].mxu0
        %v1716 = vadd.f32 %v1166, %v1715
        %v1717 = vpop.f32.mrb[0].mxu0
        %1718 = vmatprep.mubr.f32.mxu0 0.0
        %1719 = vmatmul.mubr.f32.gmra.mrb[0].mxu0 %v1174
        %v1720 = vpop.f32.mrb[0].mxu0
        %v1721 = vadd.f32 %v1168, %v1720
        %v1722 = vpop.f32.mrb[0].mxu0
        %1723 = vdwg.mxu0
        %v1724 = vsel %vm1254, %v1716, 0.0
        %v1725 = vsel %vm1254, %v1721, 0.0
        %v1726 = vadd.f32 %v1724, %v1725
        %v1727 = vrot.slane %v1726, 4
        %v1728 = vadd.f32 %v1726, %v1727
        %v1729 = vrot.slane %v1728, 2
        %v1730 = vadd.f32 %v1728, %v1729
        %v1731 = vrot.slane %v1730, 1
        %v1732 = vadd.f32 %v1730, %v1731
        %v1733 = vmul.f32 %v1732, %v1264
        %v1734 = vmul.f32 %v1716, %v1716
        %v1735 = vmul.f32 %v1721, %v1721
        %v1736 = vsel %vm1254, %v1734, 0.0
        %v1737 = vsel %vm1254, %v1735, 0.0
        %v1738 = vadd.f32 %v1736, %v1737
        %v1739 = vrot.slane %v1738, 4
        %v1740 = vadd.f32 %v1738, %v1739
        %v1741 = vrot.slane %v1740, 2
        %v1742 = vadd.f32 %v1740, %v1741
        %v1743 = vrot.slane %v1742, 1
        %v1744 = vadd.f32 %v1742, %v1743
        %v1745 = vmul.f32 %v1744, %v1264
        %v1746 = vmul.f32 %v1733, %v1733
        %v1747 = vsub.f32 %v1745, %v1746
        %v1748 = vsub.f32 %v1716, %v1733
        %v1749 = vsub.f32 %v1721, %v1733
        %v1750 = vadd.f32 %v1747, 1e-05
        %v1751 = vrsqrt.pop %v1750
        %v1752 = vmul.f32 %v1748, %v1751
        %v1753 = vmul.f32 %v1749, %v1751
        %v1754 = vmul.f32 %v1752, %v1287
        %v1755 = vmul.f32 %v1753, %v1289
        %v1756 = vadd.f32 %v1754, %v1295
        %v1757 = vadd.f32 %v1755, %v1297
        %v1758 = vxor.u32 %v1756, 2147483648
        %v1759 = vxor.u32 %v1757, 2147483648
        %v1760 = vmul.f32 %v1758, 1.442695
        %v1761 = vpow.pop %v1760
        %v1762 = vmul.f32 %v1759, 1.442695
        %v1763 = vpow.pop %v1762
        %v1764 = vadd.f32 %v1761, 1.0
        %v1765 = vadd.f32 %v1763, 1.0
        %v1766 = vrcp.pop %v1764
        %v1767 = vmul.f32 1.0, %v1766
        %v1768 = vrcp.pop %v1765
        %v1769 = vmul.f32 1.0, %v1768
        %1770 = vmatprep.subr.mxu0 0.0
        %1771 = vmatpush1.msra.mxu0 %v1037
        %1772 = vmatprep.subr.mxu0 0.0
        %1773 = vmatpush1.msra.mxu0 %v1038
        %1774 = vmatprep.subr.mxu0 0.0
        %1775 = vmatpush1.msra.mxu0 0.0
        %1776 = vmatprep.subr.mxu0 0.0
        %1777 = vmatpush1.msra.mxu0 0.0
        %1778 = vmatprep.subr.mxu0 0.0
        %1779 = vmatpush1.msra.mxu0 0.0
        %1780 = vmatprep.subr.mxu0 0.0
        %1781 = vmatpush1.msra.mxu0 0.0
        %1782 = vmatprep.subr.mxu0 0.0
        %1783 = vmatpush1.msra.mxu0 0.0
        %1784 = vmatprep.subr.mxu0 0.0
        %1785 = vmatpush1.msra.mxu0 0.0
        %1786 = vmatprep.subr.mxu0 0.0
        %1787 = vmatpush1.msra.mxu0 0.0
        %1788 = vmatprep.subr.mxu0 0.0
        %1789 = vmatpush1.msra.mxu0 0.0
        %1790 = vmatprep.subr.mxu0 0.0
        %1791 = vmatpush1.msra.mxu0 0.0
        %1792 = vmatprep.subr.mxu0 0.0
        %1793 = vmatpush1.msra.mxu0 0.0
        %1794 = vmatprep.subr.mxu0 0.0
        %1795 = vmatpush1.msra.mxu0 0.0
        %1796 = vmatprep.subr.mxu0 0.0
        %1797 = vmatpush1.msra.mxu0 0.0
        %1798 = vmatprep.subr.mxu0 0.0
        %1799 = vmatpush1.msra.mxu0 0.0
        %1800 = vmatprep.subr.mxu0 0.0
        %1801 = vmatpush1.msra.mxu0 0.0
        %1802 = vmatprep.subr.mxu0 0.0
        %1803 = vmatpush1.msra.mxu0 0.0
        %1804 = vmatprep.subr.mxu0 0.0
        %1805 = vmatpush1.msra.mxu0 0.0
        %1806 = vmatprep.subr.mxu0 0.0
        %1807 = vmatpush1.msra.mxu0 0.0
        %1808 = vmatprep.subr.mxu0 0.0
        %1809 = vmatpush1.msra.mxu0 0.0
        %1810 = vmatprep.subr.mxu0 0.0
        %1811 = vmatpush1.msra.mxu0 0.0
        %1812 = vmatprep.subr.mxu0 0.0
        %1813 = vmatpush1.msra.mxu0 0.0
        %1814 = vmatprep.subr.mxu0 0.0
        %1815 = vmatpush1.msra.mxu0 0.0
        %1816 = vmatprep.subr.mxu0 0.0
        %1817 = vmatpush1.msra.mxu0 0.0
        %1818 = vmatprep.subr.mxu0 0.0
        %1819 = vmatpush1.msra.mxu0 0.0
        %1820 = vmatprep.subr.mxu0 0.0
        %1821 = vmatpush1.msra.mxu0 0.0
        %1822 = vmatprep.subr.mxu0 0.0
        %1823 = vmatpush1.msra.mxu0 0.0
        %1824 = vmatprep.subr.mxu0 0.0
        %1825 = vmatpush1.msra.mxu0 0.0
        %1826 = vmatprep.subr.mxu0 0.0
        %1827 = vmatpush1.msra.mxu0 0.0
        %1828 = vmatprep.subr.mxu0 0.0
        %1829 = vmatpush1.msra.mxu0 0.0
        %1830 = vmatprep.subr.mxu0 0.0
        %1831 = vmatpush1.msra.mxu0 0.0
        %1832 = vmatprep.subr.mxu0 0.0
        %1833 = vmatpush1.msra.mxu0 0.0
        %1834 = vmatprep.mubr.f32.mxu0 0.0
        %1835 = vmatmul.mubr.f32.gmra.mrb[0].mxu0 %v1041
        %v1836 = vpop.f32.mrb[0].mxu0
        %v1837 = vadd.f32 %v392, %v1836
        %v1838 = vpop.f32.mrb[0].mxu0
        %1839 = vdwg.mxu0
        %v1840 = vsel %vm1113, %v1837, 0.0
        %v1841 = vrot.slane %v1840, 4
        %v1842 = vadd.f32 %v1840, %v1841
        %v1843 = vrot.slane %v1842, 2
        %v1844 = vadd.f32 %v1842, %v1843
        %v1845 = vrot.slane %v1844, 1
        %v1846 = vadd.f32 %v1844, %v1845
        %v1847 = vmul.f32 %v1846, %v1121
        %v1848 = vmul.f32 %v1837, %v1837
        %v1849 = vsel %vm1113, %v1848, 0.0
        %v1850 = vrot.slane %v1849, 4
        %v1851 = vadd.f32 %v1849, %v1850
        %v1852 = vrot.slane %v1851, 2
        %v1853 = vadd.f32 %v1851, %v1852
        %v1854 = vrot.slane %v1853, 1
        %v1855 = vadd.f32 %v1853, %v1854
        %v1856 = vmul.f32 %v1855, %v1121
        %v1857 = vmul.f32 %v1847, %v1847
        %v1858 = vsub.f32 %v1856, %v1857
        %v1859 = vsub.f32 %v1837, %v1847
        %v1860 = vadd.f32 %v1858, 1e-05
        %v1861 = vrsqrt.pop %v1860
        %v1862 = vmul.f32 %v1859, %v1861
        %v1863 = vmul.f32 %v1862, %v1140
        %v1864 = vadd.f32 %v1863, %v1144
        %v1865 = vmul.f32 %v1864, 0.5
        %v1866 = vmul.f32 %v1864, 0.044715
        %v1867 = vmul.f32 %v1866, %v1864
        %v1868 = vmul.f32 %v1867, %v1864
        %v1869 = vadd.f32 %v1864, %v1868
        %v1870 = vmul.f32 %v1869, 0.7978846
        %v1871 = vtanh.pop %v1870
        %v1872 = vadd.f32 %v1871, 1.0
        %v1873 = vmul.f32 %v1865, %v1872
        %v1875 = vsel %vm1158, %v1873, 0
        %1877 = vmatprep.subr.mxu0 0.0
        %1878 = vmatpush1.msra.mxu0 %v1875
        %1879 = vmatprep.subr.mxu0 0.0
        %1880 = vmatpush1.msra.mxu0 0.0
        %1881 = vmatprep.subr.mxu0 0.0
        %1882 = vmatpush1.msra.mxu0 0.0
        %1883 = vmatprep.subr.mxu0 0.0
        %1884 = vmatpush1.msra.mxu0 0.0
        %1885 = vmatprep.subr.mxu0 0.0
        %1886 = vmatpush1.msra.mxu0 0.0
        %1887 = vmatprep.subr.mxu0 0.0
        %1888 = vmatpush1.msra.mxu0 0.0
        %1889 = vmatprep.subr.mxu0 0.0
        %1890 = vmatpush1.msra.mxu0 0.0
        %1891 = vmatprep.subr.mxu0 0.0
        %1892 = vmatpush1.msra.mxu0 0.0
        %1893 = vmatprep.subr.mxu0 0.0
        %1894 = vmatpush1.msra.mxu0 0.0
        %1895 = vmatprep.subr.mxu0 0.0
        %1896 = vmatpush1.msra.mxu0 0.0
        %1897 = vmatprep.subr.mxu0 0.0
        %1898 = vmatpush1.msra.mxu0 0.0
        %1899 = vmatprep.subr.mxu0 0.0
        %1900 = vmatpush1.msra.mxu0 0.0
        %1901 = vmatprep.subr.mxu0 0.0
        %1902 = vmatpush1.msra.mxu0 0.0
        %1903 = vmatprep.subr.mxu0 0.0
        %1904 = vmatpush1.msra.mxu0 0.0
        %1905 = vmatprep.subr.mxu0 0.0
        %1906 = vmatpush1.msra.mxu0 0.0
        %1907 = vmatprep.subr.mxu0 0.0
        %1908 = vmatpush1.msra.mxu0 0.0
        %1909 = vmatprep.subr.mxu0 0.0
        %1910 = vmatpush1.msra.mxu0 0.0
        %1911 = vmatprep.subr.mxu0 0.0
        %1912 = vmatpush1.msra.mxu0 0.0
        %1913 = vmatprep.subr.mxu0 0.0
        %1914 = vmatpush1.msra.mxu0 0.0
        %1915 = vmatprep.subr.mxu0 0.0
        %1916 = vmatpush1.msra.mxu0 0.0
        %1917 = vmatprep.subr.mxu0 0.0
        %1918 = vmatpush1.msra.mxu0 0.0
        %1919 = vmatprep.subr.mxu0 0.0
        %1920 = vmatpush1.msra.mxu0 0.0
        %1921 = vmatprep.subr.mxu0 0.0
        %1922 = vmatpush1.msra.mxu0 0.0
        %1923 = vmatprep.subr.mxu0 0.0
        %1924 = vmatpush1.msra.mxu0 0.0
        %1925 = vmatprep.subr.mxu0 0.0
        %1926 = vmatpush1.msra.mxu0 0.0
        %1927 = vmatprep.subr.mxu0 0.0
        %1928 = vmatpush1.msra.mxu0 0.0
        %1929 = vmatprep.subr.mxu0 0.0
        %1930 = vmatpush1.msra.mxu0 0.0
        %1931 = vmatprep.subr.mxu0 0.0
        %1932 = vmatpush1.msra.mxu0 0.0
        %1933 = vmatprep.subr.mxu0 0.0
        %1934 = vmatpush1.msra.mxu0 0.0
        %1935 = vmatprep.subr.mxu0 0.0
        %1936 = vmatpush1.msra.mxu0 0.0
        %1937 = vmatprep.subr.mxu0 0.0
        %1938 = vmatpush1.msra.mxu0 0.0
        %1939 = vmatprep.subr.mxu0 0.0
        %1940 = vmatpush1.msra.mxu0 0.0
        %1941 = vmatprep.mubr.f32.mxu0 0.0
        %1942 = vmatmul.mubr.f32.gmra.mrb[0].mxu0 %v1172
        %v1943 = vpop.f32.mrb[0].mxu0
        %v1944 = vadd.f32 %v1166, %v1943
        %v1945 = vpop.f32.mrb[0].mxu0
        %1946 = vmatprep.mubr.f32.mxu0 0.0
        %1947 = vmatmul.mubr.f32.gmra.mrb[0].mxu0 %v1174
        %v1948 = vpop.f32.mrb[0].mxu0
        %v1949 = vadd.f32 %v1168, %v1948
        %v1950 = vpop.f32.mrb[0].mxu0
        %1951 = vdwg.mxu0
        %v1952 = vsel %vm1254, %v1944, 0.0
        %v1953 = vsel %vm1254, %v1949, 0.0
        %v1954 = vadd.f32 %v1952, %v1953
        %v1955 = vrot.slane %v1954, 4
        %v1956 = vadd.f32 %v1954, %v1955
        %v1957 = vrot.slane %v1956, 2
        %v1958 = vadd.f32 %v1956, %v1957
        %v1959 = vrot.slane %v1958, 1
        %v1960 = vadd.f32 %v1958, %v1959
        %v1961 = vmul.f32 %v1960, %v1264
        %v1962 = vmul.f32 %v1944, %v1944
        %v1963 = vmul.f32 %v1949, %v1949
        %v1964 = vsel %vm1254, %v1962, 0.0
        %v1965 = vsel %vm1254, %v1963, 0.0
        %v1966 = vadd.f32 %v1964, %v1965
        %v1967 = vrot.slane %v1966, 4
        %v1968 = vadd.f32 %v1966, %v1967
        %v1969 = vrot.slane %v1968, 2
        %v1970 = vadd.f32 %v1968, %v1969
        %v1971 = vrot.slane %v1970, 1
        %v1972 = vadd.f32 %v1970, %v1971
        %v1973 = vmul.f32 %v1972, %v1264
        %v1974 = vmul.f32 %v1961, %v1961
        %v1975 = vsub.f32 %v1973, %v1974
        %v1976 = vsub.f32 %v1944, %v1961
        %v1977 = vsub.f32 %v1949, %v1961
        %v1978 = vadd.f32 %v1975, 1e-05
        %v1979 = vrsqrt.pop %v1978
        %v1980 = vmul.f32 %v1976, %v1979
        %v1981 = vmul.f32 %v1977, %v1979
        %v1982 = vmul.f32 %v1980, %v1287
        %v1983 = vmul.f32 %v1981, %v1289
        %v1984 = vadd.f32 %v1982, %v1295
        %v1985 = vadd.f32 %v1983, %v1297
        %v1986 = vxor.u32 %v1984, 2147483648
        %v1987 = vxor.u32 %v1985, 2147483648
        %v1988 = vmul.f32 %v1986, 1.442695
        %v1989 = vpow.pop %v1988
        %v1990 = vmul.f32 %v1987, 1.442695
        %v1991 = vpow.pop %v1990
        %v1992 = vadd.f32 %v1989, 1.0
        %v1993 = vadd.f32 %v1991, 1.0
        %v1994 = vrcp.pop %v1992
        %v1995 = vmul.f32 1.0, %v1994
        %v1996 = vrcp.pop %v1993
        %v1997 = vmul.f32 1.0, %v1996
        %v1998 = vmul.f32 %v328, %v1000
        %v1999 = vmul.f32 %v329, %v1002
        %v2000 = vmul.f32 %v330, %v1004
        %v2001 = vmul.f32 %v331, %v1006
        %v2002 = vmul.f32 %v332, %v1008
        %v2003 = vmul.f32 %v333, %v1010
        %v2004 = vmul.f32 %v334, %v1012
        %v2005 = vmul.f32 %v335, %v1014
        %v2006 = vmul.f32 %v336, %v1000
        %v2007 = vmul.f32 %v337, %v1002
        %v2008 = vmul.f32 %v338, %v1004
        %v2009 = vmul.f32 %v339, %v1006
        %v2010 = vmul.f32 %v340, %v1008
        %v2011 = vmul.f32 %v341, %v1010
        %v2012 = vmul.f32 %v342, %v1012
        %v2013 = vmul.f32 %v343, %v1014
        %v2014 = vsub.f32 %v336, %v2006
        %v2015 = vsub.f32 %v337, %v2007
        %v2016 = vsub.f32 %v338, %v2008
        %v2017 = vsub.f32 %v339, %v2009
        %v2018 = vsub.f32 %v340, %v2010
        %v2019 = vsub.f32 %v341, %v2011
        %v2020 = vsub.f32 %v342, %v2012
        %v2021 = vsub.f32 %v343, %v2013
        %v2022 = vsub.f32 %v1998, %v2014
        %v2023 = vsub.f32 %v1999, %v2015
        %v2024 = vsub.f32 %v2000, %v2016
        %v2025 = vsub.f32 %v2001, %v2017
        %v2026 = vsub.f32 %v2002, %v2018
        %v2027 = vsub.f32 %v2003, %v2019
        %v2028 = vsub.f32 %v2004, %v2020
        %v2029 = vsub.f32 %v2005, %v2021
        %2031 = vset.pattern.permute.xlu0 0
        %2032 = vperm.xlu0 %2031, %v1311
        %v2033 = vpop.permute.xlu0 %2032
        %2036 = vset.pattern.permute.xlu0 0
        %2037 = vperm.xlu0 %2036, %v1313
        %v2038 = vpop.permute.xlu0 %2037
        %2041 = vset.pattern.permute.xlu0 0
        %2042 = vperm.xlu0 %2041, %v1539
        %v2043 = vpop.permute.xlu0 %2042
        %2046 = vset.pattern.permute.xlu0 0
        %2047 = vperm.xlu0 %2046, %v1541
        %v2048 = vpop.permute.xlu0 %2047
        %2051 = vset.pattern.permute.xlu0 0
        %2052 = vperm.xlu0 %2051, %v1767
        %v2053 = vpop.permute.xlu0 %2052
        %2056 = vset.pattern.permute.xlu0 0
        %2057 = vperm.xlu0 %2056, %v1769
        %v2058 = vpop.permute.xlu0 %2057
        %2061 = vset.pattern.permute.xlu0 0
        %2062 = vperm.xlu0 %2061, %v1995
        %v2063 = vpop.permute.xlu0 %2062
        %2066 = vset.pattern.permute.xlu0 0
        %2067 = vperm.xlu0 %2066, %v1997
        %v2068 = vpop.permute.xlu0 %2067
        %v2070 = vmul.f32 %v2033, %v2022
        %v2071 = vmul.f32 %v2038, %v2023
        %v2072 = vmul.f32 %v2043, %v2024
        %v2073 = vmul.f32 %v2048, %v2025
        %v2074 = vmul.f32 %v2053, %v2026
        %v2075 = vmul.f32 %v2058, %v2027
        %v2076 = vmul.f32 %v2063, %v2028
        %v2077 = vmul.f32 %v2068, %v2029
        %v2078 = vadd.f32 %v2014, %v2070
        %v2079 = vadd.f32 %v2015, %v2071
        %v2080 = vadd.f32 %v2016, %v2072
        %v2081 = vadd.f32 %v2017, %v2073
        %v2082 = vadd.f32 %v2018, %v2074
        %v2083 = vadd.f32 %v2019, %v2075
        %v2084 = vadd.f32 %v2020, %v2076
        %v2085 = vadd.f32 %v2021, %v2077
        %v2086 = vpack.c.bf16 %v2079, %v2078
        %v2087 = vpack.c.bf16 %v2081, %v2080
        %v2088 = vpack.c.bf16 %v2083, %v2082
        %v2089 = vpack.c.bf16 %v2085, %v2084
        %v2090 = vlaneseq
        %v2091 = vshrl.u32 %v2090, 7
        %v2092 = vsub.s32 0, %v2091
        %v2093 = vrot.slane %v391, %v2092
        %v2110 = vunpack.c.l.b16 %v364
        %v2111 = vunpack.c.l.b16 %v365
        %v2112 = vunpack.c.l.b16 %v366
        %v2113 = vunpack.c.l.b16 %v367
        %v2114 = vunpack.c.l.b16 %v368
        %v2115 = vunpack.c.l.b16 %v369
        %v2116 = vunpack.c.l.b16 %v370
        %v2117 = vunpack.c.l.b16 %v371
        %v2118 = vunpack.c.l.b16 %v372
        %v2119 = vunpack.c.l.b16 %v373
        %v2120 = vunpack.c.l.b16 %v374
        %v2121 = vunpack.c.l.b16 %v375
        %v2122 = vunpack.c.l.b16 %v376
        %v2123 = vunpack.c.l.b16 %v377
        %v2124 = vunpack.c.l.b16 %v378
        %v2125 = vunpack.c.l.b16 %v379
        %v2126 = vpack.c.b16 %v2111, %v2110
        %v2127 = vpack.c.b16 %v2113, %v2112
        %v2128 = vpack.c.b16 %v2115, %v2114
        %v2129 = vpack.c.b16 %v2117, %v2116
        %v2130 = vpack.c.b16 %v2119, %v2118
        %v2131 = vpack.c.b16 %v2121, %v2120
        %v2132 = vpack.c.b16 %v2123, %v2122
        %v2133 = vpack.c.b16 %v2125, %v2124
        %2142 = vmatprep.subr.bf16.mxu0 0
        %2143 = vmatpush1.bf16.msra.mxu0 %v2126
        %2144 = vmatprep.subr.bf16.mxu0 0
        %2145 = vmatpush1.bf16.msra.mxu0 %v2127
        %2146 = vmatprep.subr.bf16.mxu0 0
        %2147 = vmatpush1.bf16.msra.mxu0 %v2128
        %2148 = vmatprep.subr.bf16.mxu0 0
        %2149 = vmatpush1.bf16.msra.mxu0 %v2129
        %2150 = vmatprep.subr.bf16.mxu0 0
        %2151 = vmatpush1.bf16.msra.mxu0 %v2130
        %2152 = vmatprep.subr.bf16.mxu0 0
        %2153 = vmatpush1.bf16.msra.mxu0 %v2131
        %2154 = vmatprep.subr.bf16.mxu0 0
        %2155 = vmatpush1.bf16.msra.mxu0 %v2132
        %2156 = vmatprep.subr.bf16.mxu0 0
        %2157 = vmatpush1.bf16.msra.mxu0 %v2133
        %2158 = vmatprep.subr.bf16.mxu0 0
        %2159 = vmatpush1.bf16.msra.mxu0 0
        %2160 = vmatprep.subr.bf16.mxu0 0
        %2161 = vmatpush1.bf16.msra.mxu0 0
        %2162 = vmatprep.subr.bf16.mxu0 0
        %2163 = vmatpush1.bf16.msra.mxu0 0
        %2164 = vmatprep.subr.bf16.mxu0 0
        %2165 = vmatpush1.bf16.msra.mxu0 0
        %2166 = vmatprep.subr.bf16.mxu0 0
        %2167 = vmatpush1.bf16.msra.mxu0 0
        %2168 = vmatprep.subr.bf16.mxu0 0
        %2169 = vmatpush1.bf16.msra.mxu0 0
        %2170 = vmatprep.subr.bf16.mxu0 0
        %2171 = vmatpush1.bf16.msra.mxu0 0
        %2172 = vmatprep.subr.bf16.mxu0 0
        %2173 = vmatpush1.bf16.msra.mxu0 0
        %2174 = vmatprep.mubr.bf16.mxu0 0
        %2175 = vmatmul.mubr.bf16.gmra.mrb[0].mxu0 %v2086
        %v2176 = vpop.f32.mrb[0].mxu0
        %v2177 = vadd.f32 %v2093, %v2176
        %v2178 = vpop.f32.mrb[0].mxu0
        %v2179 = vpop.f32.mrb[0].mxu0
        %v2180 = vadd.f32 %v2093, %v2179
        %v2181 = vpop.f32.mrb[0].mxu0
        %2182 = vmatprep.mubr.bf16.mxu0 0
        %2183 = vmatmul.mubr.bf16.gmra.mrb[0].mxu0 %v2087
        %v2184 = vpop.f32.mrb[0].mxu0
        %v2185 = vadd.f32 %v2093, %v2184
        %v2186 = vpop.f32.mrb[0].mxu0
        %v2187 = vpop.f32.mrb[0].mxu0
        %v2188 = vadd.f32 %v2093, %v2187
        %v2189 = vpop.f32.mrb[0].mxu0
        %2190 = vmatprep.mubr.bf16.mxu0 0
        %2191 = vmatmul.mubr.bf16.gmra.mrb[0].mxu0 %v2088
        %v2192 = vpop.f32.mrb[0].mxu0
        %v2193 = vadd.f32 %v2093, %v2192
        %v2194 = vpop.f32.mrb[0].mxu0
        %v2195 = vpop.f32.mrb[0].mxu0
        %v2196 = vadd.f32 %v2093, %v2195
        %v2197 = vpop.f32.mrb[0].mxu0
        %2198 = vmatprep.mubr.bf16.mxu0 0
        %2199 = vmatmul.mubr.bf16.gmra.mrb[0].mxu0 %v2089
        %v2200 = vpop.f32.mrb[0].mxu0
        %v2201 = vadd.f32 %v2093, %v2200
        %v2202 = vpop.f32.mrb[0].mxu0
        %v2203 = vpop.f32.mrb[0].mxu0
        %v2204 = vadd.f32 %v2093, %v2203
        %v2205 = vpop.f32.mrb[0].mxu0
        %2206 = vdwg.mxu0
        %v2207 = vsel %vm523, %v2177, 0.0
        %2208 = vadd.xlane.f32.xlu0 %v2207
        %v2209 = vpop.xlane.xlu0 %2208
        %v2210 = vsel %vm523, %v2180, 0.0
        %2211 = vadd.xlane.f32.xlu0 %v2210
        %v2212 = vpop.xlane.xlu0 %2211
        %v2213 = vsel %vm523, %v2185, 0.0
        %2214 = vadd.xlane.f32.xlu0 %v2213
        %v2215 = vpop.xlane.xlu0 %2214
        %v2216 = vsel %vm523, %v2188, 0.0
        %2217 = vadd.xlane.f32.xlu0 %v2216
        %v2218 = vpop.xlane.xlu0 %2217
        %v2219 = vsel %vm523, %v2193, 0.0
        %2220 = vadd.xlane.f32.xlu0 %v2219
        %v2221 = vpop.xlane.xlu0 %2220
        %v2222 = vsel %vm523, %v2196, 0.0
        %2223 = vadd.xlane.f32.xlu0 %v2222
        %v2224 = vpop.xlane.xlu0 %2223
        %v2225 = vsel %vm523, %v2201, 0.0
        %2226 = vadd.xlane.f32.xlu0 %v2225
        %v2227 = vpop.xlane.xlu0 %2226
        %v2228 = vsel %vm523, %v2204, 0.0
        %2229 = vadd.xlane.f32.xlu0 %v2228
        %v2230 = vpop.xlane.xlu0 %2229
        %v2231 = vmul.f32 %v2209, %v548
        %v2232 = vmul.f32 %v2212, %v548
        %v2233 = vmul.f32 %v2215, %v548
        %v2234 = vmul.f32 %v2218, %v548
        %v2235 = vmul.f32 %v2221, %v548
        %v2236 = vmul.f32 %v2224, %v548
        %v2237 = vmul.f32 %v2227, %v548
        %v2238 = vmul.f32 %v2230, %v548
        %v2239 = vmul.f32 %v2177, %v2177
        %v2240 = vmul.f32 %v2180, %v2180
        %v2241 = vmul.f32 %v2185, %v2185
        %v2242 = vmul.f32 %v2188, %v2188
        %v2243 = vmul.f32 %v2193, %v2193
        %v2244 = vmul.f32 %v2196, %v2196
        %v2245 = vmul.f32 %v2201, %v2201
        %v2246 = vmul.f32 %v2204, %v2204
        %v2247 = vsel %vm523, %v2239, 0.0
        %2248 = vadd.xlane.f32.xlu0 %v2247
        %v2249 = vpop.xlane.xlu0 %2248
        %v2250 = vsel %vm523, %v2240, 0.0
        %2251 = vadd.xlane.f32.xlu0 %v2250
        %v2252 = vpop.xlane.xlu0 %2251
        %v2253 = vsel %vm523, %v2241, 0.0
        %2254 = vadd.xlane.f32.xlu0 %v2253
        %v2255 = vpop.xlane.xlu0 %2254
        %v2256 = vsel %vm523, %v2242, 0.0
        %2257 = vadd.xlane.f32.xlu0 %v2256
        %v2258 = vpop.xlane.xlu0 %2257
        %v2259 = vsel %vm523, %v2243, 0.0
        %2260 = vadd.xlane.f32.xlu0 %v2259
        %v2261 = vpop.xlane.xlu0 %2260
        %v2262 = vsel %vm523, %v2244, 0.0
        %2263 = vadd.xlane.f32.xlu0 %v2262
        %v2264 = vpop.xlane.xlu0 %2263
        %v2265 = vsel %vm523, %v2245, 0.0
        %2266 = vadd.xlane.f32.xlu0 %v2265
        %v2267 = vpop.xlane.xlu0 %2266
        %v2268 = vsel %vm523, %v2246, 0.0
        %2269 = vadd.xlane.f32.xlu0 %v2268
        %v2270 = vpop.xlane.xlu0 %2269
        %v2271 = vmul.f32 %v2249, %v548
        %v2272 = vmul.f32 %v2252, %v548
        %v2273 = vmul.f32 %v2255, %v548
        %v2274 = vmul.f32 %v2258, %v548
        %v2275 = vmul.f32 %v2261, %v548
        %v2276 = vmul.f32 %v2264, %v548
        %v2277 = vmul.f32 %v2267, %v548
        %v2278 = vmul.f32 %v2270, %v548
        %v2279 = vmul.f32 %v2231, %v2231
        %v2280 = vmul.f32 %v2232, %v2232
        %v2281 = vmul.f32 %v2233, %v2233
        %v2282 = vmul.f32 %v2234, %v2234
        %v2283 = vmul.f32 %v2235, %v2235
        %v2284 = vmul.f32 %v2236, %v2236
        %v2285 = vmul.f32 %v2237, %v2237
        %v2286 = vmul.f32 %v2238, %v2238
        %v2287 = vsub.f32 %v2271, %v2279
        %v2288 = vsub.f32 %v2272, %v2280
        %v2289 = vsub.f32 %v2273, %v2281
        %v2290 = vsub.f32 %v2274, %v2282
        %v2291 = vsub.f32 %v2275, %v2283
        %v2292 = vsub.f32 %v2276, %v2284
        %v2293 = vsub.f32 %v2277, %v2285
        %v2294 = vsub.f32 %v2278, %v2286
        %v2295 = vsub.f32 %v2177, %v2231
        %v2296 = vsub.f32 %v2180, %v2232
        %v2297 = vsub.f32 %v2185, %v2233
        %v2298 = vsub.f32 %v2188, %v2234
        %v2299 = vsub.f32 %v2193, %v2235
        %v2300 = vsub.f32 %v2196, %v2236
        %v2301 = vsub.f32 %v2201, %v2237
        %v2302 = vsub.f32 %v2204, %v2238
        %v2303 = vadd.f32 %v2287, 1e-05
        %v2304 = vadd.f32 %v2288, 1e-05
        %v2305 = vadd.f32 %v2289, 1e-05
        %v2306 = vadd.f32 %v2290, 1e-05
        %v2307 = vadd.f32 %v2291, 1e-05
        %v2308 = vadd.f32 %v2292, 1e-05
        %v2309 = vadd.f32 %v2293, 1e-05
        %v2310 = vadd.f32 %v2294, 1e-05
        %v2311 = vrsqrt.pop %v2303
        %v2312 = vrsqrt.pop %v2304
        %v2313 = vrsqrt.pop %v2305
        %v2314 = vrsqrt.pop %v2306
        %v2315 = vrsqrt.pop %v2307
        %v2316 = vrsqrt.pop %v2308
        %v2317 = vrsqrt.pop %v2309
        %v2318 = vrsqrt.pop %v2310
        %v2319 = vmul.f32 %v2295, %v2311
        %v2320 = vmul.f32 %v2296, %v2312
        %v2321 = vmul.f32 %v2297, %v2313
        %v2322 = vmul.f32 %v2298, %v2314
        %v2323 = vmul.f32 %v2299, %v2315
        %v2324 = vmul.f32 %v2300, %v2316
        %v2325 = vmul.f32 %v2301, %v2317
        %v2326 = vmul.f32 %v2302, %v2318
        %v2327 = vlaneseq
        %v2328 = vshrl.u32 %v2327, 7
        %v2329 = vsub.s32 1, %v2328
        %v2330 = vrot.slane %v391, %v2329
        %v2331 = vmul.f32 %v2319, %v2330
        %v2332 = vmul.f32 %v2320, %v2330
        %v2333 = vmul.f32 %v2321, %v2330
        %v2334 = vmul.f32 %v2322, %v2330
        %v2335 = vmul.f32 %v2323, %v2330
        %v2336 = vmul.f32 %v2324, %v2330
        %v2337 = vmul.f32 %v2325, %v2330
        %v2338 = vmul.f32 %v2326, %v2330
        %v2339 = vlaneseq
        %v2340 = vshrl.u32 %v2339, 7
        %v2341 = vsub.s32 2, %v2340
        %v2342 = vrot.slane %v391, %v2341
        %v2343 = vadd.f32 %v2331, %v2342
        %v2344 = vadd.f32 %v2332, %v2342
        %v2345 = vadd.f32 %v2333, %v2342
        %v2346 = vadd.f32 %v2334, %v2342
        %v2347 = vadd.f32 %v2335, %v2342
        %v2348 = vadd.f32 %v2336, %v2342
        %v2349 = vadd.f32 %v2337, %v2342
        %v2350 = vadd.f32 %v2338, %v2342
        %v2351 = vmul.f32 %v2343, 0.5
        %v2352 = vmul.f32 %v2344, 0.5
        %v2353 = vmul.f32 %v2345, 0.5
        %v2354 = vmul.f32 %v2346, 0.5
        %v2355 = vmul.f32 %v2347, 0.5
        %v2356 = vmul.f32 %v2348, 0.5
        %v2357 = vmul.f32 %v2349, 0.5
        %v2358 = vmul.f32 %v2350, 0.5
        %v2359 = vmul.f32 %v2343, 0.044715
        %v2360 = vmul.f32 %v2344, 0.044715
        %v2361 = vmul.f32 %v2345, 0.044715
        %v2362 = vmul.f32 %v2346, 0.044715
        %v2363 = vmul.f32 %v2347, 0.044715
        %v2364 = vmul.f32 %v2348, 0.044715
        %v2365 = vmul.f32 %v2349, 0.044715
        %v2366 = vmul.f32 %v2350, 0.044715
        %v2367 = vmul.f32 %v2359, %v2343
        %v2368 = vmul.f32 %v2360, %v2344
        %v2369 = vmul.f32 %v2361, %v2345
        %v2370 = vmul.f32 %v2362, %v2346
        %v2371 = vmul.f32 %v2363, %v2347
        %v2372 = vmul.f32 %v2364, %v2348
        %v2373 = vmul.f32 %v2365, %v2349
        %v2374 = vmul.f32 %v2366, %v2350
        %v2375 = vmul.f32 %v2367, %v2343
        %v2376 = vmul.f32 %v2368, %v2344
        %v2377 = vmul.f32 %v2369, %v2345
        %v2378 = vmul.f32 %v2370, %v2346
        %v2379 = vmul.f32 %v2371, %v2347
        %v2380 = vmul.f32 %v2372, %v2348
        %v2381 = vmul.f32 %v2373, %v2349
        %v2382 = vmul.f32 %v2374, %v2350
        %v2383 = vadd.f32 %v2343, %v2375
        %v2384 = vadd.f32 %v2344, %v2376
        %v2385 = vadd.f32 %v2345, %v2377
        %v2386 = vadd.f32 %v2346, %v2378
        %v2387 = vadd.f32 %v2347, %v2379
        %v2388 = vadd.f32 %v2348, %v2380
        %v2389 = vadd.f32 %v2349, %v2381
        %v2390 = vadd.f32 %v2350, %v2382
        %v2391 = vmul.f32 %v2383, 0.7978846
        %v2392 = vmul.f32 %v2384, 0.7978846
        %v2393 = vmul.f32 %v2385, 0.7978846
        %v2394 = vmul.f32 %v2386, 0.7978846
        %v2395 = vmul.f32 %v2387, 0.7978846
        %v2396 = vmul.f32 %v2388, 0.7978846
        %v2397 = vmul.f32 %v2389, 0.7978846
        %v2398 = vmul.f32 %v2390, 0.7978846
        %v2399 = vtanh.pop %v2391
        %v2400 = vtanh.pop %v2392
        %v2401 = vtanh.pop %v2393
        %v2402 = vtanh.pop %v2394
        %v2403 = vtanh.pop %v2395
        %v2404 = vtanh.pop %v2396
        %v2405 = vtanh.pop %v2397
        %v2406 = vtanh.pop %v2398
        %v2407 = vadd.f32 %v2399, 1.0
        %v2408 = vadd.f32 %v2400, 1.0
        %v2409 = vadd.f32 %v2401, 1.0
        %v2410 = vadd.f32 %v2402, 1.0
        %v2411 = vadd.f32 %v2403, 1.0
        %v2412 = vadd.f32 %v2404, 1.0
        %v2413 = vadd.f32 %v2405, 1.0
        %v2414 = vadd.f32 %v2406, 1.0
        %v2415 = vmul.f32 %v2351, %v2407
        %v2416 = vmul.f32 %v2352, %v2408
        %v2417 = vmul.f32 %v2353, %v2409
        %v2418 = vmul.f32 %v2354, %v2410
        %v2419 = vmul.f32 %v2355, %v2411
        %v2420 = vmul.f32 %v2356, %v2412
        %v2421 = vmul.f32 %v2357, %v2413
        %v2422 = vmul.f32 %v2358, %v2414
        %v2423 = vpack.c.bf16 %v2416, %v2415
        %v2424 = vpack.c.bf16 %v2418, %v2417
        %v2425 = vpack.c.bf16 %v2420, %v2419
        %v2426 = vpack.c.bf16 %v2422, %v2421
        %v2427 = vlaneseq
        %v2428 = vshrl.u32 %v2427, 7
        %v2429 = vsub.s32 3, %v2428
        %v2430 = vrot.slane %v391, %v2429
        %v2435 = vunpack.c.l.b16 %v380
        %v2436 = vunpack.c.l.b16 %v381
        %v2437 = vunpack.c.l.b16 %v382
        %v2438 = vunpack.c.l.b16 %v383
        %v2439 = vpack.c.b16 %v2436, %v2435
        %v2440 = vpack.c.b16 %v2438, %v2437
        %v2444 = vsel %vm523, %v2423, 0
        %v2447 = vsel %vm523, %v2424, 0
        %v2450 = vsel %vm523, %v2425, 0
        %v2453 = vsel %vm523, %v2426, 0
        %2455 = vmatprep.subr.bf16.mxu0 0
        %2456 = vmatpush1.bf16.msra.mxu0 %v2439
        %2457 = vmatprep.subr.bf16.mxu0 0
        %2458 = vmatpush1.bf16.msra.mxu0 %v2440
        %2459 = vmatprep.subr.bf16.mxu0 0
        %2460 = vmatpush1.bf16.msra.mxu0 0
        %2461 = vmatprep.subr.bf16.mxu0 0
        %2462 = vmatpush1.bf16.msra.mxu0 0
        %2463 = vmatprep.subr.bf16.mxu0 0
        %2464 = vmatpush1.bf16.msra.mxu0 0
        %2465 = vmatprep.subr.bf16.mxu0 0
        %2466 = vmatpush1.bf16.msra.mxu0 0
        %2467 = vmatprep.subr.bf16.mxu0 0
        %2468 = vmatpush1.bf16.msra.mxu0 0
        %2469 = vmatprep.subr.bf16.mxu0 0
        %2470 = vmatpush1.bf16.msra.mxu0 0
        %2471 = vmatprep.subr.bf16.mxu0 0
        %2472 = vmatpush1.bf16.msra.mxu0 0
        %2473 = vmatprep.subr.bf16.mxu0 0
        %2474 = vmatpush1.bf16.msra.mxu0 0
        %2475 = vmatprep.subr.bf16.mxu0 0
        %2476 = vmatpush1.bf16.msra.mxu0 0
        %2477 = vmatprep.subr.bf16.mxu0 0
        %2478 = vmatpush1.bf16.msra.mxu0 0
        %2479 = vmatprep.subr.bf16.mxu0 0
        %2480 = vmatpush1.bf16.msra.mxu0 0
        %2481 = vmatprep.subr.bf16.mxu0 0
        %2482 = vmatpush1.bf16.msra.mxu0 0
        %2483 = vmatprep.subr.bf16.mxu0 0
        %2484 = vmatpush1.bf16.msra.mxu0 0
        %2485 = vmatprep.subr.bf16.mxu0 0
        %2486 = vmatpush1.bf16.msra.mxu0 0
        %2487 = vmatprep.mubr.bf16.mxu0 0
        %2488 = vmatmul.mubr.bf16.gmra.mrb[0].mxu0 %v2444
        %v2489 = vpop.f32.mrb[0].mxu0
        %v2490 = vadd.f32 %v2430, %v2489
        %v2491 = vpop.f32.mrb[0].mxu0
        %v2492 = vpop.f32.mrb[0].mxu0
        %v2493 = vadd.f32 %v2430, %v2492
        %v2494 = vpop.f32.mrb[0].mxu0
        %2495 = vmatprep.mubr.bf16.mxu0 0
        %2496 = vmatmul.mubr.bf16.gmra.mrb[0].mxu0 %v2447
        %v2497 = vpop.f32.mrb[0].mxu0
        %v2498 = vadd.f32 %v2430, %v2497
        %v2499 = vpop.f32.mrb[0].mxu0
        %v2500 = vpop.f32.mrb[0].mxu0
        %v2501 = vadd.f32 %v2430, %v2500
        %v2502 = vpop.f32.mrb[0].mxu0
        %2503 = vmatprep.mubr.bf16.mxu0 0
        %2504 = vmatmul.mubr.bf16.gmra.mrb[0].mxu0 %v2450
        %v2505 = vpop.f32.mrb[0].mxu0
        %v2506 = vadd.f32 %v2430, %v2505
        %v2507 = vpop.f32.mrb[0].mxu0
        %v2508 = vpop.f32.mrb[0].mxu0
        %v2509 = vadd.f32 %v2430, %v2508
        %v2510 = vpop.f32.mrb[0].mxu0
        %2511 = vmatprep.mubr.bf16.mxu0 0
        %2512 = vmatmul.mubr.bf16.gmra.mrb[0].mxu0 %v2453
        %v2513 = vpop.f32.mrb[0].mxu0
        %v2514 = vadd.f32 %v2430, %v2513
        %v2515 = vpop.f32.mrb[0].mxu0
        %v2516 = vpop.f32.mrb[0].mxu0
        %v2517 = vadd.f32 %v2430, %v2516
        %v2518 = vpop.f32.mrb[0].mxu0
        %2519 = vdwg.mxu0
        %2520 = vadd.xlane.f32.xlu0 %v2490
        %v2521 = vpop.xlane.xlu0 %2520
        %2522 = vadd.xlane.f32.xlu0 %v2493
        %v2523 = vpop.xlane.xlu0 %2522
        %2524 = vadd.xlane.f32.xlu0 %v2498
        %v2525 = vpop.xlane.xlu0 %2524
        %2526 = vadd.xlane.f32.xlu0 %v2501
        %v2527 = vpop.xlane.xlu0 %2526
        %2528 = vadd.xlane.f32.xlu0 %v2506
        %v2529 = vpop.xlane.xlu0 %2528
        %2530 = vadd.xlane.f32.xlu0 %v2509
        %v2531 = vpop.xlane.xlu0 %2530
        %2532 = vadd.xlane.f32.xlu0 %v2514
        %v2533 = vpop.xlane.xlu0 %2532
        %2534 = vadd.xlane.f32.xlu0 %v2517
        %v2535 = vpop.xlane.xlu0 %2534
        %v2536 = vmul.f32 %v2521, %v854
        %v2537 = vmul.f32 %v2523, %v854
        %v2538 = vmul.f32 %v2525, %v854
        %v2539 = vmul.f32 %v2527, %v854
        %v2540 = vmul.f32 %v2529, %v854
        %v2541 = vmul.f32 %v2531, %v854
        %v2542 = vmul.f32 %v2533, %v854
        %v2543 = vmul.f32 %v2535, %v854
        %v2544 = vmul.f32 %v2490, %v2490
        %v2545 = vmul.f32 %v2493, %v2493
        %v2546 = vmul.f32 %v2498, %v2498
        %v2547 = vmul.f32 %v2501, %v2501
        %v2548 = vmul.f32 %v2506, %v2506
        %v2549 = vmul.f32 %v2509, %v2509
        %v2550 = vmul.f32 %v2514, %v2514
        %v2551 = vmul.f32 %v2517, %v2517
        %2552 = vadd.xlane.f32.xlu0 %v2544
        %v2553 = vpop.xlane.xlu0 %2552
        %2554 = vadd.xlane.f32.xlu0 %v2545
        %v2555 = vpop.xlane.xlu0 %2554
        %2556 = vadd.xlane.f32.xlu0 %v2546
        %v2557 = vpop.xlane.xlu0 %2556
        %2558 = vadd.xlane.f32.xlu0 %v2547
        %v2559 = vpop.xlane.xlu0 %2558
        %2560 = vadd.xlane.f32.xlu0 %v2548
        %v2561 = vpop.xlane.xlu0 %2560
        %2562 = vadd.xlane.f32.xlu0 %v2549
        %v2563 = vpop.xlane.xlu0 %2562
        %2564 = vadd.xlane.f32.xlu0 %v2550
        %v2565 = vpop.xlane.xlu0 %2564
        %2566 = vadd.xlane.f32.xlu0 %v2551
        %v2567 = vpop.xlane.xlu0 %2566
        %v2568 = vmul.f32 %v2553, %v854
        %v2569 = vmul.f32 %v2555, %v854
        %v2570 = vmul.f32 %v2557, %v854
        %v2571 = vmul.f32 %v2559, %v854
        %v2572 = vmul.f32 %v2561, %v854
        %v2573 = vmul.f32 %v2563, %v854
        %v2574 = vmul.f32 %v2565, %v854
        %v2575 = vmul.f32 %v2567, %v854
        %v2576 = vmul.f32 %v2536, %v2536
        %v2577 = vmul.f32 %v2537, %v2537
        %v2578 = vmul.f32 %v2538, %v2538
        %v2579 = vmul.f32 %v2539, %v2539
        %v2580 = vmul.f32 %v2540, %v2540
        %v2581 = vmul.f32 %v2541, %v2541
        %v2582 = vmul.f32 %v2542, %v2542
        %v2583 = vmul.f32 %v2543, %v2543
        %v2584 = vsub.f32 %v2568, %v2576
        %v2585 = vsub.f32 %v2569, %v2577
        %v2586 = vsub.f32 %v2570, %v2578
        %v2587 = vsub.f32 %v2571, %v2579
        %v2588 = vsub.f32 %v2572, %v2580
        %v2589 = vsub.f32 %v2573, %v2581
        %v2590 = vsub.f32 %v2574, %v2582
        %v2591 = vsub.f32 %v2575, %v2583
        %v2592 = vsub.f32 %v2490, %v2536
        %v2593 = vsub.f32 %v2493, %v2537
        %v2594 = vsub.f32 %v2498, %v2538
        %v2595 = vsub.f32 %v2501, %v2539
        %v2596 = vsub.f32 %v2506, %v2540
        %v2597 = vsub.f32 %v2509, %v2541
        %v2598 = vsub.f32 %v2514, %v2542
        %v2599 = vsub.f32 %v2517, %v2543
        %v2600 = vadd.f32 %v2584, 1e-05
        %v2601 = vadd.f32 %v2585, 1e-05
        %v2602 = vadd.f32 %v2586, 1e-05
        %v2603 = vadd.f32 %v2587, 1e-05
        %v2604 = vadd.f32 %v2588, 1e-05
        %v2605 = vadd.f32 %v2589, 1e-05
        %v2606 = vadd.f32 %v2590, 1e-05
        %v2607 = vadd.f32 %v2591, 1e-05
        %v2608 = vrsqrt.pop %v2600
        %v2609 = vrsqrt.pop %v2601
        %v2610 = vrsqrt.pop %v2602
        %v2611 = vrsqrt.pop %v2603
        %v2612 = vrsqrt.pop %v2604
        %v2613 = vrsqrt.pop %v2605
        %v2614 = vrsqrt.pop %v2606
        %v2615 = vrsqrt.pop %v2607
        %v2616 = vmul.f32 %v2592, %v2608
        %v2617 = vmul.f32 %v2593, %v2609
        %v2618 = vmul.f32 %v2594, %v2610
        %v2619 = vmul.f32 %v2595, %v2611
        %v2620 = vmul.f32 %v2596, %v2612
        %v2621 = vmul.f32 %v2597, %v2613
        %v2622 = vmul.f32 %v2598, %v2614
        %v2623 = vmul.f32 %v2599, %v2615
        %v2624 = vlaneseq
        %v2625 = vshrl.u32 %v2624, 7
        %v2626 = vsub.s32 4, %v2625
        %v2627 = vrot.slane %v391, %v2626
        %v2628 = vmul.f32 %v2616, %v2627
        %v2629 = vmul.f32 %v2617, %v2627
        %v2630 = vmul.f32 %v2618, %v2627
        %v2631 = vmul.f32 %v2619, %v2627
        %v2632 = vmul.f32 %v2620, %v2627
        %v2633 = vmul.f32 %v2621, %v2627
        %v2634 = vmul.f32 %v2622, %v2627
        %v2635 = vmul.f32 %v2623, %v2627
        %v2636 = vlaneseq
        %v2637 = vshrl.u32 %v2636, 7
        %v2638 = vsub.s32 5, %v2637
        %v2639 = vrot.slane %v391, %v2638
        %v2640 = vadd.f32 %v2628, %v2639
        %v2641 = vadd.f32 %v2629, %v2639
        %v2642 = vadd.f32 %v2630, %v2639
        %v2643 = vadd.f32 %v2631, %v2639
        %v2644 = vadd.f32 %v2632, %v2639
        %v2645 = vadd.f32 %v2633, %v2639
        %v2646 = vadd.f32 %v2634, %v2639
        %v2647 = vadd.f32 %v2635, %v2639
        %v2648 = vxor.u32 %v2640, 2147483648
        %v2649 = vxor.u32 %v2641, 2147483648
        %v2650 = vxor.u32 %v2642, 2147483648
        %v2651 = vxor.u32 %v2643, 2147483648
        %v2652 = vxor.u32 %v2644, 2147483648
        %v2653 = vxor.u32 %v2645, 2147483648
        %v2654 = vxor.u32 %v2646, 2147483648
        %v2655 = vxor.u32 %v2647, 2147483648
        %v2656 = vmul.f32 %v2648, 1.442695
        %v2657 = vpow.pop %v2656
        %v2658 = vmul.f32 %v2649, 1.442695
        %v2659 = vpow.pop %v2658
        %v2660 = vmul.f32 %v2650, 1.442695
        %v2661 = vpow.pop %v2660
        %v2662 = vmul.f32 %v2651, 1.442695
        %v2663 = vpow.pop %v2662
        %v2664 = vmul.f32 %v2652, 1.442695
        %v2665 = vpow.pop %v2664
        %v2666 = vmul.f32 %v2653, 1.442695
        %v2667 = vpow.pop %v2666
        %v2668 = vmul.f32 %v2654, 1.442695
        %v2669 = vpow.pop %v2668
        %v2670 = vmul.f32 %v2655, 1.442695
        %v2671 = vpow.pop %v2670
        %v2672 = vadd.f32 %v2657, 1.0
        %v2673 = vadd.f32 %v2659, 1.0
        %v2674 = vadd.f32 %v2661, 1.0
        %v2675 = vadd.f32 %v2663, 1.0
        %v2676 = vadd.f32 %v2665, 1.0
        %v2677 = vadd.f32 %v2667, 1.0
        %v2678 = vadd.f32 %v2669, 1.0
        %v2679 = vadd.f32 %v2671, 1.0
        %v2680 = vrcp.pop %v2672
        %v2681 = vmul.f32 1.0, %v2680
        %v2682 = vrcp.pop %v2673
        %v2683 = vmul.f32 1.0, %v2682
        %v2684 = vrcp.pop %v2674
        %v2685 = vmul.f32 1.0, %v2684
        %v2686 = vrcp.pop %v2675
        %v2687 = vmul.f32 1.0, %v2686
        %v2688 = vrcp.pop %v2676
        %v2689 = vmul.f32 1.0, %v2688
        %v2690 = vrcp.pop %v2677
        %v2691 = vmul.f32 1.0, %v2690
        %v2692 = vrcp.pop %v2678
        %v2693 = vmul.f32 1.0, %v2692
        %v2694 = vrcp.pop %v2679
        %v2695 = vmul.f32 1.0, %v2694
        %2696 = vadd.xlane.f32.xlu0 %v2078
        %v2697 = vpop.xlane.xlu0 %2696
        %2698 = vadd.xlane.f32.xlu0 %v2079
        %v2699 = vpop.xlane.xlu0 %2698
        %2700 = vadd.xlane.f32.xlu0 %v2080
        %v2701 = vpop.xlane.xlu0 %2700
        %2702 = vadd.xlane.f32.xlu0 %v2081
        %v2703 = vpop.xlane.xlu0 %2702
        %2704 = vadd.xlane.f32.xlu0 %v2082
        %v2705 = vpop.xlane.xlu0 %2704
        %2706 = vadd.xlane.f32.xlu0 %v2083
        %v2707 = vpop.xlane.xlu0 %2706
        %2708 = vadd.xlane.f32.xlu0 %v2084
        %v2709 = vpop.xlane.xlu0 %2708
        %2710 = vadd.xlane.f32.xlu0 %v2085
        %v2711 = vpop.xlane.xlu0 %2710
        %v2712 = vmul.f32 %v2697, %v854
        %v2713 = vmul.f32 %v2699, %v854
        %v2714 = vmul.f32 %v2701, %v854
        %v2715 = vmul.f32 %v2703, %v854
        %v2716 = vmul.f32 %v2705, %v854
        %v2717 = vmul.f32 %v2707, %v854
        %v2718 = vmul.f32 %v2709, %v854
        %v2719 = vmul.f32 %v2711, %v854
        %2720 = vrot.lane.b32.xlu0 %v392, 120
        %v2721 = vpop.permute.xlu0 %2720
        %v2724 = vsel %vm1039, %v387, 0
        %2726 = vmatprep.subr.mxu0 0.0
        %2727 = vmatpush1.msra.mxu0 %v2712
        %2728 = vmatprep.subr.mxu0 0.0
        %2729 = vmatpush1.msra.mxu0 %v2713
        %2730 = vmatprep.subr.mxu0 0.0
        %2731 = vmatpush1.msra.mxu0 0.0
        %2732 = vmatprep.subr.mxu0 0.0
        %2733 = vmatpush1.msra.mxu0 0.0
        %2734 = vmatprep.subr.mxu0 0.0
        %2735 = vmatpush1.msra.mxu0 0.0
        %2736 = vmatprep.subr.mxu0 0.0
        %2737 = vmatpush1.msra.mxu0 0.0
        %2738 = vmatprep.subr.mxu0 0.0
        %2739 = vmatpush1.msra.mxu0 0.0
        %2740 = vmatprep.subr.mxu0 0.0
        %2741 = vmatpush1.msra.mxu0 0.0
        %2742 = vmatprep.subr.mxu0 0.0
        %2743 = vmatpush1.msra.mxu0 0.0
        %2744 = vmatprep.subr.mxu0 0.0
        %2745 = vmatpush1.msra.mxu0 0.0
        %2746 = vmatprep.subr.mxu0 0.0
        %2747 = vmatpush1.msra.mxu0 0.0
        %2748 = vmatprep.subr.mxu0 0.0
        %2749 = vmatpush1.msra.mxu0 0.0
        %2750 = vmatprep.subr.mxu0 0.0
        %2751 = vmatpush1.msra.mxu0 0.0
        %2752 = vmatprep.subr.mxu0 0.0
        %2753 = vmatpush1.msra.mxu0 0.0
        %2754 = vmatprep.subr.mxu0 0.0
        %2755 = vmatpush1.msra.mxu0 0.0
        %2756 = vmatprep.subr.mxu0 0.0
        %2757 = vmatpush1.msra.mxu0 0.0
        %2758 = vmatprep.subr.mxu0 0.0
        %2759 = vmatpush1.msra.mxu0 0.0
        %2760 = vmatprep.subr.mxu0 0.0
        %2761 = vmatpush1.msra.mxu0 0.0
        %2762 = vmatprep.subr.mxu0 0.0
        %2763 = vmatpush1.msra.mxu0 0.0
        %2764 = vmatprep.subr.mxu0 0.0
        %2765 = vmatpush1.msra.mxu0 0.0
        %2766 = vmatprep.subr.mxu0 0.0
        %2767 = vmatpush1.msra.mxu0 0.0
        %2768 = vmatprep.subr.mxu0 0.0
        %2769 = vmatpush1.msra.mxu0 0.0
        %2770 = vmatprep.subr.mxu0 0.0
        %2771 = vmatpush1.msra.mxu0 0.0
        %2772 = vmatprep.subr.mxu0 0.0
        %2773 = vmatpush1.msra.mxu0 0.0
        %2774 = vmatprep.subr.mxu0 0.0
        %2775 = vmatpush1.msra.mxu0 0.0
        %2776 = vmatprep.subr.mxu0 0.0
        %2777 = vmatpush1.msra.mxu0 0.0
        %2778 = vmatprep.subr.mxu0 0.0
        %2779 = vmatpush1.msra.mxu0 0.0
        %2780 = vmatprep.subr.mxu0 0.0
        %2781 = vmatpush1.msra.mxu0 0.0
        %2782 = vmatprep.subr.mxu0 0.0
        %2783 = vmatpush1.msra.mxu0 0.0
        %2784 = vmatprep.subr.mxu0 0.0
        %2785 = vmatpush1.msra.mxu0 0.0
        %2786 = vmatprep.subr.mxu0 0.0
        %2787 = vmatpush1.msra.mxu0 0.0
        %2788 = vmatprep.subr.mxu0 0.0
        %2789 = vmatpush1.msra.mxu0 0.0
        %2790 = vmatprep.mubr.f32.mxu0 0.0
        %2791 = vmatmul.mubr.f32.gmra.mrb[0].mxu0 %v2724
        %v2792 = vpop.f32.mrb[0].mxu0
        %v2793 = vadd.f32 %v2721, %v2792
        %v2794 = vpop.f32.mrb[0].mxu0
        %2795 = vdwg.mxu0
        %v2796 = vsel %vm1113, %v2793, 0.0
        %v2797 = vrot.slane %v2796, 4
        %v2798 = vadd.f32 %v2796, %v2797
        %v2799 = vrot.slane %v2798, 2
        %v2800 = vadd.f32 %v2798, %v2799
        %v2801 = vrot.slane %v2800, 1
        %v2802 = vadd.f32 %v2800, %v2801
        %v2803 = vmul.f32 %v2802, %v1121
        %v2804 = vmul.f32 %v2793, %v2793
        %v2805 = vsel %vm1113, %v2804, 0.0
        %v2806 = vrot.slane %v2805, 4
        %v2807 = vadd.f32 %v2805, %v2806
        %v2808 = vrot.slane %v2807, 2
        %v2809 = vadd.f32 %v2807, %v2808
        %v2810 = vrot.slane %v2809, 1
        %v2811 = vadd.f32 %v2809, %v2810
        %v2812 = vmul.f32 %v2811, %v1121
        %v2813 = vmul.f32 %v2803, %v2803
        %v2814 = vsub.f32 %v2812, %v2813
        %v2815 = vsub.f32 %v2793, %v2803
        %v2816 = vadd.f32 %v2814, 1e-05
        %v2817 = vrsqrt.pop %v2816
        %v2818 = vmul.f32 %v2815, %v2817
        %2819 = vrot.lane.b32.xlu0 %v392, 119
        %v2820 = vpop.permute.xlu0 %2819
        %v2822 = vmul.f32 %v2818, %v2820
        %2823 = vrot.lane.b32.xlu0 %v392, 118
        %v2824 = vpop.permute.xlu0 %2823
        %v2826 = vadd.f32 %v2822, %v2824
        %v2827 = vmul.f32 %v2826, 0.5
        %v2828 = vmul.f32 %v2826, 0.044715
        %v2829 = vmul.f32 %v2828, %v2826
        %v2830 = vmul.f32 %v2829, %v2826
        %v2831 = vadd.f32 %v2826, %v2830
        %v2832 = vmul.f32 %v2831, 0.7978846
        %v2833 = vtanh.pop %v2832
        %v2834 = vadd.f32 %v2833, 1.0
        %v2835 = vmul.f32 %v2827, %v2834
        %v2838 = vrot.slane %v387, 4
        %v2839 = vrot.slane %v388, 4
        %v2840 = vsel %vm1158, %v2838, %v2839
        %v2841 = vrot.slane %v389, 4
        %v2842 = vsel %vm1158, %v2839, %v2841
        %2843 = vrot.lane.b32.xlu0 %v392, 117
        %v2844 = vpop.permute.xlu0 %2843
        %2845 = vrot.lane.b32.xlu0 %v393, 117
        %v2846 = vpop.permute.xlu0 %2845
        %v2849 = vsel %vm1171, %v2840, 0
        %v2851 = vsel %vm1171, %v2842, 0
        %v2854 = vsel %vm1158, %v2835, 0
        %2856 = vmatprep.subr.mxu0 0.0
        %2857 = vmatpush1.msra.mxu0 %v2854
        %2858 = vmatprep.subr.mxu0 0.0
        %2859 = vmatpush1.msra.mxu0 0.0
        %2860 = vmatprep.subr.mxu0 0.0
        %2861 = vmatpush1.msra.mxu0 0.0
        %2862 = vmatprep.subr.mxu0 0.0
        %2863 = vmatpush1.msra.mxu0 0.0
        %2864 = vmatprep.subr.mxu0 0.0
        %2865 = vmatpush1.msra.mxu0 0.0
        %2866 = vmatprep.subr.mxu0 0.0
        %2867 = vmatpush1.msra.mxu0 0.0
        %2868 = vmatprep.subr.mxu0 0.0
        %2869 = vmatpush1.msra.mxu0 0.0
        %2870 = vmatprep.subr.mxu0 0.0
        %2871 = vmatpush1.msra.mxu0 0.0
        %2872 = vmatprep.subr.mxu0 0.0
        %2873 = vmatpush1.msra.mxu0 0.0
        %2874 = vmatprep.subr.mxu0 0.0
        %2875 = vmatpush1.msra.mxu0 0.0
        %2876 = vmatprep.subr.mxu0 0.0
        %2877 = vmatpush1.msra.mxu0 0.0
        %2878 = vmatprep.subr.mxu0 0.0
        %2879 = vmatpush1.msra.mxu0 0.0
        %2880 = vmatprep.subr.mxu0 0.0
        %2881 = vmatpush1.msra.mxu0 0.0
        %2882 = vmatprep.subr.mxu0 0.0
        %2883 = vmatpush1.msra.mxu0 0.0
        %2884 = vmatprep.subr.mxu0 0.0
        %2885 = vmatpush1.msra.mxu0 0.0
        %2886 = vmatprep.subr.mxu0 0.0
        %2887 = vmatpush1.msra.mxu0 0.0
        %2888 = vmatprep.subr.mxu0 0.0
        %2889 = vmatpush1.msra.mxu0 0.0
        %2890 = vmatprep.subr.mxu0 0.0
        %2891 = vmatpush1.msra.mxu0 0.0
        %2892 = vmatprep.subr.mxu0 0.0
        %2893 = vmatpush1.msra.mxu0 0.0
        %2894 = vmatprep.subr.mxu0 0.0
        %2895 = vmatpush1.msra.mxu0 0.0
        %2896 = vmatprep.subr.mxu0 0.0
        %2897 = vmatpush1.msra.mxu0 0.0
        %2898 = vmatprep.subr.mxu0 0.0
        %2899 = vmatpush1.msra.mxu0 0.0
        %2900 = vmatprep.subr.mxu0 0.0
        %2901 = vmatpush1.msra.mxu0 0.0
        %2902 = vmatprep.subr.mxu0 0.0
        %2903 = vmatpush1.msra.mxu0 0.0
        %2904 = vmatprep.subr.mxu0 0.0
        %2905 = vmatpush1.msra.mxu0 0.0
        %2906 = vmatprep.subr.mxu0 0.0
        %2907 = vmatpush1.msra.mxu0 0.0
        %2908 = vmatprep.subr.mxu0 0.0
        %2909 = vmatpush1.msra.mxu0 0.0
        %2910 = vmatprep.subr.mxu0 0.0
        %2911 = vmatpush1.msra.mxu0 0.0
        %2912 = vmatprep.subr.mxu0 0.0
        %2913 = vmatpush1.msra.mxu0 0.0
        %2914 = vmatprep.subr.mxu0 0.0
        %2915 = vmatpush1.msra.mxu0 0.0
        %2916 = vmatprep.subr.mxu0 0.0
        %2917 = vmatpush1.msra.mxu0 0.0
        %2918 = vmatprep.subr.mxu0 0.0
        %2919 = vmatpush1.msra.mxu0 0.0
        %2920 = vmatprep.mubr.f32.mxu0 0.0
        %2921 = vmatmul.mubr.f32.gmra.mrb[0].mxu0 %v2849
        %v2922 = vpop.f32.mrb[0].mxu0
        %v2923 = vadd.f32 %v2844, %v2922
        %v2924 = vpop.f32.mrb[0].mxu0
        %2925 = vmatprep.mubr.f32.mxu0 0.0
        %2926 = vmatmul.mubr.f32.gmra.mrb[0].mxu0 %v2851
        %v2927 = vpop.f32.mrb[0].mxu0
        %v2928 = vadd.f32 %v2846, %v2927
        %v2929 = vpop.f32.mrb[0].mxu0
        %2930 = vdwg.mxu0
        %v2931 = vsel %vm1254, %v2923, 0.0
        %v2932 = vsel %vm1254, %v2928, 0.0
        %v2933 = vadd.f32 %v2931, %v2932
        %v2934 = vrot.slane %v2933, 4
        %v2935 = vadd.f32 %v2933, %v2934
        %v2936 = vrot.slane %v2935, 2
        %v2937 = vadd.f32 %v2935, %v2936
        %v2938 = vrot.slane %v2937, 1
        %v2939 = vadd.f32 %v2937, %v2938
        %v2940 = vmul.f32 %v2939, %v1264
        %v2941 = vmul.f32 %v2923, %v2923
        %v2942 = vmul.f32 %v2928, %v2928
        %v2943 = vsel %vm1254, %v2941, 0.0
        %v2944 = vsel %vm1254, %v2942, 0.0
        %v2945 = vadd.f32 %v2943, %v2944
        %v2946 = vrot.slane %v2945, 4
        %v2947 = vadd.f32 %v2945, %v2946
        %v2948 = vrot.slane %v2947, 2
        %v2949 = vadd.f32 %v2947, %v2948
        %v2950 = vrot.slane %v2949, 1
        %v2951 = vadd.f32 %v2949, %v2950
        %v2952 = vmul.f32 %v2951, %v1264
        %v2953 = vmul.f32 %v2940, %v2940
        %v2954 = vsub.f32 %v2952, %v2953
        %v2955 = vsub.f32 %v2923, %v2940
        %v2956 = vsub.f32 %v2928, %v2940
        %v2957 = vadd.f32 %v2954, 1e-05
        %v2958 = vrsqrt.pop %v2957
        %v2959 = vmul.f32 %v2955, %v2958
        %v2960 = vmul.f32 %v2956, %v2958
        %2961 = vrot.lane.b32.xlu0 %v392, 116
        %v2962 = vpop.permute.xlu0 %2961
        %2963 = vrot.lane.b32.xlu0 %v393, 116
        %v2964 = vpop.permute.xlu0 %2963
        %v2967 = vmul.f32 %v2959, %v2962
        %v2968 = vmul.f32 %v2960, %v2964
        %2969 = vrot.lane.b32.xlu0 %v392, 115
        %v2970 = vpop.permute.xlu0 %2969
        %2971 = vrot.lane.b32.xlu0 %v393, 115
        %v2972 = vpop.permute.xlu0 %2971
        %v2975 = vadd.f32 %v2967, %v2970
        %v2976 = vadd.f32 %v2968, %v2972
        %v2977 = vxor.u32 %v2975, 2147483648
        %v2978 = vxor.u32 %v2976, 2147483648
        %v2979 = vmul.f32 %v2977, 1.442695
        %v2980 = vpow.pop %v2979
        %v2981 = vmul.f32 %v2978, 1.442695
        %v2982 = vpow.pop %v2981
        %v2983 = vadd.f32 %v2980, 1.0
        %v2984 = vadd.f32 %v2982, 1.0
        %v2985 = vrcp.pop %v2983
        %v2986 = vmul.f32 1.0, %v2985
        %v2987 = vrcp.pop %v2984
        %v2988 = vmul.f32 1.0, %v2987
        %2989 = vmatprep.subr.mxu0 0.0
        %2990 = vmatpush1.msra.mxu0 %v2714
        %2991 = vmatprep.subr.mxu0 0.0
        %2992 = vmatpush1.msra.mxu0 %v2715
        %2993 = vmatprep.subr.mxu0 0.0
        %2994 = vmatpush1.msra.mxu0 0.0
        %2995 = vmatprep.subr.mxu0 0.0
        %2996 = vmatpush1.msra.mxu0 0.0
        %2997 = vmatprep.subr.mxu0 0.0
        %2998 = vmatpush1.msra.mxu0 0.0
        %2999 = vmatprep.subr.mxu0 0.0
        %3000 = vmatpush1.msra.mxu0 0.0
        %3001 = vmatprep.subr.mxu0 0.0
        %3002 = vmatpush1.msra.mxu0 0.0
        %3003 = vmatprep.subr.mxu0 0.0
        %3004 = vmatpush1.msra.mxu0 0.0
        %3005 = vmatprep.subr.mxu0 0.0
        %3006 = vmatpush1.msra.mxu0 0.0
        %3007 = vmatprep.subr.mxu0 0.0
        %3008 = vmatpush1.msra.mxu0 0.0
        %3009 = vmatprep.subr.mxu0 0.0
        %3010 = vmatpush1.msra.mxu0 0.0
        %3011 = vmatprep.subr.mxu0 0.0
        %3012 = vmatpush1.msra.mxu0 0.0
        %3013 = vmatprep.subr.mxu0 0.0
        %3014 = vmatpush1.msra.mxu0 0.0
        %3015 = vmatprep.subr.mxu0 0.0
        %3016 = vmatpush1.msra.mxu0 0.0
        %3017 = vmatprep.subr.mxu0 0.0
        %3018 = vmatpush1.msra.mxu0 0.0
        %3019 = vmatprep.subr.mxu0 0.0
        %3020 = vmatpush1.msra.mxu0 0.0
        %3021 = vmatprep.subr.mxu0 0.0
        %3022 = vmatpush1.msra.mxu0 0.0
        %3023 = vmatprep.subr.mxu0 0.0
        %3024 = vmatpush1.msra.mxu0 0.0
        %3025 = vmatprep.subr.mxu0 0.0
        %3026 = vmatpush1.msra.mxu0 0.0
        %3027 = vmatprep.subr.mxu0 0.0
        %3028 = vmatpush1.msra.mxu0 0.0
        %3029 = vmatprep.subr.mxu0 0.0
        %3030 = vmatpush1.msra.mxu0 0.0
        %3031 = vmatprep.subr.mxu0 0.0
        %3032 = vmatpush1.msra.mxu0 0.0
        %3033 = vmatprep.subr.mxu0 0.0
        %3034 = vmatpush1.msra.mxu0 0.0
        %3035 = vmatprep.subr.mxu0 0.0
        %3036 = vmatpush1.msra.mxu0 0.0
        %3037 = vmatprep.subr.mxu0 0.0
        %3038 = vmatpush1.msra.mxu0 0.0
        %3039 = vmatprep.subr.mxu0 0.0
        %3040 = vmatpush1.msra.mxu0 0.0
        %3041 = vmatprep.subr.mxu0 0.0
        %3042 = vmatpush1.msra.mxu0 0.0
        %3043 = vmatprep.subr.mxu0 0.0
        %3044 = vmatpush1.msra.mxu0 0.0
        %3045 = vmatprep.subr.mxu0 0.0
        %3046 = vmatpush1.msra.mxu0 0.0
        %3047 = vmatprep.subr.mxu0 0.0
        %3048 = vmatpush1.msra.mxu0 0.0
        %3049 = vmatprep.subr.mxu0 0.0
        %3050 = vmatpush1.msra.mxu0 0.0
        %3051 = vmatprep.subr.mxu0 0.0
        %3052 = vmatpush1.msra.mxu0 0.0
        %3053 = vmatprep.mubr.f32.mxu0 0.0
        %3054 = vmatmul.mubr.f32.gmra.mrb[0].mxu0 %v2724
        %v3055 = vpop.f32.mrb[0].mxu0
        %v3056 = vadd.f32 %v2721, %v3055
        %v3057 = vpop.f32.mrb[0].mxu0
        %3058 = vdwg.mxu0
        %v3059 = vsel %vm1113, %v3056, 0.0
        %v3060 = vrot.slane %v3059, 4
        %v3061 = vadd.f32 %v3059, %v3060
        %v3062 = vrot.slane %v3061, 2
        %v3063 = vadd.f32 %v3061, %v3062
        %v3064 = vrot.slane %v3063, 1
        %v3065 = vadd.f32 %v3063, %v3064
        %v3066 = vmul.f32 %v3065, %v1121
        %v3067 = vmul.f32 %v3056, %v3056
        %v3068 = vsel %vm1113, %v3067, 0.0
        %v3069 = vrot.slane %v3068, 4
        %v3070 = vadd.f32 %v3068, %v3069
        %v3071 = vrot.slane %v3070, 2
        %v3072 = vadd.f32 %v3070, %v3071
        %v3073 = vrot.slane %v3072, 1
        %v3074 = vadd.f32 %v3072, %v3073
        %v3075 = vmul.f32 %v3074, %v1121
        %v3076 = vmul.f32 %v3066, %v3066
        %v3077 = vsub.f32 %v3075, %v3076
        %v3078 = vsub.f32 %v3056, %v3066
        %v3079 = vadd.f32 %v3077, 1e-05
        %v3080 = vrsqrt.pop %v3079
        %v3081 = vmul.f32 %v3078, %v3080
        %v3082 = vmul.f32 %v3081, %v2820
        %v3083 = vadd.f32 %v3082, %v2824
        %v3084 = vmul.f32 %v3083, 0.5
        %v3085 = vmul.f32 %v3083, 0.044715
        %v3086 = vmul.f32 %v3085, %v3083
        %v3087 = vmul.f32 %v3086, %v3083
        %v3088 = vadd.f32 %v3083, %v3087
        %v3089 = vmul.f32 %v3088, 0.7978846
        %v3090 = vtanh.pop %v3089
        %v3091 = vadd.f32 %v3090, 1.0
        %v3092 = vmul.f32 %v3084, %v3091
        %v3094 = vsel %vm1158, %v3092, 0
        %3096 = vmatprep.subr.mxu0 0.0
        %3097 = vmatpush1.msra.mxu0 %v3094
        %3098 = vmatprep.subr.mxu0 0.0
        %3099 = vmatpush1.msra.mxu0 0.0
        %3100 = vmatprep.subr.mxu0 0.0
        %3101 = vmatpush1.msra.mxu0 0.0
        %3102 = vmatprep.subr.mxu0 0.0
        %3103 = vmatpush1.msra.mxu0 0.0
        %3104 = vmatprep.subr.mxu0 0.0
        %3105 = vmatpush1.msra.mxu0 0.0
        %3106 = vmatprep.subr.mxu0 0.0
        %3107 = vmatpush1.msra.mxu0 0.0
        %3108 = vmatprep.subr.mxu0 0.0
        %3109 = vmatpush1.msra.mxu0 0.0
        %3110 = vmatprep.subr.mxu0 0.0
        %3111 = vmatpush1.msra.mxu0 0.0
        %3112 = vmatprep.subr.mxu0 0.0
        %3113 = vmatpush1.msra.mxu0 0.0
        %3114 = vmatprep.subr.mxu0 0.0
        %3115 = vmatpush1.msra.mxu0 0.0
        %3116 = vmatprep.subr.mxu0 0.0
        %3117 = vmatpush1.msra.mxu0 0.0
        %3118 = vmatprep.subr.mxu0 0.0
        %3119 = vmatpush1.msra.mxu0 0.0
        %3120 = vmatprep.subr.mxu0 0.0
        %3121 = vmatpush1.msra.mxu0 0.0
        %3122 = vmatprep.subr.mxu0 0.0
        %3123 = vmatpush1.msra.mxu0 0.0
        %3124 = vmatprep.subr.mxu0 0.0
        %3125 = vmatpush1.msra.mxu0 0.0
        %3126 = vmatprep.subr.mxu0 0.0
        %3127 = vmatpush1.msra.mxu0 0.0
        %3128 = vmatprep.subr.mxu0 0.0
        %3129 = vmatpush1.msra.mxu0 0.0
        %3130 = vmatprep.subr.mxu0 0.0
        %3131 = vmatpush1.msra.mxu0 0.0
        %3132 = vmatprep.subr.mxu0 0.0
        %3133 = vmatpush1.msra.mxu0 0.0
        %3134 = vmatprep.subr.mxu0 0.0
        %3135 = vmatpush1.msra.mxu0 0.0
        %3136 = vmatprep.subr.mxu0 0.0
        %3137 = vmatpush1.msra.mxu0 0.0
        %3138 = vmatprep.subr.mxu0 0.0
        %3139 = vmatpush1.msra.mxu0 0.0
        %3140 = vmatprep.subr.mxu0 0.0
        %3141 = vmatpush1.msra.mxu0 0.0
        %3142 = vmatprep.subr.mxu0 0.0
        %3143 = vmatpush1.msra.mxu0 0.0
        %3144 = vmatprep.subr.mxu0 0.0
        %3145 = vmatpush1.msra.mxu0 0.0
        %3146 = vmatprep.subr.mxu0 0.0
        %3147 = vmatpush1.msra.mxu0 0.0
        %3148 = vmatprep.subr.mxu0 0.0
        %3149 = vmatpush1.msra.mxu0 0.0
        %3150 = vmatprep.subr.mxu0 0.0
        %3151 = vmatpush1.msra.mxu0 0.0
        %3152 = vmatprep.subr.mxu0 0.0
        %3153 = vmatpush1.msra.mxu0 0.0
        %3154 = vmatprep.subr.mxu0 0.0
        %3155 = vmatpush1.msra.mxu0 0.0
        %3156 = vmatprep.subr.mxu0 0.0
        %3157 = vmatpush1.msra.mxu0 0.0
        %3158 = vmatprep.subr.mxu0 0.0
        %3159 = vmatpush1.msra.mxu0 0.0
        %3160 = vmatprep.mubr.f32.mxu0 0.0
        %3161 = vmatmul.mubr.f32.gmra.mrb[0].mxu0 %v2849
        %v3162 = vpop.f32.mrb[0].mxu0
        %v3163 = vadd.f32 %v2844, %v3162
        %v3164 = vpop.f32.mrb[0].mxu0
        %3165 = vmatprep.mubr.f32.mxu0 0.0
        %3166 = vmatmul.mubr.f32.gmra.mrb[0].mxu0 %v2851
        %v3167 = vpop.f32.mrb[0].mxu0
        %v3168 = vadd.f32 %v2846, %v3167
        %v3169 = vpop.f32.mrb[0].mxu0
        %3170 = vdwg.mxu0
        %v3171 = vsel %vm1254, %v3163, 0.0
        %v3172 = vsel %vm1254, %v3168, 0.0
        %v3173 = vadd.f32 %v3171, %v3172
        %v3174 = vrot.slane %v3173, 4
        %v3175 = vadd.f32 %v3173, %v3174
        %v3176 = vrot.slane %v3175, 2
        %v3177 = vadd.f32 %v3175, %v3176
        %v3178 = vrot.slane %v3177, 1
        %v3179 = vadd.f32 %v3177, %v3178
        %v3180 = vmul.f32 %v3179, %v1264
        %v3181 = vmul.f32 %v3163, %v3163
        %v3182 = vmul.f32 %v3168, %v3168
        %v3183 = vsel %vm1254, %v3181, 0.0
        %v3184 = vsel %vm1254, %v3182, 0.0
        %v3185 = vadd.f32 %v3183, %v3184
        %v3186 = vrot.slane %v3185, 4
        %v3187 = vadd.f32 %v3185, %v3186
        %v3188 = vrot.slane %v3187, 2
        %v3189 = vadd.f32 %v3187, %v3188
        %v3190 = vrot.slane %v3189, 1
        %v3191 = vadd.f32 %v3189, %v3190
        %v3192 = vmul.f32 %v3191, %v1264
        %v3193 = vmul.f32 %v3180, %v3180
        %v3194 = vsub.f32 %v3192, %v3193
        %v3195 = vsub.f32 %v3163, %v3180
        %v3196 = vsub.f32 %v3168, %v3180
        %v3197 = vadd.f32 %v3194, 1e-05
        %v3198 = vrsqrt.pop %v3197
        %v3199 = vmul.f32 %v3195, %v3198
        %v3200 = vmul.f32 %v3196, %v3198
        %v3201 = vmul.f32 %v3199, %v2962
        %v3202 = vmul.f32 %v3200, %v2964
        %v3203 = vadd.f32 %v3201, %v2970
        %v3204 = vadd.f32 %v3202, %v2972
        %v3205 = vxor.u32 %v3203, 2147483648
        %v3206 = vxor.u32 %v3204, 2147483648
        %v3207 = vmul.f32 %v3205, 1.442695
        %v3208 = vpow.pop %v3207
        %v3209 = vmul.f32 %v3206, 1.442695
        %v3210 = vpow.pop %v3209
        %v3211 = vadd.f32 %v3208, 1.0
        %v3212 = vadd.f32 %v3210, 1.0
        %v3213 = vrcp.pop %v3211
        %v3214 = vmul.f32 1.0, %v3213
        %v3215 = vrcp.pop %v3212
        %v3216 = vmul.f32 1.0, %v3215
        %3217 = vmatprep.subr.mxu0 0.0
        %3218 = vmatpush1.msra.mxu0 %v2716
        %3219 = vmatprep.subr.mxu0 0.0
        %3220 = vmatpush1.msra.mxu0 %v2717
        %3221 = vmatprep.subr.mxu0 0.0
        %3222 = vmatpush1.msra.mxu0 0.0
        %3223 = vmatprep.subr.mxu0 0.0
        %3224 = vmatpush1.msra.mxu0 0.0
        %3225 = vmatprep.subr.mxu0 0.0
        %3226 = vmatpush1.msra.mxu0 0.0
        %3227 = vmatprep.subr.mxu0 0.0
        %3228 = vmatpush1.msra.mxu0 0.0
        %3229 = vmatprep.subr.mxu0 0.0
        %3230 = vmatpush1.msra.mxu0 0.0
        %3231 = vmatprep.subr.mxu0 0.0
        %3232 = vmatpush1.msra.mxu0 0.0
        %3233 = vmatprep.subr.mxu0 0.0
        %3234 = vmatpush1.msra.mxu0 0.0
        %3235 = vmatprep.subr.mxu0 0.0
        %3236 = vmatpush1.msra.mxu0 0.0
        %3237 = vmatprep.subr.mxu0 0.0
        %3238 = vmatpush1.msra.mxu0 0.0
        %3239 = vmatprep.subr.mxu0 0.0
        %3240 = vmatpush1.msra.mxu0 0.0
        %3241 = vmatprep.subr.mxu0 0.0
        %3242 = vmatpush1.msra.mxu0 0.0
        %3243 = vmatprep.subr.mxu0 0.0
        %3244 = vmatpush1.msra.mxu0 0.0
        %3245 = vmatprep.subr.mxu0 0.0
        %3246 = vmatpush1.msra.mxu0 0.0
        %3247 = vmatprep.subr.mxu0 0.0
        %3248 = vmatpush1.msra.mxu0 0.0
        %3249 = vmatprep.subr.mxu0 0.0
        %3250 = vmatpush1.msra.mxu0 0.0
        %3251 = vmatprep.subr.mxu0 0.0
        %3252 = vmatpush1.msra.mxu0 0.0
        %3253 = vmatprep.subr.mxu0 0.0
        %3254 = vmatpush1.msra.mxu0 0.0
        %3255 = vmatprep.subr.mxu0 0.0
        %3256 = vmatpush1.msra.mxu0 0.0
        %3257 = vmatprep.subr.mxu0 0.0
        %3258 = vmatpush1.msra.mxu0 0.0
        %3259 = vmatprep.subr.mxu0 0.0
        %3260 = vmatpush1.msra.mxu0 0.0
        %3261 = vmatprep.subr.mxu0 0.0
        %3262 = vmatpush1.msra.mxu0 0.0
        %3263 = vmatprep.subr.mxu0 0.0
        %3264 = vmatpush1.msra.mxu0 0.0
        %3265 = vmatprep.subr.mxu0 0.0
        %3266 = vmatpush1.msra.mxu0 0.0
        %3267 = vmatprep.subr.mxu0 0.0
        %3268 = vmatpush1.msra.mxu0 0.0
        %3269 = vmatprep.subr.mxu0 0.0
        %3270 = vmatpush1.msra.mxu0 0.0
        %3271 = vmatprep.subr.mxu0 0.0
        %3272 = vmatpush1.msra.mxu0 0.0
        %3273 = vmatprep.subr.mxu0 0.0
        %3274 = vmatpush1.msra.mxu0 0.0
        %3275 = vmatprep.subr.mxu0 0.0
        %3276 = vmatpush1.msra.mxu0 0.0
        %3277 = vmatprep.subr.mxu0 0.0
        %3278 = vmatpush1.msra.mxu0 0.0
        %3279 = vmatprep.subr.mxu0 0.0
        %3280 = vmatpush1.msra.mxu0 0.0
        %3281 = vmatprep.mubr.f32.mxu0 0.0
        %3282 = vmatmul.mubr.f32.gmra.mrb[0].mxu0 %v2724
        %v3283 = vpop.f32.mrb[0].mxu0
        %v3284 = vadd.f32 %v2721, %v3283
        %v3285 = vpop.f32.mrb[0].mxu0
        %3286 = vdwg.mxu0
        %v3287 = vsel %vm1113, %v3284, 0.0
        %v3288 = vrot.slane %v3287, 4
        %v3289 = vadd.f32 %v3287, %v3288
        %v3290 = vrot.slane %v3289, 2
        %v3291 = vadd.f32 %v3289, %v3290
        %v3292 = vrot.slane %v3291, 1
        %v3293 = vadd.f32 %v3291, %v3292
        %v3294 = vmul.f32 %v3293, %v1121
        %v3295 = vmul.f32 %v3284, %v3284
        %v3296 = vsel %vm1113, %v3295, 0.0
        %v3297 = vrot.slane %v3296, 4
        %v3298 = vadd.f32 %v3296, %v3297
        %v3299 = vrot.slane %v3298, 2
        %v3300 = vadd.f32 %v3298, %v3299
        %v3301 = vrot.slane %v3300, 1
        %v3302 = vadd.f32 %v3300, %v3301
        %v3303 = vmul.f32 %v3302, %v1121
        %v3304 = vmul.f32 %v3294, %v3294
        %v3305 = vsub.f32 %v3303, %v3304
        %v3306 = vsub.f32 %v3284, %v3294
        %v3307 = vadd.f32 %v3305, 1e-05
        %v3308 = vrsqrt.pop %v3307
        %v3309 = vmul.f32 %v3306, %v3308
        %v3310 = vmul.f32 %v3309, %v2820
        %v3311 = vadd.f32 %v3310, %v2824
        %v3312 = vmul.f32 %v3311, 0.5
        %v3313 = vmul.f32 %v3311, 0.044715
        %v3314 = vmul.f32 %v3313, %v3311
        %v3315 = vmul.f32 %v3314, %v3311
        %v3316 = vadd.f32 %v3311, %v3315
        %v3317 = vmul.f32 %v3316, 0.7978846
        %v3318 = vtanh.pop %v3317
        %v3319 = vadd.f32 %v3318, 1.0
        %v3320 = vmul.f32 %v3312, %v3319
        %v3322 = vsel %vm1158, %v3320, 0
        %3324 = vmatprep.subr.mxu0 0.0
        %3325 = vmatpush1.msra.mxu0 %v3322
        %3326 = vmatprep.subr.mxu0 0.0
        %3327 = vmatpush1.msra.mxu0 0.0
        %3328 = vmatprep.subr.mxu0 0.0
        %3329 = vmatpush1.msra.mxu0 0.0
        %3330 = vmatprep.subr.mxu0 0.0
        %3331 = vmatpush1.msra.mxu0 0.0
        %3332 = vmatprep.subr.mxu0 0.0
        %3333 = vmatpush1.msra.mxu0 0.0
        %3334 = vmatprep.subr.mxu0 0.0
        %3335 = vmatpush1.msra.mxu0 0.0
        %3336 = vmatprep.subr.mxu0 0.0
        %3337 = vmatpush1.msra.mxu0 0.0
        %3338 = vmatprep.subr.mxu0 0.0
        %3339 = vmatpush1.msra.mxu0 0.0
        %3340 = vmatprep.subr.mxu0 0.0
        %3341 = vmatpush1.msra.mxu0 0.0
        %3342 = vmatprep.subr.mxu0 0.0
        %3343 = vmatpush1.msra.mxu0 0.0
        %3344 = vmatprep.subr.mxu0 0.0
        %3345 = vmatpush1.msra.mxu0 0.0
        %3346 = vmatprep.subr.mxu0 0.0
        %3347 = vmatpush1.msra.mxu0 0.0
        %3348 = vmatprep.subr.mxu0 0.0
        %3349 = vmatpush1.msra.mxu0 0.0
        %3350 = vmatprep.subr.mxu0 0.0
        %3351 = vmatpush1.msra.mxu0 0.0
        %3352 = vmatprep.subr.mxu0 0.0
        %3353 = vmatpush1.msra.mxu0 0.0
        %3354 = vmatprep.subr.mxu0 0.0
        %3355 = vmatpush1.msra.mxu0 0.0
        %3356 = vmatprep.subr.mxu0 0.0
        %3357 = vmatpush1.msra.mxu0 0.0
        %3358 = vmatprep.subr.mxu0 0.0
        %3359 = vmatpush1.msra.mxu0 0.0
        %3360 = vmatprep.subr.mxu0 0.0
        %3361 = vmatpush1.msra.mxu0 0.0
        %3362 = vmatprep.subr.mxu0 0.0
        %3363 = vmatpush1.msra.mxu0 0.0
        %3364 = vmatprep.subr.mxu0 0.0
        %3365 = vmatpush1.msra.mxu0 0.0
        %3366 = vmatprep.subr.mxu0 0.0
        %3367 = vmatpush1.msra.mxu0 0.0
        %3368 = vmatprep.subr.mxu0 0.0
        %3369 = vmatpush1.msra.mxu0 0.0
        %3370 = vmatprep.subr.mxu0 0.0
        %3371 = vmatpush1.msra.mxu0 0.0
        %3372 = vmatprep.subr.mxu0 0.0
        %3373 = vmatpush1.msra.mxu0 0.0
        %3374 = vmatprep.subr.mxu0 0.0
        %3375 = vmatpush1.msra.mxu0 0.0
        %3376 = vmatprep.subr.mxu0 0.0
        %3377 = vmatpush1.msra.mxu0 0.0
        %3378 = vmatprep.subr.mxu0 0.0
        %3379 = vmatpush1.msra.mxu0 0.0
        %3380 = vmatprep.subr.mxu0 0.0
        %3381 = vmatpush1.msra.mxu0 0.0
        %3382 = vmatprep.subr.mxu0 0.0
        %3383 = vmatpush1.msra.mxu0 0.0
        %3384 = vmatprep.subr.mxu0 0.0
        %3385 = vmatpush1.msra.mxu0 0.0
        %3386 = vmatprep.subr.mxu0 0.0
        %3387 = vmatpush1.msra.mxu0 0.0
        %3388 = vmatprep.mubr.f32.mxu0 0.0
        %3389 = vmatmul.mubr.f32.gmra.mrb[0].mxu0 %v2849
        %v3390 = vpop.f32.mrb[0].mxu0
        %v3391 = vadd.f32 %v2844, %v3390
        %v3392 = vpop.f32.mrb[0].mxu0
        %3393 = vmatprep.mubr.f32.mxu0 0.0
        %3394 = vmatmul.mubr.f32.gmra.mrb[0].mxu0 %v2851
        %v3395 = vpop.f32.mrb[0].mxu0
        %v3396 = vadd.f32 %v2846, %v3395
        %v3397 = vpop.f32.mrb[0].mxu0
        %3398 = vdwg.mxu0
        %v3399 = vsel %vm1254, %v3391, 0.0
        %v3400 = vsel %vm1254, %v3396, 0.0
        %v3401 = vadd.f32 %v3399, %v3400
        %v3402 = vrot.slane %v3401, 4
        %v3403 = vadd.f32 %v3401, %v3402
        %v3404 = vrot.slane %v3403, 2
        %v3405 = vadd.f32 %v3403, %v3404
        %v3406 = vrot.slane %v3405, 1
        %v3407 = vadd.f32 %v3405, %v3406
        %v3408 = vmul.f32 %v3407, %v1264
        %v3409 = vmul.f32 %v3391, %v3391
        %v3410 = vmul.f32 %v3396, %v3396
        %v3411 = vsel %vm1254, %v3409, 0.0
        %v3412 = vsel %vm1254, %v3410, 0.0
        %v3413 = vadd.f32 %v3411, %v3412
        %v3414 = vrot.slane %v3413, 4
        %v3415 = vadd.f32 %v3413, %v3414
        %v3416 = vrot.slane %v3415, 2
        %v3417 = vadd.f32 %v3415, %v3416
        %v3418 = vrot.slane %v3417, 1
        %v3419 = vadd.f32 %v3417, %v3418
        %v3420 = vmul.f32 %v3419, %v1264
        %v3421 = vmul.f32 %v3408, %v3408
        %v3422 = vsub.f32 %v3420, %v3421
        %v3423 = vsub.f32 %v3391, %v3408
        %v3424 = vsub.f32 %v3396, %v3408
        %v3425 = vadd.f32 %v3422, 1e-05
        %v3426 = vrsqrt.pop %v3425
        %v3427 = vmul.f32 %v3423, %v3426
        %v3428 = vmul.f32 %v3424, %v3426
        %v3429 = vmul.f32 %v3427, %v2962
        %v3430 = vmul.f32 %v3428, %v2964
        %v3431 = vadd.f32 %v3429, %v2970
        %v3432 = vadd.f32 %v3430, %v2972
        %v3433 = vxor.u32 %v3431, 2147483648
        %v3434 = vxor.u32 %v3432, 2147483648
        %v3435 = vmul.f32 %v3433, 1.442695
        %v3436 = vpow.pop %v3435
        %v3437 = vmul.f32 %v3434, 1.442695
        %v3438 = vpow.pop %v3437
        %v3439 = vadd.f32 %v3436, 1.0
        %v3440 = vadd.f32 %v3438, 1.0
        %v3441 = vrcp.pop %v3439
        %v3442 = vmul.f32 1.0, %v3441
        %v3443 = vrcp.pop %v3440
        %v3444 = vmul.f32 1.0, %v3443
        %3445 = vmatprep.subr.mxu0 0.0
        %3446 = vmatpush1.msra.mxu0 %v2718
        %3447 = vmatprep.subr.mxu0 0.0
        %3448 = vmatpush1.msra.mxu0 %v2719
        %3449 = vmatprep.subr.mxu0 0.0
        %3450 = vmatpush1.msra.mxu0 0.0
        %3451 = vmatprep.subr.mxu0 0.0
        %3452 = vmatpush1.msra.mxu0 0.0
        %3453 = vmatprep.subr.mxu0 0.0
        %3454 = vmatpush1.msra.mxu0 0.0
        %3455 = vmatprep.subr.mxu0 0.0
        %3456 = vmatpush1.msra.mxu0 0.0
        %3457 = vmatprep.subr.mxu0 0.0
        %3458 = vmatpush1.msra.mxu0 0.0
        %3459 = vmatprep.subr.mxu0 0.0
        %3460 = vmatpush1.msra.mxu0 0.0
        %3461 = vmatprep.subr.mxu0 0.0
        %3462 = vmatpush1.msra.mxu0 0.0
        %3463 = vmatprep.subr.mxu0 0.0
        %3464 = vmatpush1.msra.mxu0 0.0
        %3465 = vmatprep.subr.mxu0 0.0
        %3466 = vmatpush1.msra.mxu0 0.0
        %3467 = vmatprep.subr.mxu0 0.0
        %3468 = vmatpush1.msra.mxu0 0.0
        %3469 = vmatprep.subr.mxu0 0.0
        %3470 = vmatpush1.msra.mxu0 0.0
        %3471 = vmatprep.subr.mxu0 0.0
        %3472 = vmatpush1.msra.mxu0 0.0
        %3473 = vmatprep.subr.mxu0 0.0
        %3474 = vmatpush1.msra.mxu0 0.0
        %3475 = vmatprep.subr.mxu0 0.0
        %3476 = vmatpush1.msra.mxu0 0.0
        %3477 = vmatprep.subr.mxu0 0.0
        %3478 = vmatpush1.msra.mxu0 0.0
        %3479 = vmatprep.subr.mxu0 0.0
        %3480 = vmatpush1.msra.mxu0 0.0
        %3481 = vmatprep.subr.mxu0 0.0
        %3482 = vmatpush1.msra.mxu0 0.0
        %3483 = vmatprep.subr.mxu0 0.0
        %3484 = vmatpush1.msra.mxu0 0.0
        %3485 = vmatprep.subr.mxu0 0.0
        %3486 = vmatpush1.msra.mxu0 0.0
        %3487 = vmatprep.subr.mxu0 0.0
        %3488 = vmatpush1.msra.mxu0 0.0
        %3489 = vmatprep.subr.mxu0 0.0
        %3490 = vmatpush1.msra.mxu0 0.0
        %3491 = vmatprep.subr.mxu0 0.0
        %3492 = vmatpush1.msra.mxu0 0.0
        %3493 = vmatprep.subr.mxu0 0.0
        %3494 = vmatpush1.msra.mxu0 0.0
        %3495 = vmatprep.subr.mxu0 0.0
        %3496 = vmatpush1.msra.mxu0 0.0
        %3497 = vmatprep.subr.mxu0 0.0
        %3498 = vmatpush1.msra.mxu0 0.0
        %3499 = vmatprep.subr.mxu0 0.0
        %3500 = vmatpush1.msra.mxu0 0.0
        %3501 = vmatprep.subr.mxu0 0.0
        %3502 = vmatpush1.msra.mxu0 0.0
        %3503 = vmatprep.subr.mxu0 0.0
        %3504 = vmatpush1.msra.mxu0 0.0
        %3505 = vmatprep.subr.mxu0 0.0
        %3506 = vmatpush1.msra.mxu0 0.0
        %3507 = vmatprep.subr.mxu0 0.0
        %3508 = vmatpush1.msra.mxu0 0.0
        %3509 = vmatprep.mubr.f32.mxu0 0.0
        %3510 = vmatmul.mubr.f32.gmra.mrb[0].mxu0 %v2724
        %v3511 = vpop.f32.mrb[0].mxu0
        %v3512 = vadd.f32 %v2721, %v3511
        %v3513 = vpop.f32.mrb[0].mxu0
        %3514 = vdwg.mxu0
        %v3515 = vsel %vm1113, %v3512, 0.0
        %v3516 = vrot.slane %v3515, 4
        %v3517 = vadd.f32 %v3515, %v3516
        %v3518 = vrot.slane %v3517, 2
        %v3519 = vadd.f32 %v3517, %v3518
        %v3520 = vrot.slane %v3519, 1
        %v3521 = vadd.f32 %v3519, %v3520
        %v3522 = vmul.f32 %v3521, %v1121
        %v3523 = vmul.f32 %v3512, %v3512
        %v3524 = vsel %vm1113, %v3523, 0.0
        %v3525 = vrot.slane %v3524, 4
        %v3526 = vadd.f32 %v3524, %v3525
        %v3527 = vrot.slane %v3526, 2
        %v3528 = vadd.f32 %v3526, %v3527
        %v3529 = vrot.slane %v3528, 1
        %v3530 = vadd.f32 %v3528, %v3529
        %v3531 = vmul.f32 %v3530, %v1121
        %v3532 = vmul.f32 %v3522, %v3522
        %v3533 = vsub.f32 %v3531, %v3532
        %v3534 = vsub.f32 %v3512, %v3522
        %v3535 = vadd.f32 %v3533, 1e-05
        %v3536 = vrsqrt.pop %v3535
        %v3537 = vmul.f32 %v3534, %v3536
        %v3538 = vmul.f32 %v3537, %v2820
        %v3539 = vadd.f32 %v3538, %v2824
        %v3540 = vmul.f32 %v3539, 0.5
        %v3541 = vmul.f32 %v3539, 0.044715
        %v3542 = vmul.f32 %v3541, %v3539
        %v3543 = vmul.f32 %v3542, %v3539
        %v3544 = vadd.f32 %v3539, %v3543
        %v3545 = vmul.f32 %v3544, 0.7978846
        %v3546 = vtanh.pop %v3545
        %v3547 = vadd.f32 %v3546, 1.0
        %v3548 = vmul.f32 %v3540, %v3547
        %v3550 = vsel %vm1158, %v3548, 0
        %3552 = vmatprep.subr.mxu0 0.0
        %3553 = vmatpush1.msra.mxu0 %v3550
        %3554 = vmatprep.subr.mxu0 0.0
        %3555 = vmatpush1.msra.mxu0 0.0
        %3556 = vmatprep.subr.mxu0 0.0
        %3557 = vmatpush1.msra.mxu0 0.0
        %3558 = vmatprep.subr.mxu0 0.0
        %3559 = vmatpush1.msra.mxu0 0.0
        %3560 = vmatprep.subr.mxu0 0.0
        %3561 = vmatpush1.msra.mxu0 0.0
        %3562 = vmatprep.subr.mxu0 0.0
        %3563 = vmatpush1.msra.mxu0 0.0
        %3564 = vmatprep.subr.mxu0 0.0
        %3565 = vmatpush1.msra.mxu0 0.0
        %3566 = vmatprep.subr.mxu0 0.0
        %3567 = vmatpush1.msra.mxu0 0.0
        %3568 = vmatprep.subr.mxu0 0.0
        %3569 = vmatpush1.msra.mxu0 0.0
        %3570 = vmatprep.subr.mxu0 0.0
        %3571 = vmatpush1.msra.mxu0 0.0
        %3572 = vmatprep.subr.mxu0 0.0
        %3573 = vmatpush1.msra.mxu0 0.0
        %3574 = vmatprep.subr.mxu0 0.0
        %3575 = vmatpush1.msra.mxu0 0.0
        %3576 = vmatprep.subr.mxu0 0.0
        %3577 = vmatpush1.msra.mxu0 0.0
        %3578 = vmatprep.subr.mxu0 0.0
        %3579 = vmatpush1.msra.mxu0 0.0
        %3580 = vmatprep.subr.mxu0 0.0
        %3581 = vmatpush1.msra.mxu0 0.0
        %3582 = vmatprep.subr.mxu0 0.0
        %3583 = vmatpush1.msra.mxu0 0.0
        %3584 = vmatprep.subr.mxu0 0.0
        %3585 = vmatpush1.msra.mxu0 0.0
        %3586 = vmatprep.subr.mxu0 0.0
        %3587 = vmatpush1.msra.mxu0 0.0
        %3588 = vmatprep.subr.mxu0 0.0
        %3589 = vmatpush1.msra.mxu0 0.0
        %3590 = vmatprep.subr.mxu0 0.0
        %3591 = vmatpush1.msra.mxu0 0.0
        %3592 = vmatprep.subr.mxu0 0.0
        %3593 = vmatpush1.msra.mxu0 0.0
        %3594 = vmatprep.subr.mxu0 0.0
        %3595 = vmatpush1.msra.mxu0 0.0
        %3596 = vmatprep.subr.mxu0 0.0
        %3597 = vmatpush1.msra.mxu0 0.0
        %3598 = vmatprep.subr.mxu0 0.0
        %3599 = vmatpush1.msra.mxu0 0.0
        %3600 = vmatprep.subr.mxu0 0.0
        %3601 = vmatpush1.msra.mxu0 0.0
        %3602 = vmatprep.subr.mxu0 0.0
        %3603 = vmatpush1.msra.mxu0 0.0
        %3604 = vmatprep.subr.mxu0 0.0
        %3605 = vmatpush1.msra.mxu0 0.0
        %3606 = vmatprep.subr.mxu0 0.0
        %3607 = vmatpush1.msra.mxu0 0.0
        %3608 = vmatprep.subr.mxu0 0.0
        %3609 = vmatpush1.msra.mxu0 0.0
        %3610 = vmatprep.subr.mxu0 0.0
        %3611 = vmatpush1.msra.mxu0 0.0
        %3612 = vmatprep.subr.mxu0 0.0
        %3613 = vmatpush1.msra.mxu0 0.0
        %3614 = vmatprep.subr.mxu0 0.0
        %3615 = vmatpush1.msra.mxu0 0.0
        %3616 = vmatprep.mubr.f32.mxu0 0.0
        %3617 = vmatmul.mubr.f32.gmra.mrb[0].mxu0 %v2849
        %v3618 = vpop.f32.mrb[0].mxu0
        %v3619 = vadd.f32 %v2844, %v3618
        %v3620 = vpop.f32.mrb[0].mxu0
        %3621 = vmatprep.mubr.f32.mxu0 0.0
        %3622 = vmatmul.mubr.f32.gmra.mrb[0].mxu0 %v2851
        %v3623 = vpop.f32.mrb[0].mxu0
        %v3624 = vadd.f32 %v2846, %v3623
        %v3625 = vpop.f32.mrb[0].mxu0
        %3626 = vdwg.mxu0
        %v3627 = vsel %vm1254, %v3619, 0.0
        %v3628 = vsel %vm1254, %v3624, 0.0
        %v3629 = vadd.f32 %v3627, %v3628
        %v3630 = vrot.slane %v3629, 4
        %v3631 = vadd.f32 %v3629, %v3630
        %v3632 = vrot.slane %v3631, 2
        %v3633 = vadd.f32 %v3631, %v3632
        %v3634 = vrot.slane %v3633, 1
        %v3635 = vadd.f32 %v3633, %v3634
        %v3636 = vmul.f32 %v3635, %v1264
        %v3637 = vmul.f32 %v3619, %v3619
        %v3638 = vmul.f32 %v3624, %v3624
        %v3639 = vsel %vm1254, %v3637, 0.0
        %v3640 = vsel %vm1254, %v3638, 0.0
        %v3641 = vadd.f32 %v3639, %v3640
        %v3642 = vrot.slane %v3641, 4
        %v3643 = vadd.f32 %v3641, %v3642
        %v3644 = vrot.slane %v3643, 2
        %v3645 = vadd.f32 %v3643, %v3644
        %v3646 = vrot.slane %v3645, 1
        %v3647 = vadd.f32 %v3645, %v3646
        %v3648 = vmul.f32 %v3647, %v1264
        %v3649 = vmul.f32 %v3636, %v3636
        %v3650 = vsub.f32 %v3648, %v3649
        %v3651 = vsub.f32 %v3619, %v3636
        %v3652 = vsub.f32 %v3624, %v3636
        %v3653 = vadd.f32 %v3650, 1e-05
        %v3654 = vrsqrt.pop %v3653
        %v3655 = vmul.f32 %v3651, %v3654
        %v3656 = vmul.f32 %v3652, %v3654
        %v3657 = vmul.f32 %v3655, %v2962
        %v3658 = vmul.f32 %v3656, %v2964
        %v3659 = vadd.f32 %v3657, %v2970
        %v3660 = vadd.f32 %v3658, %v2972
        %v3661 = vxor.u32 %v3659, 2147483648
        %v3662 = vxor.u32 %v3660, 2147483648
        %v3663 = vmul.f32 %v3661, 1.442695
        %v3664 = vpow.pop %v3663
        %v3665 = vmul.f32 %v3662, 1.442695
        %v3666 = vpow.pop %v3665
        %v3667 = vadd.f32 %v3664, 1.0
        %v3668 = vadd.f32 %v3666, 1.0
        %v3669 = vrcp.pop %v3667
        %v3670 = vmul.f32 1.0, %v3669
        %v3671 = vrcp.pop %v3668
        %v3672 = vmul.f32 1.0, %v3671
        %v3673 = vmul.f32 %v1998, %v2681
        %v3674 = vmul.f32 %v1999, %v2683
        %v3675 = vmul.f32 %v2000, %v2685
        %v3676 = vmul.f32 %v2001, %v2687
        %v3677 = vmul.f32 %v2002, %v2689
        %v3678 = vmul.f32 %v2003, %v2691
        %v3679 = vmul.f32 %v2004, %v2693
        %v3680 = vmul.f32 %v2005, %v2695
        %v3681 = vmul.f32 %v2014, %v2681
        %v3682 = vmul.f32 %v2015, %v2683
        %v3683 = vmul.f32 %v2016, %v2685
        %v3684 = vmul.f32 %v2017, %v2687
        %v3685 = vmul.f32 %v2018, %v2689
        %v3686 = vmul.f32 %v2019, %v2691
        %v3687 = vmul.f32 %v2020, %v2693
        %v3688 = vmul.f32 %v2021, %v2695
        %v3689 = vsub.f32 %v2014, %v3681
        %v3690 = vsub.f32 %v2015, %v3682
        %v3691 = vsub.f32 %v2016, %v3683
        %v3692 = vsub.f32 %v2017, %v3684
        %v3693 = vsub.f32 %v2018, %v3685
        %v3694 = vsub.f32 %v2019, %v3686
        %v3695 = vsub.f32 %v2020, %v3687
        %v3696 = vsub.f32 %v2021, %v3688
        %v3697 = vsub.f32 %v3673, %v3689
        %v3698 = vsub.f32 %v3674, %v3690
        %v3699 = vsub.f32 %v3675, %v3691
        %v3700 = vsub.f32 %v3676, %v3692
        %v3701 = vsub.f32 %v3677, %v3693
        %v3702 = vsub.f32 %v3678, %v3694
        %v3703 = vsub.f32 %v3679, %v3695
        %v3704 = vsub.f32 %v3680, %v3696
        %3706 = vset.pattern.permute.xlu0 0
        %3707 = vperm.xlu0 %3706, %v2986
        %v3708 = vpop.permute.xlu0 %3707
        %3711 = vset.pattern.permute.xlu0 0
        %3712 = vperm.xlu0 %3711, %v2988
        %v3713 = vpop.permute.xlu0 %3712
        %3716 = vset.pattern.permute.xlu0 0
        %3717 = vperm.xlu0 %3716, %v3214
        %v3718 = vpop.permute.xlu0 %3717
        %3721 = vset.pattern.permute.xlu0 0
        %3722 = vperm.xlu0 %3721, %v3216
        %v3723 = vpop.permute.xlu0 %3722
        %3726 = vset.pattern.permute.xlu0 0
        %3727 = vperm.xlu0 %3726, %v3442
        %v3728 = vpop.permute.xlu0 %3727
        %3731 = vset.pattern.permute.xlu0 0
        %3732 = vperm.xlu0 %3731, %v3444
        %v3733 = vpop.permute.xlu0 %3732
        %3736 = vset.pattern.permute.xlu0 0
        %3737 = vperm.xlu0 %3736, %v3670
        %v3738 = vpop.permute.xlu0 %3737
        %3741 = vset.pattern.permute.xlu0 0
        %3742 = vperm.xlu0 %3741, %v3672
        %v3743 = vpop.permute.xlu0 %3742
        %v3745 = vmul.f32 %v3708, %v3697
        %v3746 = vmul.f32 %v3713, %v3698
        %v3747 = vmul.f32 %v3718, %v3699
        %v3748 = vmul.f32 %v3723, %v3700
        %v3749 = vmul.f32 %v3728, %v3701
        %v3750 = vmul.f32 %v3733, %v3702
        %v3751 = vmul.f32 %v3738, %v3703
        %v3752 = vmul.f32 %v3743, %v3704
        %v3753 = vadd.f32 %v3689, %v3745
        %v3754 = vadd.f32 %v3690, %v3746
        %v3755 = vadd.f32 %v3691, %v3747
        %v3756 = vadd.f32 %v3692, %v3748
        %v3757 = vadd.f32 %v3693, %v3749
        %v3758 = vadd.f32 %v3694, %v3750
        %v3759 = vadd.f32 %v3695, %v3751
        %v3760 = vadd.f32 %v3696, %v3752
        %3761 = vst [vmem:[%s323] sm:$0xff] %v3753
        %3762 = vst [vmem:[%s323 + $0x8] sm:$0xff] %v3754
        %3763 = vst [vmem:[%s323 + $0x10] sm:$0xff] %v3755
        %3764 = vst [vmem:[%s323 + $0x18] sm:$0xff] %v3756
        %3765 = vst [vmem:[%s323 + $0x20] sm:$0xff] %v3757
        %3766 = vst [vmem:[%s323 + $0x28] sm:$0xff] %v3758
        %3767 = vst [vmem:[%s323 + $0x30] sm:$0xff] %v3759
        %3768 = vst [vmem:[%s323 + $0x38] sm:$0xff] %v3760
        %s3769 = sand.u32 %s170, 1
        %s3770 = scalar_lea.sflag [#allocation4], %s3769
        %s3771 = sand.u32 %s170, 1
        %s3772 = smul.addr %s3771, 64
        %s3773 = scalar_lea.vmem [#allocation8], %s3772
        // Predicated region
        $region57: #{tpu_custom_call.1} parent=43 // pred_check
          %p3774 = pneg %p180
        $region58: #{tpu_custom_call.1} parent=43 // pred_check_branch
          %3776 = sbr.rel (%p3774) target = $region60
        $region59: #{tpu_custom_call.1} parent=43 // pred_region
          %s3777 = smul.u32 8, %s26
          %s3779 = ssub.s32 1024, 1024
          %3780 = vsyncadd %s3770, %s3779
          %s3781 = smul.addr %s3777, 128
          %s3782 = scalar_lea.hbm %s6, %s3781
          %s3783 = sshll.u32 %s3773, 4
          %s3784 = int_to_ptr.vmem [resolvable:$true] %s3783
          %3789 = dma.vmem_to_hbm [thread:$0]  %s3784, 1024, %s3782, %s3770, 128, 128, 8
        $region60: #{tpu_custom_call.1} parent=43 // pred_fallthru
          _
      $region44: #{tpu_custom_call.1} parent=5 // pred_fallthru
        _
      %p3790 = scmp.le.s32.totalorder 2, %s21
      // Predicated region
      $region61: #{tpu_custom_call.1} parent=5 // pred_check
        %p3791 = pneg %p3790
      $region62: #{tpu_custom_call.1} parent=5 // pred_check_branch
        %3793 = sbr.rel (%p3791) target = $region64
      $region63: #{tpu_custom_call.1} parent=5 // pred_region
        %s3794 = ssub.s32 %s21, 2
        // Predicated region
        $region65: #{tpu_custom_call.1} parent=63 // pred_check
          %p3795 = pneg %p186
        $region66: #{tpu_custom_call.1} parent=63 // pred_check_branch
          %3797 = sbr.rel (%p3795) target = $region68
        $region67: #{tpu_custom_call.1} parent=63 // pred_region
          %s3798 = sand.u32 %s171, 1
          %s3799 = scalar_lea.sflag [#allocation4], %s3798
          %s3800 = sand.u32 %s171, 1
          %s3801 = smul.addr %s3800, 64
          %s3802 = scalar_lea.vmem [#allocation8], %s3801
          %3803 = dma.done %s3799, 1024
        $region68: #{tpu_custom_call.1} parent=63 // pred_fallthru
          _
      $region64: #{tpu_custom_call.1} parent=5 // pred_fallthru
        _
    $region6: #{tpu_custom_call.1} parent=1 // loop_footer
      %s25 = sadd.s32 1, %s21
    $region7: #{tpu_custom_call.1} parent=1 // loop_footer_branch
      %20 = sbr.rel target = $region3
    $region8: #{tpu_custom_call.1} parent=1 // loop_exit
      _
    %3804 = vsyncpa [#allocation3], 1
    %s3805 = scalar_lea.sflag [#allocation3], 1
    %3806 = vsyncpa %s3805, 1
    %3807 = vsyncpa [#allocation6], 1
    %s3808 = scalar_lea.sflag [#allocation6], 1
    %3809 = vsyncpa %s3808, 1
    %3810 = vsyncpa [#allocation4], 1
    %s3811 = scalar_lea.sflag [#allocation4], 1
    %3812 = vsyncpa %s3811, 1

</llo_original>
